<compile_context>
chip_gen: v7x
topology: tpu7x:2x2x1
jax: 0.10.0
libtpu: 0.0.40
codegen_flags: <defaults>
</compile_context>

<pallas_src>
import functools
import math

import jax
import jax.numpy as jnp
import numpy as np
from jax.experimental import pallas as pl
from jax.experimental.pallas import tpu as pltpu


@functools.lru_cache(maxsize=None)
def _vmem_limit_bytes():
    """Generation-aware scoped-VMEM limit (~3/4 of physical, capped at 100 MiB)."""
    cap = 64 * 1024 * 1024
    try:
        info = pltpu.get_tpu_info()
        cap = int(getattr(info, "vmem_capacity_bytes", cap)) or cap
    except Exception:
        pass
    return int(min(100 * 1024 * 1024, (cap * 3) // 4))


# ---------------------------------------------------------------------------
# Pallas kernels
# ---------------------------------------------------------------------------
def _matmul_kernel(*refs, ln, act, residual, eps):
    """Fused (optional LayerNorm) -> x @ W + b -> (optional QuickGELU) -> (optional +res).

    LN statistics, bias add, activation, residual add and the matmul accumulator are f32;
    the matmul operands are cast to bf16 to hit the native MXU rate.
    """
    it = iter(refs)
    x_ref = next(it)
    g_ref = bln_ref = None
    if ln:
        g_ref = next(it)
        bln_ref = next(it)
    w_ref = next(it)
    b_ref = next(it)
    r_ref = next(it) if residual else None
    o_ref = next(it)

    x = x_ref[...].astype(jnp.float32)                       # (tm, K)
    if ln:
        mu = jnp.mean(x, axis=-1, keepdims=True)
        var = jnp.mean(jnp.square(x - mu), axis=-1, keepdims=True)
        x = (x - mu) * jax.lax.rsqrt(var + eps)
        x = x * g_ref[...].astype(jnp.float32) + bln_ref[...].astype(jnp.float32)
    y = jnp.dot(x.astype(jnp.bfloat16), w_ref[...].astype(jnp.bfloat16),
                preferred_element_type=jnp.float32)
    y = y + b_ref[...].astype(jnp.float32)
    if act == "quick_gelu":
        y = y * (1.0 / (1.0 + jnp.exp(-1.702 * y)))
    if residual:
        y = y + r_ref[...].astype(jnp.float32)
    o_ref[...] = y.astype(o_ref.dtype)


def _mha_kernel(qkv_ref, o_ref, *, n_head, scale):
    """Multi-head attention over a (nb, S, 3D) block of fused QKV; writes (nb, S, D).

    Heads are processed by static lane slices of the ref (no materialized slab) and each
    head's output is stored directly into its lane range of the output block, bounding
    live ranges to one head's working set.  Score/PV matmuls use bf16 operands with f32
    accumulation; the softmax normalization uses the EUP approximate reciprocal.
    """
    nb, s, d3 = qkv_ref.shape
    d = d3 // 3
    dh = d // n_head
    for h in range(n_head):                                   # static unroll over heads
        q = qkv_ref[:, :, h * dh:(h + 1) * dh].astype(jnp.bfloat16)         # (nb, S, dh)
        k = qkv_ref[:, :, d + h * dh: d + (h + 1) * dh].astype(jnp.bfloat16)
        v = qkv_ref[:, :, 2 * d + h * dh: 2 * d + (h + 1) * dh].astype(jnp.bfloat16)
        # contraction on the last dim of both -> no explicit k transpose on the XLU
        sc = jnp.einsum("bqd,bkd->bqk", q, k,
                        preferred_element_type=jnp.float32) * scale          # (nb, S, S)
        sc = sc - jnp.max(sc, axis=-1, keepdims=True)
        p = jnp.exp(sc)
        p = p * pl.reciprocal(jnp.sum(p, axis=-1, keepdims=True), approx=True)
        o = jnp.einsum("bqk,bkd->bqd", p.astype(jnp.bfloat16), v,
                       preferred_element_type=jnp.float32)                   # (nb, S, dh)
        o_ref[:, :, h * dh:(h + 1) * dh] = o.astype(o_ref.dtype)


# ---------------------------------------------------------------------------
# Pallas wrappers
# ---------------------------------------------------------------------------
def pallas_matmul(x, w, b, *, gamma=None, beta=None, residual=None, act=None,
                  eps=1e-5, tm=256, tn=512):
    """y = [LN(x)] @ w + b, optional QuickGELU, optional +residual.

    x: (M, K); w: (K, N) pre-transposed (bf16 in HBM); b: (1, N); gamma/beta: (1, K);
    residual: (M, N), aliased into the output buffer.
    Grid is (N-tiles, M-tiles) with N whole whenever the weight fits the VMEM budget,
    so the weight/bias/LN params are DMA'd once and stay resident across all M tiles.
    """
    M, K = x.shape
    Kw, N = w.shape
    assert K == Kw
    ln = gamma is not None
    has_res = residual is not None
    out_dtype = x.dtype
    vmem_limit = _vmem_limit_bytes()

    # M tiling: no padding; Pallas clips the ragged last block (rows are independent).
    tm_ = M if M <= tm else tm
    grid_m = pl.cdiv(M, tm_)

    # N: keep the full weight resident (constant index_map) whenever it fits the budget;
    # only tile N for very large weights.  Full N also hoists LN out of any N loop.
    w_bytes = K * N * jnp.dtype(w.dtype).itemsize
    if w_bytes <= vmem_limit // 3 or N <= tn or N % tn != 0 or tn % 128 != 0:
        tn_ = N
    else:
        tn_ = tn
    grid_n = N // tn_

    grid = (grid_n, grid_m)            # N outer: a weight tile is reused across all M tiles

    in_specs = [pl.BlockSpec((tm_, K), lambda j, i: (i, 0))]
    args = [x]
    if ln:
        spec_k = pl.BlockSpec((1, K), lambda j, i: (0, 0))
        in_specs += [spec_k, spec_k]
        args += [gamma, beta]
    in_specs += [pl.BlockSpec((K, tn_), lambda j, i: (0, j)),
                 pl.BlockSpec((1, tn_), lambda j, i: (0, j))]
    args += [w, b]
    io_aliases = {}
    if has_res:
        in_specs.append(pl.BlockSpec((tm_, tn_), lambda j, i: (i, j)))
        args.append(residual)
        io_aliases = {len(args) - 1: 0}     # residual buffer becomes the output buffer

    itemsize_x = jnp.dtype(x.dtype).itemsize
    bytes_accessed = (M * K * itemsize_x + K * N * jnp.dtype(w.dtype).itemsize
                      + M * N * itemsize_x * (2 if has_res else 1))
    cost = pl.CostEstimate(flops=int(2 * M * K * N),
                           transcendentals=int(M * N if act else 0),
                           bytes_accessed=int(bytes_accessed))

    return pl.pallas_call(
        functools.partial(_matmul_kernel, ln=ln, act=act, residual=has_res, eps=eps),
        grid=grid,
        in_specs=in_specs,
        out_specs=pl.BlockSpec((tm_, tn_), lambda j, i: (i, j)),
        out_shape=jax.ShapeDtypeStruct((M, N), out_dtype),
        input_output_aliases=io_aliases,
        compiler_params=pltpu.CompilerParams(
            dimension_semantics=("parallel", "parallel"),
            vmem_limit_bytes=vmem_limit,
        ),
        cost_estimate=cost,
    )(*args)


def pallas_mha(qkv, n_head):
    """qkv: (N, S, 3D) batch-first fused QKV -> (N, S, D) attention output."""
    Nb, S, D3 = qkv.shape
    D = D3 // 3
    scale = 1.0 / math.sqrt(D // n_head)

    # Batch several elements per grid step so small-S launches (message tokens) fill
    # sublanes and amortize the per-step overhead; keep the per-step row count bounded.
    max_nb = max(1, min(Nb, 512 // S)) if S < 512 else 1
    nb = 1
    for cand in range(max_nb, 0, -1):
        if Nb % cand == 0:
            nb = cand
            break

    cost = pl.CostEstimate(
        flops=int(4 * Nb * S * S * D),
        transcendentals=int(Nb * n_head * S * S),
        bytes_accessed=int(Nb * S * (D3 + D) * jnp.dtype(qkv.dtype).itemsize),
    )

    return pl.pallas_call(
        functools.partial(_mha_kernel, n_head=n_head, scale=scale),
        grid=(Nb // nb,),
        in_specs=[pl.BlockSpec((nb, S, D3), lambda n: (n, 0, 0))],
        out_specs=pl.BlockSpec((nb, S, D), lambda n: (n, 0, 0)),
        out_shape=jax.ShapeDtypeStruct((Nb, S, D), qkv.dtype),
        compiler_params=pltpu.CompilerParams(
            dimension_semantics=("parallel",),
            vmem_limit_bytes=_vmem_limit_bytes(),
        ),
        cost_estimate=cost,
    )(qkv)


# ---------------------------------------------------------------------------
# Model forward (batch-first internally; mirrors CrossFramelAttentionBlock)
# ---------------------------------------------------------------------------
def mha_block(x_bf, ln_g, ln_b, p_attn, n_head):
    """Returns x + MHA(LN(x)), batch-first (N, S, D)."""
    N, S, D = x_bf.shape
    x2 = x_bf.reshape(N * S, D)
    qkv = pallas_matmul(x2, p_attn["in_w"], p_attn["in_b"], gamma=ln_g, beta=ln_b)
    attn = pallas_mha(qkv.reshape(N, S, 3 * D), n_head)                   # (N, S, D)
    out = pallas_matmul(attn.reshape(N * S, D), p_attn["out_w"], p_attn["out_b"],
                        residual=x2)                                      # out-proj + residual
    return out.reshape(N, S, D)


def block_forward(x_bf, p, T, n_head):
    """x_bf: (B*T, L, D) batch-first.  DropPath(0.0)==Identity; attn_mask is None."""
    BT, L, D = x_bf.shape
    B = BT // T

    # message-token path: message_fc on the first frame token, then MHA over T (batch=B)
    x0 = x_bf[:, 0, :]                                                    # (B*T, D)
    msg = pallas_matmul(x0, p["msg_fc_w"], p["msg_fc_b"]).reshape(B, T, D)
    msg = mha_block(msg, p["msg_ln_g"], p["msg_ln_b"], p["msg_attn"], n_head)

    # frame attention over [frame tokens..., message token] (seq = L+1, batch = B*T)
    xc = jnp.concatenate([x_bf, msg.reshape(BT, 1, D)], axis=1)           # (BT, L+1, D)
    xc = mha_block(xc, p["ln1_g"], p["ln1_b"], p["attn"], n_head)
    xc = xc[:, :L, :]                                                     # drop message token

    # MLP: LN2 -> fc + QuickGELU -> proj + residual
    xf = xc.reshape(BT * L, D)
    h = pallas_matmul(xf, p["fc_w"], p["fc_b"],
                      gamma=p["ln2_g"], beta=p["ln2_b"], act="quick_gelu")
    out = pallas_matmul(h, p["proj_w"], p["proj_b"], residual=xf)
    return out.reshape(BT, L, D)


def transformer_forward(x, params, T, n_head):
    # x: (L, B*T, D) seq-first (PyTorch layout); convert to batch-first once.
    x_bf = jnp.transpose(x, (1, 0, 2))
    for p in params:
        x_bf = block_forward(x_bf, p, T, n_head)
    return jnp.transpose(x_bf, (1, 0, 2))


# ---------------------------------------------------------------------------
# Pure-JAX reference (follows the PyTorch module layout exactly, f32 math)
# ---------------------------------------------------------------------------
def ref_linear(x, w, b, act=None):
    y = x @ w.astype(jnp.float32) + b
    if act == "quick_gelu":
        y = y * jax.nn.sigmoid(1.702 * y)
    return y


def ref_layernorm(x, g, b, eps=1e-5):
    mu = jnp.mean(x, axis=-1, keepdims=True)
    var = jnp.mean(jnp.square(x - mu), axis=-1, keepdims=True)
    return (x - mu) / jnp.sqrt(var + eps) * g + b


def ref_mha(x, p, n_head):
    # x: (S, N, D) seq-first like torch.nn.MultiheadAttention
    S, N, D = x.shape
    Dh = D // n_head
    qkv = ref_linear(x.reshape(S * N, D), p["in_w"], p["in_b"])
    q, k, v = jnp.split(qkv, 3, axis=-1)
    q = q * (1.0 / math.sqrt(Dh))

    def heads(t):
        return t.reshape(S, N, n_head, Dh).transpose(1, 2, 0, 3).reshape(N * n_head, S, Dh)

    s = jnp.einsum("bqd,bkd->bqk", heads(q), heads(k))
    pr = jax.nn.softmax(s, axis=-1)
    oh = jnp.einsum("bqk,bkd->bqd", pr, heads(v))
    o = oh.reshape(N, n_head, S, Dh).transpose(2, 0, 1, 3).reshape(S * N, D)
    return ref_linear(o, p["out_w"], p["out_b"]).reshape(S, N, D)


def ref_block(x, p, T, n_head):
    L, BT, D = x.shape
    B = BT // T
    x4 = x.reshape(L, B, T, D)
    msg = ref_linear(x4[0].reshape(B * T, D), p["msg_fc_w"], p["msg_fc_b"]).reshape(B, T, D)
    msg = jnp.transpose(msg, (1, 0, 2))                                   # (T, B, D)
    msg = msg + ref_mha(ref_layernorm(msg, p["msg_ln_g"], p["msg_ln_b"]),
                        p["msg_attn"], n_head)
    msg = jnp.transpose(msg, (1, 0, 2))[None]                             # (1, B, T, D)
    xc = jnp.concatenate([x4, msg], axis=0).reshape(L + 1, BT, D)
    xc = xc + ref_mha(ref_layernorm(xc, p["ln1_g"], p["ln1_b"]), p["attn"], n_head)
    xc = xc[:L]
    h = ref_linear(ref_layernorm(xc, p["ln2_g"], p["ln2_b"]).reshape(-1, D),
                   p["fc_w"], p["fc_b"], act="quick_gelu")
    h = ref_linear(h, p["proj_w"], p["proj_b"]).reshape(L, BT, D)
    return xc + h


def ref_transformer(x, params, T, n_head):
    for p in params:
        x = ref_block(x, p, T, n_head)
    return x


# ---------------------------------------------------------------------------
# Deterministic parameter init.
# Weights are stored pre-transposed (K, N) and in bf16 (halved HBM/VMEM footprint,
# native MXU operand dtype); biases and LN params stay f32 (added in f32).
# ---------------------------------------------------------------------------
def init_mha(key, d):
    ks = jax.random.split(key, 4)
    return {
        "in_w": (0.02 * jax.random.normal(ks[0], (d, 3 * d), jnp.float32)).astype(jnp.bfloat16),
        "in_b": 0.02 * jax.random.normal(ks[1], (1, 3 * d), jnp.float32),
        "out_w": (0.02 * jax.random.normal(ks[2], (d, d), jnp.float32)).astype(jnp.bfloat16),
        "out_b": 0.02 * jax.random.normal(ks[3], (1, d), jnp.float32),
    }


def init_block(key, d):
    ks = jax.random.split(key, 12)
    return {
        "msg_fc_w": (0.02 * jax.random.normal(ks[0], (d, d), jnp.float32)).astype(jnp.bfloat16),
        "msg_fc_b": 0.02 * jax.random.normal(ks[1], (1, d), jnp.float32),
        "msg_ln_g": 1.0 + 0.02 * jax.random.normal(ks[2], (1, d), jnp.float32),
        "msg_ln_b": 0.02 * jax.random.normal(ks[3], (1, d), jnp.float32),
        "msg_attn": init_mha(ks[4], d),
        "ln1_g": 1.0 + 0.02 * jax.random.normal(ks[5], (1, d), jnp.float32),
        "ln1_b": 0.02 * jax.random.normal(ks[6], (1, d), jnp.float32),
        "attn": init_mha(ks[7], d),
        "ln2_g": 1.0 + 0.02 * jax.random.normal(ks[8], (1, d), jnp.float32),
        "ln2_b": 0.02 * jax.random.normal(ks[9], (1, d), jnp.float32),
        "fc_w": (0.02 * jax.random.normal(ks[10], (d, 4 * d), jnp.float32)).astype(jnp.bfloat16),
        "fc_b": jnp.zeros((1, 4 * d), jnp.float32),
        "proj_w": (0.02 * jax.random.normal(ks[11], (4 * d, d), jnp.float32)).astype(jnp.bfloat16),
        "proj_b": jnp.zeros((1, d), jnp.float32),
    }


if __name__ == "__main__":
    # Transformer(width=32, layers=2, heads=4, T=2); input (L, B*T, D)
    width, layers, heads, T = 32, 2, 4, 2
    L, B = 8, 2
    key = jax.random.PRNGKey(0)
    kx, kp = jax.random.split(key)
    x = jax.random.normal(kx, (L, B * T, width), jnp.float32)
    params = [init_block(k, width) for k in jax.random.split(kp, layers)]

    pallas_fn = jax.jit(lambda xx: transformer_forward(xx, params, T, heads))
    out = jax.block_until_ready(pallas_fn(x))

    ref = ref_transformer(x, params, T, heads)
    # tolerance accounts for bf16 MXU operands (f32 accumulation) and the EUP
    # approximate reciprocal in the softmax epilogue; weights are bf16 in both paths.
    np.testing.assert_allclose(np.asarray(out), np.asarray(ref), rtol=2e-2, atol=2e-2)

    print("KERNEL_OK")
</pallas_src>

<mosaic_0001>
module attributes {stable_mosaic.version = 11 : i64} {
  func.func @_matmul_kernel(%arg0: i32, %arg1: i32, %arg2: memref<4x32xf32, #tpu.memory_space<vmem>>, %arg3: memref<32x32xbf16, #tpu.memory_space<vmem>>, %arg4: memref<1x32xf32, #tpu.memory_space<vmem>>, %arg5: memref<4x32xf32, #tpu.memory_space<vmem>>) attributes {dimension_semantics = [#tpu.dimension_semantics<parallel>, #tpu.dimension_semantics<parallel>], iteration_bounds = array<i64: 1, 1>, scalar_prefetch = 0 : i64, scratch_operands = 0 : i64, tpu.core_type = #tpu.core_type<tc>, window_params = [{transform_indices = @transform_0, window_bounds = array<i64: 4, 32>}, {transform_indices = @transform_1, window_bounds = array<i64: 32, 32>}, {transform_indices = @transform_2, window_bounds = array<i64: 1, 32>}, {transform_indices = @transform_3, window_bounds = array<i64: 4, 32>}]} {
    %c0 = arith.constant 0 : index
    %c0_0 = arith.constant 0 : index
    %0 = vector.load %arg2[%c0, %c0_0] : memref<4x32xf32, #tpu.memory_space<vmem>>, vector<4x32xf32>
    %1 = arith.truncf %0 : vector<4x32xf32> to vector<4x32xbf16>
    %c0_1 = arith.constant 0 : index
    %c0_2 = arith.constant 0 : index
    %2 = vector.load %arg3[%c0_1, %c0_2] : memref<32x32xbf16, #tpu.memory_space<vmem>>, vector<32x32xbf16>
    %cst = arith.constant dense<0.000000e+00> : vector<4x32xf32>
    %3 = tpu.matmul %1, %2, %cst {dimension_numbers = #tpu.dot_dimension_numbers<[1], [0], [0], [1], [0, 0, 1, 1], [], []>} : vector<4x32xbf16>, vector<32x32xbf16>, vector<4x32xf32> -> vector<4x32xf32>
    %c0_3 = arith.constant 0 : index
    %c0_4 = arith.constant 0 : index
    %4 = vector.load %arg4[%c0_3, %c0_4] : memref<1x32xf32, #tpu.memory_space<vmem>>, vector<1x32xf32>
    %5 = vector.broadcast %4 : vector<1x32xf32> to vector<4x32xf32>
    %6 = arith.addf %3, %5 : vector<4x32xf32>
    %c0_5 = arith.constant 0 : index
    %c0_6 = arith.constant 0 : index
    %7 = vector.load %arg5[%c0_5, %c0_6] : memref<4x32xf32, #tpu.memory_space<vmem>>, vector<4x32xf32>
    tpu.vector_store %arg5[%c0_5, %c0_6], %6 {strides = array<i32>} : memref<4x32xf32, #tpu.memory_space<vmem>>, vector<4x32xf32>,
    return
  }
  func.func @transform_0(%arg0: i32, %arg1: i32) -> (i32, i32) {
    %c0_i32 = arith.constant 0 : i32
    %c0_i32_0 = arith.constant 0 : i32
    return %arg1, %c0_i32 : i32, i32
  }
  func.func @transform_1(%arg0: i32, %arg1: i32) -> (i32, i32) {
    %c0_i32 = arith.constant 0 : i32
    %c0_i32_0 = arith.constant 0 : i32
    return %c0_i32, %arg0 : i32, i32
  }
  func.func @transform_2(%arg0: i32, %arg1: i32) -> (i32, i32) {
    %c0_i32 = arith.constant 0 : i32
    %c0_i32_0 = arith.constant 0 : i32
    return %c0_i32, %arg0 : i32, i32
  }
  func.func @transform_3(%arg0: i32, %arg1: i32) -> (i32, i32) {
    %c0_i32 = arith.constant 0 : i32
    return %arg1, %arg0 : i32, i32
  }
}

module attributes {stable_mosaic.version = 11 : i64} {
  func.func @_matmul_kernel(%arg0: i32, %arg1: i32, %arg2: memref<4x32xf32, #tpu.memory_space<vmem>>, %arg3: memref<1x32xf32, #tpu.memory_space<vmem>>, %arg4: memref<1x32xf32, #tpu.memory_space<vmem>>, %arg5: memref<32x96xbf16, #tpu.memory_space<vmem>>, %arg6: memref<1x96xf32, #tpu.memory_space<vmem>>, %arg7: memref<4x96xf32, #tpu.memory_space<vmem>>) attributes {dimension_semantics = [#tpu.dimension_semantics<parallel>, #tpu.dimension_semantics<parallel>], iteration_bounds = array<i64: 1, 1>, scalar_prefetch = 0 : i64, scratch_operands = 0 : i64, tpu.core_type = #tpu.core_type<tc>, window_params = [{transform_indices = @transform_0, window_bounds = array<i64: 4, 32>}, {pipeline_mode = #tpu.pipeline_mode<synchronous>, transform_indices = @transform_1, window_bounds = array<i64: 1, 32>}, {pipeline_mode = #tpu.pipeline_mode<synchronous>, transform_indices = @transform_2, window_bounds = array<i64: 1, 32>}, {transform_indices = @transform_3, window_bounds = array<i64: 32, 96>}, {transform_indices = @transform_4, window_bounds = array<i64: 1, 96>}, {transform_indices = @transform_5, window_bounds = array<i64: 4, 96>}]} {
    %c0 = arith.constant 0 : index
    %c0_0 = arith.constant 0 : index
    %0 = vector.load %arg2[%c0, %c0_0] : memref<4x32xf32, #tpu.memory_space<vmem>>, vector<4x32xf32>
    %cst = arith.constant dense<0.000000e+00> : vector<4xf32>
    %1 = vector.multi_reduction <add>, %0, %cst [1] : vector<4x32xf32> to vector<4xf32>
    %2 = vector.shape_cast %1 : vector<4xf32> to vector<4x1xf32>
    %cst_1 = arith.constant 3.200000e+01 : f32
    %3 = vector.broadcast %cst_1 : f32 to vector<4x1xf32>
    %4 = arith.divf %2, %3 : vector<4x1xf32>
    %5 = vector.broadcast %4 : vector<4x1xf32> to vector<4x32xf32>
    %6 = arith.subf %0, %5 : vector<4x32xf32>
    %7 = arith.mulf %6, %6 : vector<4x32xf32>
    %cst_2 = arith.constant dense<0.000000e+00> : vector<4xf32>
    %8 = vector.multi_reduction <add>, %7, %cst_2 [1] : vector<4x32xf32> to vector<4xf32>
    %9 = vector.shape_cast %8 : vector<4xf32> to vector<4x1xf32>
    %cst_3 = arith.constant 3.200000e+01 : f32
    %10 = vector.broadcast %cst_3 : f32 to vector<4x1xf32>
    %11 = arith.divf %9, %10 : vector<4x1xf32>
    %12 = vector.broadcast %4 : vector<4x1xf32> to vector<4x32xf32>
    %13 = arith.subf %0, %12 : vector<4x32xf32>
    %cst_4 = arith.constant 9.99999974E-6 : f32
    %14 = vector.broadcast %cst_4 : f32 to vector<4x1xf32>
    %15 = arith.addf %11, %14 : vector<4x1xf32>
    %16 = math.rsqrt %15 : vector<4x1xf32>
    %17 = vector.broadcast %16 : vector<4x1xf32> to vector<4x32xf32>
    %18 = arith.mulf %13, %17 : vector<4x32xf32>
    %c0_5 = arith.constant 0 : index
    %c0_6 = arith.constant 0 : index
    %19 = vector.load %arg3[%c0_5, %c0_6] : memref<1x32xf32, #tpu.memory_space<vmem>>, vector<1x32xf32>
    %20 = vector.broadcast %19 : vector<1x32xf32> to vector<4x32xf32>
    %21 = arith.mulf %18, %20 : vector<4x32xf32>
    %c0_7 = arith.constant 0 : index
    %c0_8 = arith.constant 0 : index
    %22 = vector.load %arg4[%c0_7, %c0_8] : memref<1x32xf32, #tpu.memory_space<vmem>>, vector<1x32xf32>
    %23 = vector.broadcast %22 : vector<1x32xf32> to vector<4x32xf32>
    %24 = arith.addf %21, %23 : vector<4x32xf32>
    %25 = arith.truncf %24 : vector<4x32xf32> to vector<4x32xbf16>
    %c0_9 = arith.constant 0 : index
    %c0_10 = arith.constant 0 : index
    %26 = vector.load %arg5[%c0_9, %c0_10] : memref<32x96xbf16, #tpu.memory_space<vmem>>, vector<32x96xbf16>
    %cst_11 = arith.constant dense<0.000000e+00> : vector<4x96xf32>
    %27 = tpu.matmul %25, %26, %cst_11 {dimension_numbers = #tpu.dot_dimension_numbers<[1], [0], [0], [1], [0, 0, 1, 1], [], []>} : vector<4x32xbf16>, vector<32x96xbf16>, vector<4x96xf32> -> vector<4x96xf32>
    %c0_12 = arith.constant 0 : index
    %c0_13 = arith.constant 0 : index
    %28 = vector.load %arg6[%c0_12, %c0_13] : memref<1x96xf32, #tpu.memory_space<vmem>>, vector<1x96xf32>
    %29 = vector.broadcast %28 : vector<1x96xf32> to vector<4x96xf32>
    %30 = arith.addf %27, %29 : vector<4x96xf32>
    %c0_14 = arith.constant 0 : index
    %c0_15 = arith.constant 0 : index
    %31 = vector.load %arg7[%c0_14, %c0_15] : memref<4x96xf32, #tpu.memory_space<vmem>>, vector<4x96xf32>
    tpu.vector_store %arg7[%c0_14, %c0_15], %30 {strides = array<i32>} : memref<4x96xf32, #tpu.memory_space<vmem>>, vector<4x96xf32>,
    return
  }
  func.func @transform_0(%arg0: i32, %arg1: i32) -> (i32, i32) {
    %c0_i32 = arith.constant 0 : i32
    %c0_i32_0 = arith.constant 0 : i32
    return %arg1, %c0_i32 : i32, i32
  }
  func.func @transform_1(%arg0: i32, %arg1: i32) -> (i32, i32) {
    %c0_i32 = arith.constant 0 : i32
    %c0_i32_0 = arith.constant 0 : i32
    %c0_i32_1 = arith.constant 0 : i32
    return %c0_i32, %c0_i32_0 : i32, i32
  }
  func.func @transform_2(%arg0: i32, %arg1: i32) -> (i32, i32) {
    %c0_i32 = arith.constant 0 : i32
    %c0_i32_0 = arith.constant 0 : i32
    %c0_i32_1 = arith.constant 0 : i32
    return %c0_i32, %c0_i32_0 : i32, i32
  }
  func.func @transform_3(%arg0: i32, %arg1: i32) -> (i32, i32) {
    %c0_i32 = arith.constant 0 : i32
    %c0_i32_0 = arith.constant 0 : i32
    return %c0_i32, %arg0 : i32, i32
  }
  func.func @transform_4(%arg0: i32, %arg1: i32) -> (i32, i32) {
    %c0_i32 = arith.constant 0 : i32
    %c0_i32_0 = arith.constant 0 : i32
    return %c0_i32, %arg0 : i32, i32
  }
  func.func @transform_5(%arg0: i32, %arg1: i32) -> (i32, i32) {
    %c0_i32 = arith.constant 0 : i32
    return %arg1, %arg0 : i32, i32
  }
}

module attributes {stable_mosaic.version = 11 : i64} {
  func.func @_mha_kernel(%arg0: i32, %arg1: memref<2x2x96xf32, #tpu.memory_space<vmem>>, %arg2: memref<2x2x32xf32, #tpu.memory_space<vmem>>) attributes {dimension_semantics = [#tpu.dimension_semantics<parallel>], iteration_bounds = array<i64: 1>, scalar_prefetch = 0 : i64, scratch_operands = 0 : i64, tpu.core_type = #tpu.core_type<tc>, window_params = [{transform_indices = @transform_0, window_bounds = array<i64: 2, 2, 96>}, {transform_indices = @transform_1, window_bounds = array<i64: 2, 2, 32>}]} {
    %c0 = arith.constant 0 : index
    %c0_0 = arith.constant 0 : index
    %c0_1 = arith.constant 0 : index
    %0 = vector.load %arg1[%c0, %c0_0, %c0_1] : memref<2x2x96xf32, #tpu.memory_space<vmem>>, vector<2x2x8xf32>
    %1 = arith.truncf %0 : vector<2x2x8xf32> to vector<2x2x8xbf16>
    %c0_2 = arith.constant 0 : index
    %c0_3 = arith.constant 0 : index
    %c32 = arith.constant 32 : index
    %2 = vector.load %arg1[%c0_2, %c0_3, %c32] : memref<2x2x96xf32, #tpu.memory_space<vmem>>, vector<2x2x8xf32>
    %3 = arith.truncf %2 : vector<2x2x8xf32> to vector<2x2x8xbf16>
    %c0_4 = arith.constant 0 : index
    %c0_5 = arith.constant 0 : index
    %c64 = arith.constant 64 : index
    %4 = vector.load %arg1[%c0_4, %c0_5, %c64] : memref<2x2x96xf32, #tpu.memory_space<vmem>>, vector<2x2x8xf32>
    %5 = arith.truncf %4 : vector<2x2x8xf32> to vector<2x2x8xbf16>
    "tpu.trace_start"() <{level = 10 : i32, message = "bqd,bkd->bqk"}> : () -> ()
    %cst = arith.constant dense<0.000000e+00> : vector<2x2x2xf32>
    %6 = tpu.matmul %1, %3, %cst {dimension_numbers = #tpu.dot_dimension_numbers<[2], [2], [1], [1], [0, 0, 0, 1, 1, 1], [0], [0]>} : vector<2x2x8xbf16>, vector<2x2x8xbf16>, vector<2x2x2xf32> -> vector<2x2x2xf32>
    "tpu.trace_stop"() : () -> ()
    %cst_6 = arith.constant 0.353553385 : f32
    %7 = vector.broadcast %cst_6 : f32 to vector<2x2x2xf32>
    %8 = arith.mulf %6, %7 : vector<2x2x2xf32>
    %cst_7 = arith.constant dense<0xFF800000> : vector<2x2xf32>
    %9 = vector.multi_reduction <maximumf>, %8, %cst_7 [2] : vector<2x2x2xf32> to vector<2x2xf32>
    %10 = vector.shape_cast %9 : vector<2x2xf32> to vector<2x2x1xf32>
    %11 = vector.broadcast %10 : vector<2x2x1xf32> to vector<2x2x2xf32>
    %12 = arith.subf %8, %11 : vector<2x2x2xf32>
    %13 = math.exp %12 : vector<2x2x2xf32>
    %cst_8 = arith.constant dense<0.000000e+00> : vector<2x2xf32>
    %14 = vector.multi_reduction <add>, %13, %cst_8 [2] : vector<2x2x2xf32> to vector<2x2xf32>
    %15 = vector.shape_cast %14 : vector<2x2xf32> to vector<2x2x1xf32>
    %16 = tpu.reciprocal %15 {approx = true} : vector<2x2x1xf32> -> vector<2x2x1xf32>
    %17 = vector.broadcast %16 : vector<2x2x1xf32> to vector<2x2x2xf32>
    %18 = arith.mulf %13, %17 : vector<2x2x2xf32>
    %19 = arith.truncf %18 : vector<2x2x2xf32> to vector<2x2x2xbf16>
    "tpu.trace_start"() <{level = 10 : i32, message = "bqk,bkd->bqd"}> : () -> ()
    %cst_9 = arith.constant dense<0.000000e+00> : vector<2x2x8xf32>
    %20 = tpu.matmul %19, %5, %cst_9 {dimension_numbers = #tpu.dot_dimension_numbers<[2], [1], [1], [2], [0, 0, 0, 1, 1, 2], [0], [0]>} : vector<2x2x2xbf16>, vector<2x2x8xbf16>, vector<2x2x8xf32> -> vector<2x2x8xf32>
    "tpu.trace_stop"() : () -> ()
    %c0_10 = arith.constant 0 : index
    %c0_11 = arith.constant 0 : index
    %c0_12 = arith.constant 0 : index
    %21 = vector.load %arg2[%c0_10, %c0_11, %c0_12] : memref<2x2x32xf32, #tpu.memory_space<vmem>>, vector<2x2x8xf32>
    tpu.vector_store %arg2[%c0_10, %c0_11, %c0_12], %20 {strides = array<i32>} : memref<2x2x32xf32, #tpu.memory_space<vmem>>, vector<2x2x8xf32>,
    %c0_13 = arith.constant 0 : index
    %c0_14 = arith.constant 0 : index
    %c8 = arith.constant 8 : index
    %22 = vector.load %arg1[%c0_13, %c0_14, %c8] : memref<2x2x96xf32, #tpu.memory_space<vmem>>, vector<2x2x8xf32>
    %23 = arith.truncf %22 : vector<2x2x8xf32> to vector<2x2x8xbf16>
    %c0_15 = arith.constant 0 : index
    %c0_16 = arith.constant 0 : index
    %c40 = arith.constant 40 : index
    %24 = vector.load %arg1[%c0_15, %c0_16, %c40] : memref<2x2x96xf32, #tpu.memory_space<vmem>>, vector<2x2x8xf32>
    %25 = arith.truncf %24 : vector<2x2x8xf32> to vector<2x2x8xbf16>
    %c0_17 = arith.constant 0 : index
    %c0_18 = arith.constant 0 : index
    %c72 = arith.constant 72 : index
    %26 = vector.load %arg1[%c0_17, %c0_18, %c72] : memref<2x2x96xf32, #tpu.memory_space<vmem>>, vector<2x2x8xf32>
    %27 = arith.truncf %26 : vector<2x2x8xf32> to vector<2x2x8xbf16>
    "tpu.trace_start"() <{level = 10 : i32, message = "bqd,bkd->bqk"}> : () -> ()
    %cst_19 = arith.constant dense<0.000000e+00> : vector<2x2x2xf32>
    %28 = tpu.matmul %23, %25, %cst_19 {dimension_numbers = #tpu.dot_dimension_numbers<[2], [2], [1], [1], [0, 0, 0, 1, 1, 1], [0], [0]>} : vector<2x2x8xbf16>, vector<2x2x8xbf16>, vector<2x2x2xf32> -> vector<2x2x2xf32>
    "tpu.trace_stop"() : () -> ()
    %cst_20 = arith.constant 0.353553385 : f32
    %29 = vector.broadcast %cst_20 : f32 to vector<2x2x2xf32>
    %30 = arith.mulf %28, %29 : vector<2x2x2xf32>
    %cst_21 = arith.constant dense<0xFF800000> : vector<2x2xf32>
    %31 = vector.multi_reduction <maximumf>, %30, %cst_21 [2] : vector<2x2x2xf32> to vector<2x2xf32>
    %32 = vector.shape_cast %31 : vector<2x2xf32> to vector<2x2x1xf32>
    %33 = vector.broadcast %32 : vector<2x2x1xf32> to vector<2x2x2xf32>
    %34 = arith.subf %30, %33 : vector<2x2x2xf32>
    %35 = math.exp %34 : vector<2x2x2xf32>
    %cst_22 = arith.constant dense<0.000000e+00> : vector<2x2xf32>
    %36 = vector.multi_reduction <add>, %35, %cst_22 [2] : vector<2x2x2xf32> to vector<2x2xf32>
    %37 = vector.shape_cast %36 : vector<2x2xf32> to vector<2x2x1xf32>
    %38 = tpu.reciprocal %37 {approx = true} : vector<2x2x1xf32> -> vector<2x2x1xf32>
    %39 = vector.broadcast %38 : vector<2x2x1xf32> to vector<2x2x2xf32>
    %40 = arith.mulf %35, %39 : vector<2x2x2xf32>
    %41 = arith.truncf %40 : vector<2x2x2xf32> to vector<2x2x2xbf16>
    "tpu.trace_start"() <{level = 10 : i32, message = "bqk,bkd->bqd"}> : () -> ()
    %cst_23 = arith.constant dense<0.000000e+00> : vector<2x2x8xf32>
    %42 = tpu.matmul %41, %27, %cst_23 {dimension_numbers = #tpu.dot_dimension_numbers<[2], [1], [1], [2], [0, 0, 0, 1, 1, 2], [0], [0]>} : vector<2x2x2xbf16>, vector<2x2x8xbf16>, vector<2x2x8xf32> -> vector<2x2x8xf32>
    "tpu.trace_stop"() : () -> ()
    %c0_24 = arith.constant 0 : index
    %c0_25 = arith.constant 0 : index
    %c8_26 = arith.constant 8 : index
    %43 = vector.load %arg2[%c0_24, %c0_25, %c8_26] : memref<2x2x32xf32, #tpu.memory_space<vmem>>, vector<2x2x8xf32>
    tpu.vector_store %arg2[%c0_24, %c0_25, %c8_26], %42 {strides = array<i32>} : memref<2x2x32xf32, #tpu.memory_space<vmem>>, vector<2x2x8xf32>,
    %c0_27 = arith.constant 0 : index
    %c0_28 = arith.constant 0 : index
    %c16 = arith.constant 16 : index
    %44 = vector.load %arg1[%c0_27, %c0_28, %c16] : memref<2x2x96xf32, #tpu.memory_space<vmem>>, vector<2x2x8xf32>
    %45 = arith.truncf %44 : vector<2x2x8xf32> to vector<2x2x8xbf16>
    %c0_29 = arith.constant 0 : index
    %c0_30 = arith.constant 0 : index
    %c48 = arith.constant 48 : index
    %46 = vector.load %arg1[%c0_29, %c0_30, %c48] : memref<2x2x96xf32, #tpu.memory_space<vmem>>, vector<2x2x8xf32>
    %47 = arith.truncf %46 : vector<2x2x8xf32> to vector<2x2x8xbf16>
    %c0_31 = arith.constant 0 : index
    %c0_32 = arith.constant 0 : index
    %c80 = arith.constant 80 : index
    %48 = vector.load %arg1[%c0_31, %c0_32, %c80] : memref<2x2x96xf32, #tpu.memory_space<vmem>>, vector<2x2x8xf32>
    %49 = arith.truncf %48 : vector<2x2x8xf32> to vector<2x2x8xbf16>
    "tpu.trace_start"() <{level = 10 : i32, message = "bqd,bkd->bqk"}> : () -> ()
    %cst_33 = arith.constant dense<0.000000e+00> : vector<2x2x2xf32>
    %50 = tpu.matmul %45, %47, %cst_33 {dimension_numbers = #tpu.dot_dimension_numbers<[2], [2], [1], [1], [0, 0, 0, 1, 1, 1], [0], [0]>} : vector<2x2x8xbf16>, vector<2x2x8xbf16>, vector<2x2x2xf32> -> vector<2x2x2xf32>
    "tpu.trace_stop"() : () -> ()
    %cst_34 = arith.constant 0.353553385 : f32
    %51 = vector.broadcast %cst_34 : f32 to vector<2x2x2xf32>
    %52 = arith.mulf %50, %51 : vector<2x2x2xf32>
    %cst_35 = arith.constant dense<0xFF800000> : vector<2x2xf32>
    %53 = vector.multi_reduction <maximumf>, %52, %cst_35 [2] : vector<2x2x2xf32> to vector<2x2xf32>
    %54 = vector.shape_cast %53 : vector<2x2xf32> to vector<2x2x1xf32>
    %55 = vector.broadcast %54 : vector<2x2x1xf32> to vector<2x2x2xf32>
    %56 = arith.subf %52, %55 : vector<2x2x2xf32>
    %57 = math.exp %56 : vector<2x2x2xf32>
    %cst_36 = arith.constant dense<0.000000e+00> : vector<2x2xf32>
    %58 = vector.multi_reduction <add>, %57, %cst_36 [2] : vector<2x2x2xf32> to vector<2x2xf32>
    %59 = vector.shape_cast %58 : vector<2x2xf32> to vector<2x2x1xf32>
    %60 = tpu.reciprocal %59 {approx = true} : vector<2x2x1xf32> -> vector<2x2x1xf32>
    %61 = vector.broadcast %60 : vector<2x2x1xf32> to vector<2x2x2xf32>
    %62 = arith.mulf %57, %61 : vector<2x2x2xf32>
    %63 = arith.truncf %62 : vector<2x2x2xf32> to vector<2x2x2xbf16>
    "tpu.trace_start"() <{level = 10 : i32, message = "bqk,bkd->bqd"}> : () -> ()
    %cst_37 = arith.constant dense<0.000000e+00> : vector<2x2x8xf32>
    %64 = tpu.matmul %63, %49, %cst_37 {dimension_numbers = #tpu.dot_dimension_numbers<[2], [1], [1], [2], [0, 0, 0, 1, 1, 2], [0], [0]>} : vector<2x2x2xbf16>, vector<2x2x8xbf16>, vector<2x2x8xf32> -> vector<2x2x8xf32>
    "tpu.trace_stop"() : () -> ()
    %c0_38 = arith.constant 0 : index
    %c0_39 = arith.constant 0 : index
    %c16_40 = arith.constant 16 : index
    %65 = vector.load %arg2[%c0_38, %c0_39, %c16_40] : memref<2x2x32xf32, #tpu.memory_space<vmem>>, vector<2x2x8xf32>
    tpu.vector_store %arg2[%c0_38, %c0_39, %c16_40], %64 {strides = array<i32>} : memref<2x2x32xf32, #tpu.memory_space<vmem>>, vector<2x2x8xf32>,
    %c0_41 = arith.constant 0 : index
    %c0_42 = arith.constant 0 : index
    %c24 = arith.constant 24 : index
    %66 = vector.load %arg1[%c0_41, %c0_42, %c24] : memref<2x2x96xf32, #tpu.memory_space<vmem>>, vector<2x2x8xf32>
    %67 = arith.truncf %66 : vector<2x2x8xf32> to vector<2x2x8xbf16>
    %c0_43 = arith.constant 0 : index
    %c0_44 = arith.constant 0 : index
    %c56 = arith.constant 56 : index
    %68 = vector.load %arg1[%c0_43, %c0_44, %c56] : memref<2x2x96xf32, #tpu.memory_space<vmem>>, vector<2x2x8xf32>
    %69 = arith.truncf %68 : vector<2x2x8xf32> to vector<2x2x8xbf16>
    %c0_45 = arith.constant 0 : index
    %c0_46 = arith.constant 0 : index
    %c88 = arith.constant 88 : index
    %70 = vector.load %arg1[%c0_45, %c0_46, %c88] : memref<2x2x96xf32, #tpu.memory_space<vmem>>, vector<2x2x8xf32>
    %71 = arith.truncf %70 : vector<2x2x8xf32> to vector<2x2x8xbf16>
    "tpu.trace_start"() <{level = 10 : i32, message = "bqd,bkd->bqk"}> : () -> ()
    %cst_47 = arith.constant dense<0.000000e+00> : vector<2x2x2xf32>
    %72 = tpu.matmul %67, %69, %cst_47 {dimension_numbers = #tpu.dot_dimension_numbers<[2], [2], [1], [1], [0, 0, 0, 1, 1, 1], [0], [0]>} : vector<2x2x8xbf16>, vector<2x2x8xbf16>, vector<2x2x2xf32> -> vector<2x2x2xf32>
    "tpu.trace_stop"() : () -> ()
    %cst_48 = arith.constant 0.353553385 : f32
    %73 = vector.broadcast %cst_48 : f32 to vector<2x2x2xf32>
    %74 = arith.mulf %72, %73 : vector<2x2x2xf32>
    %cst_49 = arith.constant dense<0xFF800000> : vector<2x2xf32>
    %75 = vector.multi_reduction <maximumf>, %74, %cst_49 [2] : vector<2x2x2xf32> to vector<2x2xf32>
    %76 = vector.shape_cast %75 : vector<2x2xf32> to vector<2x2x1xf32>
    %77 = vector.broadcast %76 : vector<2x2x1xf32> to vector<2x2x2xf32>
    %78 = arith.subf %74, %77 : vector<2x2x2xf32>
    %79 = math.exp %78 : vector<2x2x2xf32>
    %cst_50 = arith.constant dense<0.000000e+00> : vector<2x2xf32>
    %80 = vector.multi_reduction <add>, %79, %cst_50 [2] : vector<2x2x2xf32> to vector<2x2xf32>
    %81 = vector.shape_cast %80 : vector<2x2xf32> to vector<2x2x1xf32>
    %82 = tpu.reciprocal %81 {approx = true} : vector<2x2x1xf32> -> vector<2x2x1xf32>
    %83 = vector.broadcast %82 : vector<2x2x1xf32> to vector<2x2x2xf32>
    %84 = arith.mulf %79, %83 : vector<2x2x2xf32>
    %85 = arith.truncf %84 : vector<2x2x2xf32> to vector<2x2x2xbf16>
    "tpu.trace_start"() <{level = 10 : i32, message = "bqk,bkd->bqd"}> : () -> ()
    %cst_51 = arith.constant dense<0.000000e+00> : vector<2x2x8xf32>
    %86 = tpu.matmul %85, %71, %cst_51 {dimension_numbers = #tpu.dot_dimension_numbers<[2], [1], [1], [2], [0, 0, 0, 1, 1, 2], [0], [0]>} : vector<2x2x2xbf16>, vector<2x2x8xbf16>, vector<2x2x8xf32> -> vector<2x2x8xf32>
    "tpu.trace_stop"() : () -> ()
    %c0_52 = arith.constant 0 : index
    %c0_53 = arith.constant 0 : index
    %c24_54 = arith.constant 24 : index
    %87 = vector.load %arg2[%c0_52, %c0_53, %c24_54] : memref<2x2x32xf32, #tpu.memory_space<vmem>>, vector<2x2x8xf32>
    tpu.vector_store %arg2[%c0_52, %c0_53, %c24_54], %86 {strides = array<i32>} : memref<2x2x32xf32, #tpu.memory_space<vmem>>, vector<2x2x8xf32>,
    return
  }
  func.func @transform_0(%arg0: i32) -> (i32, i32, i32) {
    %c0_i32 = arith.constant 0 : i32
    %c0_i32_0 = arith.constant 0 : i32
    %c0_i32_1 = arith.constant 0 : i32
    return %arg0, %c0_i32, %c0_i32_0 : i32, i32, i32
  }
  func.func @transform_1(%arg0: i32) -> (i32, i32, i32) {
    %c0_i32 = arith.constant 0 : i32
    %c0_i32_0 = arith.constant 0 : i32
    %c0_i32_1 = arith.constant 0 : i32
    return %arg0, %c0_i32, %c0_i32_0 : i32, i32, i32
  }
}

module attributes {stable_mosaic.version = 11 : i64} {
  func.func @_matmul_kernel(%arg0: i32, %arg1: i32, %arg2: memref<4x32xf32, #tpu.memory_space<vmem>>, %arg3: memref<32x32xbf16, #tpu.memory_space<vmem>>, %arg4: memref<1x32xf32, #tpu.memory_space<vmem>>, %arg5: memref<4x32xf32, #tpu.memory_space<vmem>>, %arg6: memref<4x32xf32, #tpu.memory_space<vmem>>) attributes {dimension_semantics = [#tpu.dimension_semantics<parallel>, #tpu.dimension_semantics<parallel>], iteration_bounds = array<i64: 1, 1>, scalar_prefetch = 0 : i64, scratch_operands = 0 : i64, tpu.core_type = #tpu.core_type<tc>, window_params = [{transform_indices = @transform_0, window_bounds = array<i64: 4, 32>}, {transform_indices = @transform_1, window_bounds = array<i64: 32, 32>}, {transform_indices = @transform_2, window_bounds = array<i64: 1, 32>}, {transform_indices = @transform_3, window_bounds = array<i64: 4, 32>}, {transform_indices = @transform_4, window_bounds = array<i64: 4, 32>}]} {
    %c0 = arith.constant 0 : index
    %c0_0 = arith.constant 0 : index
    %0 = vector.load %arg2[%c0, %c0_0] : memref<4x32xf32, #tpu.memory_space<vmem>>, vector<4x32xf32>
    %1 = arith.truncf %0 : vector<4x32xf32> to vector<4x32xbf16>
    %c0_1 = arith.constant 0 : index
    %c0_2 = arith.constant 0 : index
    %2 = vector.load %arg3[%c0_1, %c0_2] : memref<32x32xbf16, #tpu.memory_space<vmem>>, vector<32x32xbf16>
    %cst = arith.constant dense<0.000000e+00> : vector<4x32xf32>
    %3 = tpu.matmul %1, %2, %cst {dimension_numbers = #tpu.dot_dimension_numbers<[1], [0], [0], [1], [0, 0, 1, 1], [], []>} : vector<4x32xbf16>, vector<32x32xbf16>, vector<4x32xf32> -> vector<4x32xf32>
    %c0_3 = arith.constant 0 : index
    %c0_4 = arith.constant 0 : index
    %4 = vector.load %arg4[%c0_3, %c0_4] : memref<1x32xf32, #tpu.memory_space<vmem>>, vector<1x32xf32>
    %5 = vector.broadcast %4 : vector<1x32xf32> to vector<4x32xf32>
    %6 = arith.addf %3, %5 : vector<4x32xf32>
    %c0_5 = arith.constant 0 : index
    %c0_6 = arith.constant 0 : index
    %7 = vector.load %arg5[%c0_5, %c0_6] : memref<4x32xf32, #tpu.memory_space<vmem>>, vector<4x32xf32>
    %8 = arith.addf %6, %7 : vector<4x32xf32>
    %c0_7 = arith.constant 0 : index
    %c0_8 = arith.constant 0 : index
    %9 = vector.load %arg6[%c0_7, %c0_8] : memref<4x32xf32, #tpu.memory_space<vmem>>, vector<4x32xf32>
    tpu.vector_store %arg6[%c0_7, %c0_8], %8 {strides = array<i32>} : memref<4x32xf32, #tpu.memory_space<vmem>>, vector<4x32xf32>,
    return
  }
  func.func @transform_0(%arg0: i32, %arg1: i32) -> (i32, i32) {
    %c0_i32 = arith.constant 0 : i32
    %c0_i32_0 = arith.constant 0 : i32
    return %arg1, %c0_i32 : i32, i32
  }
  func.func @transform_1(%arg0: i32, %arg1: i32) -> (i32, i32) {
    %c0_i32 = arith.constant 0 : i32
    %c0_i32_0 = arith.constant 0 : i32
    return %c0_i32, %arg0 : i32, i32
  }
  func.func @transform_2(%arg0: i32, %arg1: i32) -> (i32, i32) {
    %c0_i32 = arith.constant 0 : i32
    %c0_i32_0 = arith.constant 0 : i32
    return %c0_i32, %arg0 : i32, i32
  }
  func.func @transform_3(%arg0: i32, %arg1: i32) -> (i32, i32) {
    %c0_i32 = arith.constant 0 : i32
    return %arg1, %arg0 : i32, i32
  }
  func.func @transform_4(%arg0: i32, %arg1: i32) -> (i32, i32) {
    %c0_i32 = arith.constant 0 : i32
    return %arg1, %arg0 : i32, i32
  }
}

module attributes {stable_mosaic.version = 11 : i64} {
  func.func @_mha_kernel(%arg0: i32, %arg1: memref<4x9x96xf32, #tpu.memory_space<vmem>>, %arg2: memref<4x9x32xf32, #tpu.memory_space<vmem>>) attributes {dimension_semantics = [#tpu.dimension_semantics<parallel>], iteration_bounds = array<i64: 1>, scalar_prefetch = 0 : i64, scratch_operands = 0 : i64, tpu.core_type = #tpu.core_type<tc>, window_params = [{transform_indices = @transform_0, window_bounds = array<i64: 4, 9, 96>}, {transform_indices = @transform_1, window_bounds = array<i64: 4, 9, 32>}]} {
    %c0 = arith.constant 0 : index
    %c0_0 = arith.constant 0 : index
    %c0_1 = arith.constant 0 : index
    %0 = vector.load %arg1[%c0, %c0_0, %c0_1] : memref<4x9x96xf32, #tpu.memory_space<vmem>>, vector<4x9x8xf32>
    %1 = arith.truncf %0 : vector<4x9x8xf32> to vector<4x9x8xbf16>
    %c0_2 = arith.constant 0 : index
    %c0_3 = arith.constant 0 : index
    %c32 = arith.constant 32 : index
    %2 = vector.load %arg1[%c0_2, %c0_3, %c32] : memref<4x9x96xf32, #tpu.memory_space<vmem>>, vector<4x9x8xf32>
    %3 = arith.truncf %2 : vector<4x9x8xf32> to vector<4x9x8xbf16>
    %c0_4 = arith.constant 0 : index
    %c0_5 = arith.constant 0 : index
    %c64 = arith.constant 64 : index
    %4 = vector.load %arg1[%c0_4, %c0_5, %c64] : memref<4x9x96xf32, #tpu.memory_space<vmem>>, vector<4x9x8xf32>
    %5 = arith.truncf %4 : vector<4x9x8xf32> to vector<4x9x8xbf16>
    "tpu.trace_start"() <{level = 10 : i32, message = "bqd,bkd->bqk"}> : () -> ()
    %cst = arith.constant dense<0.000000e+00> : vector<4x9x9xf32>
    %6 = tpu.matmul %1, %3, %cst {dimension_numbers = #tpu.dot_dimension_numbers<[2], [2], [1], [1], [0, 0, 0, 1, 1, 1], [0], [0]>} : vector<4x9x8xbf16>, vector<4x9x8xbf16>, vector<4x9x9xf32> -> vector<4x9x9xf32>
    "tpu.trace_stop"() : () -> ()
    %cst_6 = arith.constant 0.353553385 : f32
    %7 = vector.broadcast %cst_6 : f32 to vector<4x9x9xf32>
    %8 = arith.mulf %6, %7 : vector<4x9x9xf32>
    %cst_7 = arith.constant dense<0xFF800000> : vector<4x9xf32>
    %9 = vector.multi_reduction <maximumf>, %8, %cst_7 [2] : vector<4x9x9xf32> to vector<4x9xf32>
    %10 = vector.shape_cast %9 : vector<4x9xf32> to vector<4x9x1xf32>
    %11 = vector.broadcast %10 : vector<4x9x1xf32> to vector<4x9x9xf32>
    %12 = arith.subf %8, %11 : vector<4x9x9xf32>
    %13 = math.exp %12 : vector<4x9x9xf32>
    %cst_8 = arith.constant dense<0.000000e+00> : vector<4x9xf32>
    %14 = vector.multi_reduction <add>, %13, %cst_8 [2] : vector<4x9x9xf32> to vector<4x9xf32>
    %15 = vector.shape_cast %14 : vector<4x9xf32> to vector<4x9x1xf32>
    %16 = tpu.reciprocal %15 {approx = true} : vector<4x9x1xf32> -> vector<4x9x1xf32>
    %17 = vector.broadcast %16 : vector<4x9x1xf32> to vector<4x9x9xf32>
    %18 = arith.mulf %13, %17 : vector<4x9x9xf32>
    %19 = arith.truncf %18 : vector<4x9x9xf32> to vector<4x9x9xbf16>
    "tpu.trace_start"() <{level = 10 : i32, message = "bqk,bkd->bqd"}> : () -> ()
    %cst_9 = arith.constant dense<0.000000e+00> : vector<4x9x8xf32>
    %20 = tpu.matmul %19, %5, %cst_9 {dimension_numbers = #tpu.dot_dimension_numbers<[2], [1], [1], [2], [0, 0, 0, 1, 1, 2], [0], [0]>} : vector<4x9x9xbf16>, vector<4x9x8xbf16>, vector<4x9x8xf32> -> vector<4x9x8xf32>
    "tpu.trace_stop"() : () -> ()
    %c0_10 = arith.constant 0 : index
    %c0_11 = arith.constant 0 : index
    %c0_12 = arith.constant 0 : index
    %21 = vector.load %arg2[%c0_10, %c0_11, %c0_12] : memref<4x9x32xf32, #tpu.memory_space<vmem>>, vector<4x9x8xf32>
    tpu.vector_store %arg2[%c0_10, %c0_11, %c0_12], %20 {strides = array<i32>} : memref<4x9x32xf32, #tpu.memory_space<vmem>>, vector<4x9x8xf32>,
    %c0_13 = arith.constant 0 : index
    %c0_14 = arith.constant 0 : index
    %c8 = arith.constant 8 : index
    %22 = vector.load %arg1[%c0_13, %c0_14, %c8] : memref<4x9x96xf32, #tpu.memory_space<vmem>>, vector<4x9x8xf32>
    %23 = arith.truncf %22 : vector<4x9x8xf32> to vector<4x9x8xbf16>
    %c0_15 = arith.constant 0 : index
    %c0_16 = arith.constant 0 : index
    %c40 = arith.constant 40 : index
    %24 = vector.load %arg1[%c0_15, %c0_16, %c40] : memref<4x9x96xf32, #tpu.memory_space<vmem>>, vector<4x9x8xf32>
    %25 = arith.truncf %24 : vector<4x9x8xf32> to vector<4x9x8xbf16>
    %c0_17 = arith.constant 0 : index
    %c0_18 = arith.constant 0 : index
    %c72 = arith.constant 72 : index
    %26 = vector.load %arg1[%c0_17, %c0_18, %c72] : memref<4x9x96xf32, #tpu.memory_space<vmem>>, vector<4x9x8xf32>
    %27 = arith.truncf %26 : vector<4x9x8xf32> to vector<4x9x8xbf16>
    "tpu.trace_start"() <{level = 10 : i32, message = "bqd,bkd->bqk"}> : () -> ()
    %cst_19 = arith.constant dense<0.000000e+00> : vector<4x9x9xf32>
    %28 = tpu.matmul %23, %25, %cst_19 {dimension_numbers = #tpu.dot_dimension_numbers<[2], [2], [1], [1], [0, 0, 0, 1, 1, 1], [0], [0]>} : vector<4x9x8xbf16>, vector<4x9x8xbf16>, vector<4x9x9xf32> -> vector<4x9x9xf32>
    "tpu.trace_stop"() : () -> ()
    %cst_20 = arith.constant 0.353553385 : f32
    %29 = vector.broadcast %cst_20 : f32 to vector<4x9x9xf32>
    %30 = arith.mulf %28, %29 : vector<4x9x9xf32>
    %cst_21 = arith.constant dense<0xFF800000> : vector<4x9xf32>
    %31 = vector.multi_reduction <maximumf>, %30, %cst_21 [2] : vector<4x9x9xf32> to vector<4x9xf32>
    %32 = vector.shape_cast %31 : vector<4x9xf32> to vector<4x9x1xf32>
    %33 = vector.broadcast %32 : vector<4x9x1xf32> to vector<4x9x9xf32>
    %34 = arith.subf %30, %33 : vector<4x9x9xf32>
    %35 = math.exp %34 : vector<4x9x9xf32>
    %cst_22 = arith.constant dense<0.000000e+00> : vector<4x9xf32>
    %36 = vector.multi_reduction <add>, %35, %cst_22 [2] : vector<4x9x9xf32> to vector<4x9xf32>
    %37 = vector.shape_cast %36 : vector<4x9xf32> to vector<4x9x1xf32>
    %38 = tpu.reciprocal %37 {approx = true} : vector<4x9x1xf32> -> vector<4x9x1xf32>
    %39 = vector.broadcast %38 : vector<4x9x1xf32> to vector<4x9x9xf32>
    %40 = arith.mulf %35, %39 : vector<4x9x9xf32>
    %41 = arith.truncf %40 : vector<4x9x9xf32> to vector<4x9x9xbf16>
    "tpu.trace_start"() <{level = 10 : i32, message = "bqk,bkd->bqd"}> : () -> ()
    %cst_23 = arith.constant dense<0.000000e+00> : vector<4x9x8xf32>
    %42 = tpu.matmul %41, %27, %cst_23 {dimension_numbers = #tpu.dot_dimension_numbers<[2], [1], [1], [2], [0, 0, 0, 1, 1, 2], [0], [0]>} : vector<4x9x9xbf16>, vector<4x9x8xbf16>, vector<4x9x8xf32> -> vector<4x9x8xf32>
    "tpu.trace_stop"() : () -> ()
    %c0_24 = arith.constant 0 : index
    %c0_25 = arith.constant 0 : index
    %c8_26 = arith.constant 8 : index
    %43 = vector.load %arg2[%c0_24, %c0_25, %c8_26] : memref<4x9x32xf32, #tpu.memory_space<vmem>>, vector<4x9x8xf32>
    tpu.vector_store %arg2[%c0_24, %c0_25, %c8_26], %42 {strides = array<i32>} : memref<4x9x32xf32, #tpu.memory_space<vmem>>, vector<4x9x8xf32>,
    %c0_27 = arith.constant 0 : index
    %c0_28 = arith.constant 0 : index
    %c16 = arith.constant 16 : index
    %44 = vector.load %arg1[%c0_27, %c0_28, %c16] : memref<4x9x96xf32, #tpu.memory_space<vmem>>, vector<4x9x8xf32>
    %45 = arith.truncf %44 : vector<4x9x8xf32> to vector<4x9x8xbf16>
    %c0_29 = arith.constant 0 : index
    %c0_30 = arith.constant 0 : index
    %c48 = arith.constant 48 : index
    %46 = vector.load %arg1[%c0_29, %c0_30, %c48] : memref<4x9x96xf32, #tpu.memory_space<vmem>>, vector<4x9x8xf32>
    %47 = arith.truncf %46 : vector<4x9x8xf32> to vector<4x9x8xbf16>
    %c0_31 = arith.constant 0 : index
    %c0_32 = arith.constant 0 : index
    %c80 = arith.constant 80 : index
    %48 = vector.load %arg1[%c0_31, %c0_32, %c80] : memref<4x9x96xf32, #tpu.memory_space<vmem>>, vector<4x9x8xf32>
    %49 = arith.truncf %48 : vector<4x9x8xf32> to vector<4x9x8xbf16>
    "tpu.trace_start"() <{level = 10 : i32, message = "bqd,bkd->bqk"}> : () -> ()
    %cst_33 = arith.constant dense<0.000000e+00> : vector<4x9x9xf32>
    %50 = tpu.matmul %45, %47, %cst_33 {dimension_numbers = #tpu.dot_dimension_numbers<[2], [2], [1], [1], [0, 0, 0, 1, 1, 1], [0], [0]>} : vector<4x9x8xbf16>, vector<4x9x8xbf16>, vector<4x9x9xf32> -> vector<4x9x9xf32>
    "tpu.trace_stop"() : () -> ()
    %cst_34 = arith.constant 0.353553385 : f32
    %51 = vector.broadcast %cst_34 : f32 to vector<4x9x9xf32>
    %52 = arith.mulf %50, %51 : vector<4x9x9xf32>
    %cst_35 = arith.constant dense<0xFF800000> : vector<4x9xf32>
    %53 = vector.multi_reduction <maximumf>, %52, %cst_35 [2] : vector<4x9x9xf32> to vector<4x9xf32>
    %54 = vector.shape_cast %53 : vector<4x9xf32> to vector<4x9x1xf32>
    %55 = vector.broadcast %54 : vector<4x9x1xf32> to vector<4x9x9xf32>
    %56 = arith.subf %52, %55 : vector<4x9x9xf32>
    %57 = math.exp %56 : vector<4x9x9xf32>
    %cst_36 = arith.constant dense<0.000000e+00> : vector<4x9xf32>
    %58 = vector.multi_reduction <add>, %57, %cst_36 [2] : vector<4x9x9xf32> to vector<4x9xf32>
    %59 = vector.shape_cast %58 : vector<4x9xf32> to vector<4x9x1xf32>
    %60 = tpu.reciprocal %59 {approx = true} : vector<4x9x1xf32> -> vector<4x9x1xf32>
    %61 = vector.broadcast %60 : vector<4x9x1xf32> to vector<4x9x9xf32>
    %62 = arith.mulf %57, %61 : vector<4x9x9xf32>
    %63 = arith.truncf %62 : vector<4x9x9xf32> to vector<4x9x9xbf16>
    "tpu.trace_start"() <{level = 10 : i32, message = "bqk,bkd->bqd"}> : () -> ()
    %cst_37 = arith.constant dense<0.000000e+00> : vector<4x9x8xf32>
    %64 = tpu.matmul %63, %49, %cst_37 {dimension_numbers = #tpu.dot_dimension_numbers<[2], [1], [1], [2], [0, 0, 0, 1, 1, 2], [0], [0]>} : vector<4x9x9xbf16>, vector<4x9x8xbf16>, vector<4x9x8xf32> -> vector<4x9x8xf32>
    "tpu.trace_stop"() : () -> ()
    %c0_38 = arith.constant 0 : index
    %c0_39 = arith.constant 0 : index
    %c16_40 = arith.constant 16 : index
    %65 = vector.load %arg2[%c0_38, %c0_39, %c16_40] : memref<4x9x32xf32, #tpu.memory_space<vmem>>, vector<4x9x8xf32>
    tpu.vector_store %arg2[%c0_38, %c0_39, %c16_40], %64 {strides = array<i32>} : memref<4x9x32xf32, #tpu.memory_space<vmem>>, vector<4x9x8xf32>,
    %c0_41 = arith.constant 0 : index
    %c0_42 = arith.constant 0 : index
    %c24 = arith.constant 24 : index
    %66 = vector.load %arg1[%c0_41, %c0_42, %c24] : memref<4x9x96xf32, #tpu.memory_space<vmem>>, vector<4x9x8xf32>
    %67 = arith.truncf %66 : vector<4x9x8xf32> to vector<4x9x8xbf16>
    %c0_43 = arith.constant 0 : index
    %c0_44 = arith.constant 0 : index
    %c56 = arith.constant 56 : index
    %68 = vector.load %arg1[%c0_43, %c0_44, %c56] : memref<4x9x96xf32, #tpu.memory_space<vmem>>, vector<4x9x8xf32>
    %69 = arith.truncf %68 : vector<4x9x8xf32> to vector<4x9x8xbf16>
    %c0_45 = arith.constant 0 : index
    %c0_46 = arith.constant 0 : index
    %c88 = arith.constant 88 : index
    %70 = vector.load %arg1[%c0_45, %c0_46, %c88] : memref<4x9x96xf32, #tpu.memory_space<vmem>>, vector<4x9x8xf32>
    %71 = arith.truncf %70 : vector<4x9x8xf32> to vector<4x9x8xbf16>
    "tpu.trace_start"() <{level = 10 : i32, message = "bqd,bkd->bqk"}> : () -> ()
    %cst_47 = arith.constant dense<0.000000e+00> : vector<4x9x9xf32>
    %72 = tpu.matmul %67, %69, %cst_47 {dimension_numbers = #tpu.dot_dimension_numbers<[2], [2], [1], [1], [0, 0, 0, 1, 1, 1], [0], [0]>} : vector<4x9x8xbf16>, vector<4x9x8xbf16>, vector<4x9x9xf32> -> vector<4x9x9xf32>
    "tpu.trace_stop"() : () -> ()
    %cst_48 = arith.constant 0.353553385 : f32
    %73 = vector.broadcast %cst_48 : f32 to vector<4x9x9xf32>
    %74 = arith.mulf %72, %73 : vector<4x9x9xf32>
    %cst_49 = arith.constant dense<0xFF800000> : vector<4x9xf32>
    %75 = vector.multi_reduction <maximumf>, %74, %cst_49 [2] : vector<4x9x9xf32> to vector<4x9xf32>
    %76 = vector.shape_cast %75 : vector<4x9xf32> to vector<4x9x1xf32>
    %77 = vector.broadcast %76 : vector<4x9x1xf32> to vector<4x9x9xf32>
    %78 = arith.subf %74, %77 : vector<4x9x9xf32>
    %79 = math.exp %78 : vector<4x9x9xf32>
    %cst_50 = arith.constant dense<0.000000e+00> : vector<4x9xf32>
    %80 = vector.multi_reduction <add>, %79, %cst_50 [2] : vector<4x9x9xf32> to vector<4x9xf32>
    %81 = vector.shape_cast %80 : vector<4x9xf32> to vector<4x9x1xf32>
    %82 = tpu.reciprocal %81 {approx = true} : vector<4x9x1xf32> -> vector<4x9x1xf32>
    %83 = vector.broadcast %82 : vector<4x9x1xf32> to vector<4x9x9xf32>
    %84 = arith.mulf %79, %83 : vector<4x9x9xf32>
    %85 = arith.truncf %84 : vector<4x9x9xf32> to vector<4x9x9xbf16>
    "tpu.trace_start"() <{level = 10 : i32, message = "bqk,bkd->bqd"}> : () -> ()
    %cst_51 = arith.constant dense<0.000000e+00> : vector<4x9x8xf32>
    %86 = tpu.matmul %85, %71, %cst_51 {dimension_numbers = #tpu.dot_dimension_numbers<[2], [1], [1], [2], [0, 0, 0, 1, 1, 2], [0], [0]>} : vector<4x9x9xbf16>, vector<4x9x8xbf16>, vector<4x9x8xf32> -> vector<4x9x8xf32>
    "tpu.trace_stop"() : () -> ()
    %c0_52 = arith.constant 0 : index
    %c0_53 = arith.constant 0 : index
    %c24_54 = arith.constant 24 : index
    %87 = vector.load %arg2[%c0_52, %c0_53, %c24_54] : memref<4x9x32xf32, #tpu.memory_space<vmem>>, vector<4x9x8xf32>
    tpu.vector_store %arg2[%c0_52, %c0_53, %c24_54], %86 {strides = array<i32>} : memref<4x9x32xf32, #tpu.memory_space<vmem>>, vector<4x9x8xf32>,
    return
  }
  func.func @transform_0(%arg0: i32) -> (i32, i32, i32) {
    %c0_i32 = arith.constant 0 : i32
    %c0_i32_0 = arith.constant 0 : i32
    %c0_i32_1 = arith.constant 0 : i32
    return %arg0, %c0_i32, %c0_i32_0 : i32, i32, i32
  }
  func.func @transform_1(%arg0: i32) -> (i32, i32, i32) {
    %c0_i32 = arith.constant 0 : i32
    %c0_i32_0 = arith.constant 0 : i32
    %c0_i32_1 = arith.constant 0 : i32
    return %arg0, %c0_i32, %c0_i32_0 : i32, i32, i32
  }
}

module attributes {stable_mosaic.version = 11 : i64} {
  func.func @_matmul_kernel(%arg0: i32, %arg1: i32, %arg2: memref<36x32xf32, #tpu.memory_space<vmem>>, %arg3: memref<32x32xbf16, #tpu.memory_space<vmem>>, %arg4: memref<1x32xf32, #tpu.memory_space<vmem>>, %arg5: memref<36x32xf32, #tpu.memory_space<vmem>>, %arg6: memref<36x32xf32, #tpu.memory_space<vmem>>) attributes {dimension_semantics = [#tpu.dimension_semantics<parallel>, #tpu.dimension_semantics<parallel>], iteration_bounds = array<i64: 1, 1>, scalar_prefetch = 0 : i64, scratch_operands = 0 : i64, tpu.core_type = #tpu.core_type<tc>, window_params = [{transform_indices = @transform_0, window_bounds = array<i64: 36, 32>}, {transform_indices = @transform_1, window_bounds = array<i64: 32, 32>}, {transform_indices = @transform_2, window_bounds = array<i64: 1, 32>}, {transform_indices = @transform_3, window_bounds = array<i64: 36, 32>}, {transform_indices = @transform_4, window_bounds = array<i64: 36, 32>}]} {
    %c0 = arith.constant 0 : index
    %c0_0 = arith.constant 0 : index
    %0 = vector.load %arg2[%c0, %c0_0] : memref<36x32xf32, #tpu.memory_space<vmem>>, vector<36x32xf32>
    %1 = arith.truncf %0 : vector<36x32xf32> to vector<36x32xbf16>
    %c0_1 = arith.constant 0 : index
    %c0_2 = arith.constant 0 : index
    %2 = vector.load %arg3[%c0_1, %c0_2] : memref<32x32xbf16, #tpu.memory_space<vmem>>, vector<32x32xbf16>
    %cst = arith.constant dense<0.000000e+00> : vector<36x32xf32>
    %3 = tpu.matmul %1, %2, %cst {dimension_numbers = #tpu.dot_dimension_numbers<[1], [0], [0], [1], [0, 0, 1, 1], [], []>} : vector<36x32xbf16>, vector<32x32xbf16>, vector<36x32xf32> -> vector<36x32xf32>
    %c0_3 = arith.constant 0 : index
    %c0_4 = arith.constant 0 : index
    %4 = vector.load %arg4[%c0_3, %c0_4] : memref<1x32xf32, #tpu.memory_space<vmem>>, vector<1x32xf32>
    %5 = vector.broadcast %4 : vector<1x32xf32> to vector<36x32xf32>
    %6 = arith.addf %3, %5 : vector<36x32xf32>
    %c0_5 = arith.constant 0 : index
    %c0_6 = arith.constant 0 : index
    %7 = vector.load %arg5[%c0_5, %c0_6] : memref<36x32xf32, #tpu.memory_space<vmem>>, vector<36x32xf32>
    %8 = arith.addf %6, %7 : vector<36x32xf32>
    %c0_7 = arith.constant 0 : index
    %c0_8 = arith.constant 0 : index
    %9 = vector.load %arg6[%c0_7, %c0_8] : memref<36x32xf32, #tpu.memory_space<vmem>>, vector<36x32xf32>
    tpu.vector_store %arg6[%c0_7, %c0_8], %8 {strides = array<i32>} : memref<36x32xf32, #tpu.memory_space<vmem>>, vector<36x32xf32>,
    return
  }
  func.func @transform_0(%arg0: i32, %arg1: i32) -> (i32, i32) {
    %c0_i32 = arith.constant 0 : i32
    %c0_i32_0 = arith.constant 0 : i32
    return %arg1, %c0_i32 : i32, i32
  }
  func.func @transform_1(%arg0: i32, %arg1: i32) -> (i32, i32) {
    %c0_i32 = arith.constant 0 : i32
    %c0_i32_0 = arith.constant 0 : i32
    return %c0_i32, %arg0 : i32, i32
  }
  func.func @transform_2(%arg0: i32, %arg1: i32) -> (i32, i32) {
    %c0_i32 = arith.constant 0 : i32
    %c0_i32_0 = arith.constant 0 : i32
    return %c0_i32, %arg0 : i32, i32
  }
  func.func @transform_3(%arg0: i32, %arg1: i32) -> (i32, i32) {
    %c0_i32 = arith.constant 0 : i32
    return %arg1, %arg0 : i32, i32
  }
  func.func @transform_4(%arg0: i32, %arg1: i32) -> (i32, i32) {
    %c0_i32 = arith.constant 0 : i32
    return %arg1, %arg0 : i32, i32
  }
}

module attributes {stable_mosaic.version = 11 : i64} {
  func.func @_matmul_kernel(%arg0: i32, %arg1: i32, %arg2: memref<36x32xf32, #tpu.memory_space<vmem>>, %arg3: memref<1x32xf32, #tpu.memory_space<vmem>>, %arg4: memref<1x32xf32, #tpu.memory_space<vmem>>, %arg5: memref<32x96xbf16, #tpu.memory_space<vmem>>, %arg6: memref<1x96xf32, #tpu.memory_space<vmem>>, %arg7: memref<36x96xf32, #tpu.memory_space<vmem>>) attributes {dimension_semantics = [#tpu.dimension_semantics<parallel>, #tpu.dimension_semantics<parallel>], iteration_bounds = array<i64: 1, 1>, scalar_prefetch = 0 : i64, scratch_operands = 0 : i64, tpu.core_type = #tpu.core_type<tc>, window_params = [{transform_indices = @transform_0, window_bounds = array<i64: 36, 32>}, {pipeline_mode = #tpu.pipeline_mode<synchronous>, transform_indices = @transform_1, window_bounds = array<i64: 1, 32>}, {pipeline_mode = #tpu.pipeline_mode<synchronous>, transform_indices = @transform_2, window_bounds = array<i64: 1, 32>}, {transform_indices = @transform_3, window_bounds = array<i64: 32, 96>}, {transform_indices = @transform_4, window_bounds = array<i64: 1, 96>}, {transform_indices = @transform_5, window_bounds = array<i64: 36, 96>}]} {
    %c0 = arith.constant 0 : index
    %c0_0 = arith.constant 0 : index
    %0 = vector.load %arg2[%c0, %c0_0] : memref<36x32xf32, #tpu.memory_space<vmem>>, vector<36x32xf32>
    %cst = arith.constant dense<0.000000e+00> : vector<36xf32>
    %1 = vector.multi_reduction <add>, %0, %cst [1] : vector<36x32xf32> to vector<36xf32>
    %2 = vector.shape_cast %1 : vector<36xf32> to vector<36x1xf32>
    %cst_1 = arith.constant 3.200000e+01 : f32
    %3 = vector.broadcast %cst_1 : f32 to vector<36x1xf32>
    %4 = arith.divf %2, %3 : vector<36x1xf32>
    %5 = vector.broadcast %4 : vector<36x1xf32> to vector<36x32xf32>
    %6 = arith.subf %0, %5 : vector<36x32xf32>
    %7 = arith.mulf %6, %6 : vector<36x32xf32>
    %cst_2 = arith.constant dense<0.000000e+00> : vector<36xf32>
    %8 = vector.multi_reduction <add>, %7, %cst_2 [1] : vector<36x32xf32> to vector<36xf32>
    %9 = vector.shape_cast %8 : vector<36xf32> to vector<36x1xf32>
    %cst_3 = arith.constant 3.200000e+01 : f32
    %10 = vector.broadcast %cst_3 : f32 to vector<36x1xf32>
    %11 = arith.divf %9, %10 : vector<36x1xf32>
    %12 = vector.broadcast %4 : vector<36x1xf32> to vector<36x32xf32>
    %13 = arith.subf %0, %12 : vector<36x32xf32>
    %cst_4 = arith.constant 9.99999974E-6 : f32
    %14 = vector.broadcast %cst_4 : f32 to vector<36x1xf32>
    %15 = arith.addf %11, %14 : vector<36x1xf32>
    %16 = math.rsqrt %15 : vector<36x1xf32>
    %17 = vector.broadcast %16 : vector<36x1xf32> to vector<36x32xf32>
    %18 = arith.mulf %13, %17 : vector<36x32xf32>
    %c0_5 = arith.constant 0 : index
    %c0_6 = arith.constant 0 : index
    %19 = vector.load %arg3[%c0_5, %c0_6] : memref<1x32xf32, #tpu.memory_space<vmem>>, vector<1x32xf32>
    %20 = vector.broadcast %19 : vector<1x32xf32> to vector<36x32xf32>
    %21 = arith.mulf %18, %20 : vector<36x32xf32>
    %c0_7 = arith.constant 0 : index
    %c0_8 = arith.constant 0 : index
    %22 = vector.load %arg4[%c0_7, %c0_8] : memref<1x32xf32, #tpu.memory_space<vmem>>, vector<1x32xf32>
    %23 = vector.broadcast %22 : vector<1x32xf32> to vector<36x32xf32>
    %24 = arith.addf %21, %23 : vector<36x32xf32>
    %25 = arith.truncf %24 : vector<36x32xf32> to vector<36x32xbf16>
    %c0_9 = arith.constant 0 : index
    %c0_10 = arith.constant 0 : index
    %26 = vector.load %arg5[%c0_9, %c0_10] : memref<32x96xbf16, #tpu.memory_space<vmem>>, vector<32x96xbf16>
    %cst_11 = arith.constant dense<0.000000e+00> : vector<36x96xf32>
    %27 = tpu.matmul %25, %26, %cst_11 {dimension_numbers = #tpu.dot_dimension_numbers<[1], [0], [0], [1], [0, 0, 1, 1], [], []>} : vector<36x32xbf16>, vector<32x96xbf16>, vector<36x96xf32> -> vector<36x96xf32>
    %c0_12 = arith.constant 0 : index
    %c0_13 = arith.constant 0 : index
    %28 = vector.load %arg6[%c0_12, %c0_13] : memref<1x96xf32, #tpu.memory_space<vmem>>, vector<1x96xf32>
    %29 = vector.broadcast %28 : vector<1x96xf32> to vector<36x96xf32>
    %30 = arith.addf %27, %29 : vector<36x96xf32>
    %c0_14 = arith.constant 0 : index
    %c0_15 = arith.constant 0 : index
    %31 = vector.load %arg7[%c0_14, %c0_15] : memref<36x96xf32, #tpu.memory_space<vmem>>, vector<36x96xf32>
    tpu.vector_store %arg7[%c0_14, %c0_15], %30 {strides = array<i32>} : memref<36x96xf32, #tpu.memory_space<vmem>>, vector<36x96xf32>,
    return
  }
  func.func @transform_0(%arg0: i32, %arg1: i32) -> (i32, i32) {
    %c0_i32 = arith.constant 0 : i32
    %c0_i32_0 = arith.constant 0 : i32
    return %arg1, %c0_i32 : i32, i32
  }
  func.func @transform_1(%arg0: i32, %arg1: i32) -> (i32, i32) {
    %c0_i32 = arith.constant 0 : i32
    %c0_i32_0 = arith.constant 0 : i32
    %c0_i32_1 = arith.constant 0 : i32
    return %c0_i32, %c0_i32_0 : i32, i32
  }
  func.func @transform_2(%arg0: i32, %arg1: i32) -> (i32, i32) {
    %c0_i32 = arith.constant 0 : i32
    %c0_i32_0 = arith.constant 0 : i32
    %c0_i32_1 = arith.constant 0 : i32
    return %c0_i32, %c0_i32_0 : i32, i32
  }
  func.func @transform_3(%arg0: i32, %arg1: i32) -> (i32, i32) {
    %c0_i32 = arith.constant 0 : i32
    %c0_i32_0 = arith.constant 0 : i32
    return %c0_i32, %arg0 : i32, i32
  }
  func.func @transform_4(%arg0: i32, %arg1: i32) -> (i32, i32) {
    %c0_i32 = arith.constant 0 : i32
    %c0_i32_0 = arith.constant 0 : i32
    return %c0_i32, %arg0 : i32, i32
  }
  func.func @transform_5(%arg0: i32, %arg1: i32) -> (i32, i32) {
    %c0_i32 = arith.constant 0 : i32
    return %arg1, %arg0 : i32, i32
  }
}

module attributes {stable_mosaic.version = 11 : i64} {
  func.func @_matmul_kernel(%arg0: i32, %arg1: i32, %arg2: memref<32x32xf32, #tpu.memory_space<vmem>>, %arg3: memref<1x32xf32, #tpu.memory_space<vmem>>, %arg4: memref<1x32xf32, #tpu.memory_space<vmem>>, %arg5: memref<32x128xbf16, #tpu.memory_space<vmem>>, %arg6: memref<1x128xf32, #tpu.memory_space<vmem>>, %arg7: memref<32x128xf32, #tpu.memory_space<vmem>>) attributes {dimension_semantics = [#tpu.dimension_semantics<parallel>, #tpu.dimension_semantics<parallel>], iteration_bounds = array<i64: 1, 1>, scalar_prefetch = 0 : i64, scratch_operands = 0 : i64, tpu.core_type = #tpu.core_type<tc>, window_params = [{transform_indices = @transform_0, window_bounds = array<i64: 32, 32>}, {pipeline_mode = #tpu.pipeline_mode<synchronous>, transform_indices = @transform_1, window_bounds = array<i64: 1, 32>}, {pipeline_mode = #tpu.pipeline_mode<synchronous>, transform_indices = @transform_2, window_bounds = array<i64: 1, 32>}, {transform_indices = @transform_3, window_bounds = array<i64: 32, 128>}, {transform_indices = @transform_4, window_bounds = array<i64: 1, 128>}, {transform_indices = @transform_5, window_bounds = array<i64: 32, 128>}]} {
    %c0 = arith.constant 0 : index
    %c0_0 = arith.constant 0 : index
    %0 = vector.load %arg2[%c0, %c0_0] : memref<32x32xf32, #tpu.memory_space<vmem>>, vector<32x32xf32>
    %cst = arith.constant dense<0.000000e+00> : vector<32xf32>
    %1 = vector.multi_reduction <add>, %0, %cst [1] : vector<32x32xf32> to vector<32xf32>
    %2 = vector.shape_cast %1 : vector<32xf32> to vector<32x1xf32>
    %cst_1 = arith.constant 3.200000e+01 : f32
    %3 = vector.broadcast %cst_1 : f32 to vector<32x1xf32>
    %4 = arith.divf %2, %3 : vector<32x1xf32>
    %5 = vector.broadcast %4 : vector<32x1xf32> to vector<32x32xf32>
    %6 = arith.subf %0, %5 : vector<32x32xf32>
    %7 = arith.mulf %6, %6 : vector<32x32xf32>
    %cst_2 = arith.constant dense<0.000000e+00> : vector<32xf32>
    %8 = vector.multi_reduction <add>, %7, %cst_2 [1] : vector<32x32xf32> to vector<32xf32>
    %9 = vector.shape_cast %8 : vector<32xf32> to vector<32x1xf32>
    %cst_3 = arith.constant 3.200000e+01 : f32
    %10 = vector.broadcast %cst_3 : f32 to vector<32x1xf32>
    %11 = arith.divf %9, %10 : vector<32x1xf32>
    %12 = vector.broadcast %4 : vector<32x1xf32> to vector<32x32xf32>
    %13 = arith.subf %0, %12 : vector<32x32xf32>
    %cst_4 = arith.constant 9.99999974E-6 : f32
    %14 = vector.broadcast %cst_4 : f32 to vector<32x1xf32>
    %15 = arith.addf %11, %14 : vector<32x1xf32>
    %16 = math.rsqrt %15 : vector<32x1xf32>
    %17 = vector.broadcast %16 : vector<32x1xf32> to vector<32x32xf32>
    %18 = arith.mulf %13, %17 : vector<32x32xf32>
    %c0_5 = arith.constant 0 : index
    %c0_6 = arith.constant 0 : index
    %19 = vector.load %arg3[%c0_5, %c0_6] : memref<1x32xf32, #tpu.memory_space<vmem>>, vector<1x32xf32>
    %20 = vector.broadcast %19 : vector<1x32xf32> to vector<32x32xf32>
    %21 = arith.mulf %18, %20 : vector<32x32xf32>
    %c0_7 = arith.constant 0 : index
    %c0_8 = arith.constant 0 : index
    %22 = vector.load %arg4[%c0_7, %c0_8] : memref<1x32xf32, #tpu.memory_space<vmem>>, vector<1x32xf32>
    %23 = vector.broadcast %22 : vector<1x32xf32> to vector<32x32xf32>
    %24 = arith.addf %21, %23 : vector<32x32xf32>
    %25 = arith.truncf %24 : vector<32x32xf32> to vector<32x32xbf16>
    %c0_9 = arith.constant 0 : index
    %c0_10 = arith.constant 0 : index
    %26 = vector.load %arg5[%c0_9, %c0_10] : memref<32x128xbf16, #tpu.memory_space<vmem>>, vector<32x128xbf16>
    %cst_11 = arith.constant dense<0.000000e+00> : vector<32x128xf32>
    %27 = tpu.matmul %25, %26, %cst_11 {dimension_numbers = #tpu.dot_dimension_numbers<[1], [0], [0], [1], [0, 0, 1, 1], [], []>} : vector<32x32xbf16>, vector<32x128xbf16>, vector<32x128xf32> -> vector<32x128xf32>
    %c0_12 = arith.constant 0 : index
    %c0_13 = arith.constant 0 : index
    %28 = vector.load %arg6[%c0_12, %c0_13] : memref<1x128xf32, #tpu.memory_space<vmem>>, vector<1x128xf32>
    %29 = vector.broadcast %28 : vector<1x128xf32> to vector<32x128xf32>
    %30 = arith.addf %27, %29 : vector<32x128xf32>
    %cst_14 = arith.constant -1.702000e+00 : f32
    %31 = vector.broadcast %cst_14 : f32 to vector<32x128xf32>
    %32 = arith.mulf %31, %30 : vector<32x128xf32>
    %33 = math.exp %32 : vector<32x128xf32>
    %cst_15 = arith.constant 1.000000e+00 : f32
    %34 = vector.broadcast %cst_15 : f32 to vector<32x128xf32>
    %35 = arith.addf %34, %33 : vector<32x128xf32>
    %cst_16 = arith.constant 1.000000e+00 : f32
    %36 = vector.broadcast %cst_16 : f32 to vector<32x128xf32>
    %37 = arith.divf %36, %35 : vector<32x128xf32>
    %38 = arith.mulf %30, %37 : vector<32x128xf32>
    %c0_17 = arith.constant 0 : index
    %c0_18 = arith.constant 0 : index
    %39 = vector.load %arg7[%c0_17, %c0_18] : memref<32x128xf32, #tpu.memory_space<vmem>>, vector<32x128xf32>
    tpu.vector_store %arg7[%c0_17, %c0_18], %38 {strides = array<i32>} : memref<32x128xf32, #tpu.memory_space<vmem>>, vector<32x128xf32>,
    return
  }
  func.func @transform_0(%arg0: i32, %arg1: i32) -> (i32, i32) {
    %c0_i32 = arith.constant 0 : i32
    %c0_i32_0 = arith.constant 0 : i32
    return %arg1, %c0_i32 : i32, i32
  }
  func.func @transform_1(%arg0: i32, %arg1: i32) -> (i32, i32) {
    %c0_i32 = arith.constant 0 : i32
    %c0_i32_0 = arith.constant 0 : i32
    %c0_i32_1 = arith.constant 0 : i32
    return %c0_i32, %c0_i32_0 : i32, i32
  }
  func.func @transform_2(%arg0: i32, %arg1: i32) -> (i32, i32) {
    %c0_i32 = arith.constant 0 : i32
    %c0_i32_0 = arith.constant 0 : i32
    %c0_i32_1 = arith.constant 0 : i32
    return %c0_i32, %c0_i32_0 : i32, i32
  }
  func.func @transform_3(%arg0: i32, %arg1: i32) -> (i32, i32) {
    %c0_i32 = arith.constant 0 : i32
    %c0_i32_0 = arith.constant 0 : i32
    return %c0_i32, %arg0 : i32, i32
  }
  func.func @transform_4(%arg0: i32, %arg1: i32) -> (i32, i32) {
    %c0_i32 = arith.constant 0 : i32
    %c0_i32_0 = arith.constant 0 : i32
    return %c0_i32, %arg0 : i32, i32
  }
  func.func @transform_5(%arg0: i32, %arg1: i32) -> (i32, i32) {
    %c0_i32 = arith.constant 0 : i32
    return %arg1, %arg0 : i32, i32
  }
}

module attributes {stable_mosaic.version = 11 : i64} {
  func.func @_matmul_kernel(%arg0: i32, %arg1: i32, %arg2: memref<32x128xf32, #tpu.memory_space<vmem>>, %arg3: memref<128x32xbf16, #tpu.memory_space<vmem>>, %arg4: memref<1x32xf32, #tpu.memory_space<vmem>>, %arg5: memref<32x32xf32, #tpu.memory_space<vmem>>, %arg6: memref<32x32xf32, #tpu.memory_space<vmem>>) attributes {dimension_semantics = [#tpu.dimension_semantics<parallel>, #tpu.dimension_semantics<parallel>], iteration_bounds = array<i64: 1, 1>, scalar_prefetch = 0 : i64, scratch_operands = 0 : i64, tpu.core_type = #tpu.core_type<tc>, window_params = [{transform_indices = @transform_0, window_bounds = array<i64: 32, 128>}, {transform_indices = @transform_1, window_bounds = array<i64: 128, 32>}, {transform_indices = @transform_2, window_bounds = array<i64: 1, 32>}, {transform_indices = @transform_3, window_bounds = array<i64: 32, 32>}, {transform_indices = @transform_4, window_bounds = array<i64: 32, 32>}]} {
    %c0 = arith.constant 0 : index
    %c0_0 = arith.constant 0 : index
    %0 = vector.load %arg2[%c0, %c0_0] : memref<32x128xf32, #tpu.memory_space<vmem>>, vector<32x128xf32>
    %1 = arith.truncf %0 : vector<32x128xf32> to vector<32x128xbf16>
    %c0_1 = arith.constant 0 : index
    %c0_2 = arith.constant 0 : index
    %2 = vector.load %arg3[%c0_1, %c0_2] : memref<128x32xbf16, #tpu.memory_space<vmem>>, vector<128x32xbf16>
    %cst = arith.constant dense<0.000000e+00> : vector<32x32xf32>
    %3 = tpu.matmul %1, %2, %cst {dimension_numbers = #tpu.dot_dimension_numbers<[1], [0], [0], [1], [0, 0, 1, 1], [], []>} : vector<32x128xbf16>, vector<128x32xbf16>, vector<32x32xf32> -> vector<32x32xf32>
    %c0_3 = arith.constant 0 : index
    %c0_4 = arith.constant 0 : index
    %4 = vector.load %arg4[%c0_3, %c0_4] : memref<1x32xf32, #tpu.memory_space<vmem>>, vector<1x32xf32>
    %5 = vector.broadcast %4 : vector<1x32xf32> to vector<32x32xf32>
    %6 = arith.addf %3, %5 : vector<32x32xf32>
    %c0_5 = arith.constant 0 : index
    %c0_6 = arith.constant 0 : index
    %7 = vector.load %arg5[%c0_5, %c0_6] : memref<32x32xf32, #tpu.memory_space<vmem>>, vector<32x32xf32>
    %8 = arith.addf %6, %7 : vector<32x32xf32>
    %c0_7 = arith.constant 0 : index
    %c0_8 = arith.constant 0 : index
    %9 = vector.load %arg6[%c0_7, %c0_8] : memref<32x32xf32, #tpu.memory_space<vmem>>, vector<32x32xf32>
    tpu.vector_store %arg6[%c0_7, %c0_8], %8 {strides = array<i32>} : memref<32x32xf32, #tpu.memory_space<vmem>>, vector<32x32xf32>,
    return
  }
  func.func @transform_0(%arg0: i32, %arg1: i32) -> (i32, i32) {
    %c0_i32 = arith.constant 0 : i32
    %c0_i32_0 = arith.constant 0 : i32
    return %arg1, %c0_i32 : i32, i32
  }
  func.func @transform_1(%arg0: i32, %arg1: i32) -> (i32, i32) {
    %c0_i32 = arith.constant 0 : i32
    %c0_i32_0 = arith.constant 0 : i32
    return %c0_i32, %arg0 : i32, i32
  }
  func.func @transform_2(%arg0: i32, %arg1: i32) -> (i32, i32) {
    %c0_i32 = arith.constant 0 : i32
    %c0_i32_0 = arith.constant 0 : i32
    return %c0_i32, %arg0 : i32, i32
  }
  func.func @transform_3(%arg0: i32, %arg1: i32) -> (i32, i32) {
    %c0_i32 = arith.constant 0 : i32
    return %arg1, %arg0 : i32, i32
  }
  func.func @transform_4(%arg0: i32, %arg1: i32) -> (i32, i32) {
    %c0_i32 = arith.constant 0 : i32
    return %arg1, %arg0 : i32, i32
  }
}

</mosaic_0001>

<llo_original>
// kernel: _lambda_.19
$region0: #{_lambda_.19}
  #allocation0 [shape = 'u32[]', space=smem, size = 0x4, offset = 0x4, fixed_abs, tag = 'smem constant byte address 0x4 - core index']
  #allocation1 [shape = 'u32[144,128]{1,0:T(1,128)}', space=vmem, size = 0x12000, scoped, tag = 'internal scratch']
  %s0 = inlined_call_operand.vmem [shape: f32[4,32], index: 0, kind: input, shape index: {}]
  %s1 = inlined_call_operand.vmem [shape: f32[1,32], index: 1, kind: input, shape index: {}]
  %s2 = inlined_call_operand.vmem [shape: f32[1,32], index: 2, kind: input, shape index: {}]
  %s3 = inlined_call_operand.vmem [shape: bf16[32,96], index: 3, kind: input, shape index: {}]
  %s4 = inlined_call_operand.vmem [shape: f32[1,96], index: 4, kind: input, shape index: {}]
  %s5 = inlined_call_operand.vmem [shape: f32[4,96], index: 5, kind: output, shape index: {}]
  %s6 = sld [smem:[#allocation0]]
  $region30: #{_lambda_.19} parent=0
    _
  %s8 = ssub.s32 1, %s6
  %s9 = scalar_select 0, %s8, %s6
  // Predicated region
  $region2: #{_lambda_.19} parent=0 // pred_check
    _
  $region3: #{_lambda_.19} parent=0 // pred_check_branch
    %11 = sbr.rel (0) target = $region5
  $region4: #{_lambda_.19} parent=0 // pred_region
    _
  $region5: #{_lambda_.19} parent=0 // pred_fallthru
    _
  // Predicated region
  $region6: #{_lambda_.19} parent=0 // pred_check
    _
  $region7: #{_lambda_.19} parent=0 // pred_check_branch
    %13 = sbr.rel (0) target = $region9
  $region8: #{_lambda_.19} parent=0 // pred_region
    _
  $region9: #{_lambda_.19} parent=0 // pred_fallthru
    _
  // Predicated region
  $region10: #{_lambda_.19} parent=0 // pred_check
    _
  $region11: #{_lambda_.19} parent=0 // pred_check_branch
    %15 = sbr.rel (0) target = $region13
  $region12: #{_lambda_.19} parent=0 // pred_region
    _
  $region13: #{_lambda_.19} parent=0 // pred_fallthru
    _
  // Predicated region
  $region14: #{_lambda_.19} parent=0 // pred_check
    _
  $region15: #{_lambda_.19} parent=0 // pred_check_branch
    %17 = sbr.rel (0) target = $region17
  $region16: #{_lambda_.19} parent=0 // pred_region
    _
  $region17: #{_lambda_.19} parent=0 // pred_fallthru
    _
  // Predicated region
  $region18: #{_lambda_.19} parent=0 // pred_check
    _
  $region19: #{_lambda_.19} parent=0 // pred_check_branch
    %19 = sbr.rel (0) target = $region21
  $region20: #{_lambda_.19} parent=0 // pred_region
    _
  $region21: #{_lambda_.19} parent=0 // pred_fallthru
    _
  %v21 = vld [vmem:[%s0] sm:$0xf]
  %vm22 = vcmask 257024
  %v23 = vsel %vm22, %v21, 0.0
  %24 = vadd.xlane.f32.xlu0 %v23
  %v25 = vpop.xlane.xlu0 %24
  %v26 = vrcp.pop 32.0
  %v27 = vmul.f32 %v25, %v26
  %v28 = vsub.f32 %v21, %v27
  %v29 = vmul.f32 %v28, %v28
  %v30 = vsel %vm22, %v29, 0.0
  %31 = vadd.xlane.f32.xlu0 %v30
  %v32 = vpop.xlane.xlu0 %31
  %v33 = vmul.f32 %v32, %v26
  %v34 = vadd.f32 %v33, 1e-05
  %v35 = vrsqrt.pop %v34
  %v36 = vmul.f32 %v28, %v35
  %v37 = vld [vmem:[%s1] sm:$0x1]
  %v39 = vlaneseq
  %v40 = vshrl.u32 %v39, 7
  %v41 = vsub.s32 0, %v40
  %v42 = vrot.slane %v37, %v41
  %v44 = vmul.f32 %v36, %v42
  %v45 = vld [vmem:[%s2] sm:$0x1]
  %v47 = vlaneseq
  %v48 = vshrl.u32 %v47, 7
  %v49 = vsub.s32 0, %v48
  %v50 = vrot.slane %v45, %v49
  %v52 = vadd.f32 %v44, %v50
  %v53 = vpack.c.bf16 %v52, %v52
  %v54 = vld [vmem:[%s3] sm:$0xf]
  %v55 = vld [vmem:[%s3 + $0x4] sm:$0xf]
  %v56 = vld [vmem:[%s3 + $0x8] sm:$0xf]
  %v57 = vld [vmem:[%s3 + $0xc] sm:$0xf]
  %v58 = vld [vmem:[%s4] sm:$0x1]
  %v60 = vlaneseq
  %v61 = vshrl.u32 %v60, 7
  %v62 = vsub.s32 0, %v61
  %v63 = vrot.slane %v58, %v62
  %v69 = vunpack.c.l.b16 %v54
  %v70 = vunpack.c.l.b16 %v55
  %v71 = vunpack.c.l.b16 %v56
  %v72 = vunpack.c.l.b16 %v57
  %v73 = vpack.c.b16 %v70, %v69
  %v74 = vpack.c.b16 %v72, %v71
  %vm77 = vcmask 261120
  %v79 = vsel %vm77, %v53, 0
  %81 = vmatprep.subr.bf16.mxu0 0
  %82 = vmatpush1.bf16.msra.mxu0 %v73
  %83 = vmatprep.subr.bf16.mxu0 0
  %84 = vmatpush1.bf16.msra.mxu0 %v74
  %85 = vmatprep.subr.bf16.mxu0 0
  %86 = vmatpush1.bf16.msra.mxu0 0
  %87 = vmatprep.subr.bf16.mxu0 0
  %88 = vmatpush1.bf16.msra.mxu0 0
  %89 = vmatprep.subr.bf16.mxu0 0
  %90 = vmatpush1.bf16.msra.mxu0 0
  %91 = vmatprep.subr.bf16.mxu0 0
  %92 = vmatpush1.bf16.msra.mxu0 0
  %93 = vmatprep.subr.bf16.mxu0 0
  %94 = vmatpush1.bf16.msra.mxu0 0
  %95 = vmatprep.subr.bf16.mxu0 0
  %96 = vmatpush1.bf16.msra.mxu0 0
  %97 = vmatprep.subr.bf16.mxu0 0
  %98 = vmatpush1.bf16.msra.mxu0 0
  %99 = vmatprep.subr.bf16.mxu0 0
  %100 = vmatpush1.bf16.msra.mxu0 0
  %101 = vmatprep.subr.bf16.mxu0 0
  %102 = vmatpush1.bf16.msra.mxu0 0
  %103 = vmatprep.subr.bf16.mxu0 0
  %104 = vmatpush1.bf16.msra.mxu0 0
  %105 = vmatprep.subr.bf16.mxu0 0
  %106 = vmatpush1.bf16.msra.mxu0 0
  %107 = vmatprep.subr.bf16.mxu0 0
  %108 = vmatpush1.bf16.msra.mxu0 0
  %109 = vmatprep.subr.bf16.mxu0 0
  %110 = vmatpush1.bf16.msra.mxu0 0
  %111 = vmatprep.subr.bf16.mxu0 0
  %112 = vmatpush1.bf16.msra.mxu0 0
  %113 = vmatprep.mubr.bf16.mxu0 0
  %114 = vmatmul.mubr.bf16.gmra.mrb[0].mxu0 %v79
  %v115 = vpop.f32.mrb[0].mxu0
  %v116 = vadd.f32 %v63, %v115
  %v117 = vpop.f32.mrb[0].mxu0
  %v118 = vpop.f32.mrb[0].mxu0
  %v119 = vpop.f32.mrb[0].mxu0
  %120 = vdwg.mxu0
  %vm121 = vcmask 781312
  %122 = vst.msk [vmem:[%s5] sm:$0xf] %vm121, %v116
  // Predicated region
  $region22: #{_lambda_.19} parent=0 // pred_check
    _
  $region23: #{_lambda_.19} parent=0 // pred_check_branch
    %124 = sbr.rel (0) target = $region25
  $region24: #{_lambda_.19} parent=0 // pred_region
    _
  $region25: #{_lambda_.19} parent=0 // pred_fallthru
    _
  // Predicated region
  $region26: #{_lambda_.19} parent=0 // pred_check
    _
  $region27: #{_lambda_.19} parent=0 // pred_check_branch
    %126 = sbr.rel (0) target = $region29
  $region28: #{_lambda_.19} parent=0 // pred_region
    _
  $region29: #{_lambda_.19} parent=0 // pred_fallthru
    _

// kernel: _lambda_.18
$region0: #{_lambda_.18}
  #allocation0 [shape = 'u32[]', space=smem, size = 0x4, offset = 0x4, fixed_abs, tag = 'smem constant byte address 0x4 - core index']
  #allocation1 [shape = 'u32[144,128]{1,0:T(1,128)}', space=vmem, size = 0x12000, scoped, tag = 'internal scratch']
  %s0 = inlined_call_operand.vmem [shape: f32[4,32], index: 0, kind: input, shape index: {}]
  %s1 = inlined_call_operand.vmem [shape: bf16[32,32], index: 1, kind: input, shape index: {}]
  %s2 = inlined_call_operand.vmem [shape: f32[1,32], index: 2, kind: input, shape index: {}]
  %s3 = inlined_call_operand.vmem [shape: f32[4,32], index: 3, kind: output, shape index: {}]
  %s4 = sld [smem:[#allocation0]]
  $region22: #{_lambda_.18} parent=0
    _
  %s6 = ssub.s32 1, %s4
  %s7 = scalar_select 0, %s6, %s4
  // Predicated region
  $region2: #{_lambda_.18} parent=0 // pred_check
    _
  $region3: #{_lambda_.18} parent=0 // pred_check_branch
    %9 = sbr.rel (0) target = $region5
  $region4: #{_lambda_.18} parent=0 // pred_region
    _
  $region5: #{_lambda_.18} parent=0 // pred_fallthru
    _
  // Predicated region
  $region6: #{_lambda_.18} parent=0 // pred_check
    _
  $region7: #{_lambda_.18} parent=0 // pred_check_branch
    %11 = sbr.rel (0) target = $region9
  $region8: #{_lambda_.18} parent=0 // pred_region
    _
  $region9: #{_lambda_.18} parent=0 // pred_fallthru
    _
  // Predicated region
  $region10: #{_lambda_.18} parent=0 // pred_check
    _
  $region11: #{_lambda_.18} parent=0 // pred_check_branch
    %13 = sbr.rel (0) target = $region13
  $region12: #{_lambda_.18} parent=0 // pred_region
    _
  $region13: #{_lambda_.18} parent=0 // pred_fallthru
    _
  %v15 = vld [vmem:[%s0] sm:$0xf]
  %v16 = vpack.c.bf16 %v15, %v15
  %v17 = vld [vmem:[%s1] sm:$0xf]
  %v18 = vld [vmem:[%s1 + $0x4] sm:$0xf]
  %v19 = vld [vmem:[%s1 + $0x8] sm:$0xf]
  %v20 = vld [vmem:[%s1 + $0xc] sm:$0xf]
  %v21 = vld [vmem:[%s2] sm:$0x1]
  %v23 = vlaneseq
  %v24 = vshrl.u32 %v23, 7
  %v25 = vsub.s32 0, %v24
  %v26 = vrot.slane %v21, %v25
  %v32 = vunpack.c.l.b16 %v17
  %v33 = vunpack.c.l.b16 %v18
  %v34 = vunpack.c.l.b16 %v19
  %v35 = vunpack.c.l.b16 %v20
  %v36 = vpack.c.b16 %v33, %v32
  %v37 = vpack.c.b16 %v35, %v34
  %vm40 = vcmask 261120
  %v42 = vsel %vm40, %v16, 0
  %44 = vmatprep.subr.bf16.mxu0 0
  %45 = vmatpush1.bf16.msra.mxu0 %v36
  %46 = vmatprep.subr.bf16.mxu0 0
  %47 = vmatpush1.bf16.msra.mxu0 %v37
  %48 = vmatprep.subr.bf16.mxu0 0
  %49 = vmatpush1.bf16.msra.mxu0 0
  %50 = vmatprep.subr.bf16.mxu0 0
  %51 = vmatpush1.bf16.msra.mxu0 0
  %52 = vmatprep.subr.bf16.mxu0 0
  %53 = vmatpush1.bf16.msra.mxu0 0
  %54 = vmatprep.subr.bf16.mxu0 0
  %55 = vmatpush1.bf16.msra.mxu0 0
  %56 = vmatprep.subr.bf16.mxu0 0
  %57 = vmatpush1.bf16.msra.mxu0 0
  %58 = vmatprep.subr.bf16.mxu0 0
  %59 = vmatpush1.bf16.msra.mxu0 0
  %60 = vmatprep.subr.bf16.mxu0 0
  %61 = vmatpush1.bf16.msra.mxu0 0
  %62 = vmatprep.subr.bf16.mxu0 0
  %63 = vmatpush1.bf16.msra.mxu0 0
  %64 = vmatprep.subr.bf16.mxu0 0
  %65 = vmatpush1.bf16.msra.mxu0 0
  %66 = vmatprep.subr.bf16.mxu0 0
  %67 = vmatpush1.bf16.msra.mxu0 0
  %68 = vmatprep.subr.bf16.mxu0 0
  %69 = vmatpush1.bf16.msra.mxu0 0
  %70 = vmatprep.subr.bf16.mxu0 0
  %71 = vmatpush1.bf16.msra.mxu0 0
  %72 = vmatprep.subr.bf16.mxu0 0
  %73 = vmatpush1.bf16.msra.mxu0 0
  %74 = vmatprep.subr.bf16.mxu0 0
  %75 = vmatpush1.bf16.msra.mxu0 0
  %76 = vmatprep.mubr.bf16.mxu0 0
  %77 = vmatmul.mubr.bf16.gmra.mrb[0].mxu0 %v42
  %v78 = vpop.f32.mrb[0].mxu0
  %v79 = vadd.f32 %v26, %v78
  %v80 = vpop.f32.mrb[0].mxu0
  %v81 = vpop.f32.mrb[0].mxu0
  %v82 = vpop.f32.mrb[0].mxu0
  %83 = vdwg.mxu0
  %vm84 = vcmask 257024
  %85 = vst.msk [vmem:[%s3] sm:$0xf] %vm84, %v79
  // Predicated region
  $region14: #{_lambda_.18} parent=0 // pred_check
    _
  $region15: #{_lambda_.18} parent=0 // pred_check_branch
    %87 = sbr.rel (0) target = $region17
  $region16: #{_lambda_.18} parent=0 // pred_region
    _
  $region17: #{_lambda_.18} parent=0 // pred_fallthru
    _
  // Predicated region
  $region18: #{_lambda_.18} parent=0 // pred_check
    _
  $region19: #{_lambda_.18} parent=0 // pred_check_branch
    %89 = sbr.rel (0) target = $region21
  $region20: #{_lambda_.18} parent=0 // pred_region
    _
  $region21: #{_lambda_.18} parent=0 // pred_fallthru
    _

// kernel: _lambda_.20
$region0: #{_lambda_.20}
  #allocation0 [shape = 'u32[]', space=smem, size = 0x4, offset = 0x4, fixed_abs, tag = 'smem constant byte address 0x4 - core index']
  #allocation1 [shape = 'u32[144,128]{1,0:T(1,128)}', space=vmem, size = 0x12000, scoped, tag = 'internal scratch']
  %s0 = inlined_call_operand.vmem [shape: f32[2,2,96], index: 0, kind: input, shape index: {}]
  %s1 = inlined_call_operand.vmem [shape: f32[2,2,32], index: 1, kind: output, shape index: {}]
  %s2 = sld [smem:[#allocation0]]
  $region14: #{_lambda_.20} parent=0
    _
  %s4 = ssub.s32 1, %s2
  %s5 = scalar_select 0, %s4, %s2
  // Predicated region
  $region2: #{_lambda_.20} parent=0 // pred_check
    _
  $region3: #{_lambda_.20} parent=0 // pred_check_branch
    %7 = sbr.rel (0) target = $region5
  $region4: #{_lambda_.20} parent=0 // pred_region
    _
  $region5: #{_lambda_.20} parent=0 // pred_fallthru
    _
  %v9 = vld [vmem:[%s0] sm:$0x3]
  %v10 = vld [vmem:[%s0 + $0x2] sm:$0x3]
  %v11 = vpack.c.bf16 %v9, %v9
  %v12 = vpack.c.bf16 %v10, %v10
  %14 = vrot.lane.b32.xlu0 %v11, 96
  %v15 = vpop.permute.xlu0 %14
  %vm16 = vcmask 64512
  %v18 = vsel %vm16, %v11, 0
  %v21 = vsel %vm16, %v15, 0
  %23 = vmatprep.subr.bf16.mxu0 0
  %24 = vmatpush1.bf16.xpose.msra.mxu0 %v21
  %25 = vmatprep.subr.bf16.mxu0 0
  %26 = vmatpush1.bf16.xpose.msra.mxu0 0
  %27 = vmatprep.subr.bf16.mxu0 0
  %28 = vmatpush1.bf16.xpose.msra.mxu0 0
  %29 = vmatprep.subr.bf16.mxu0 0
  %30 = vmatpush1.bf16.xpose.msra.mxu0 0
  %31 = vmatprep.subr.bf16.mxu0 0
  %32 = vmatpush1.bf16.xpose.msra.mxu0 0
  %33 = vmatprep.subr.bf16.mxu0 0
  %34 = vmatpush1.bf16.xpose.msra.mxu0 0
  %35 = vmatprep.subr.bf16.mxu0 0
  %36 = vmatpush1.bf16.xpose.msra.mxu0 0
  %37 = vmatprep.subr.bf16.mxu0 0
  %38 = vmatpush1.bf16.xpose.msra.mxu0 0
  %39 = vmatprep.subr.bf16.mxu0 0
  %40 = vmatpush1.bf16.xpose.msra.mxu0 0
  %41 = vmatprep.subr.bf16.mxu0 0
  %42 = vmatpush1.bf16.xpose.msra.mxu0 0
  %43 = vmatprep.subr.bf16.mxu0 0
  %44 = vmatpush1.bf16.xpose.msra.mxu0 0
  %45 = vmatprep.subr.bf16.mxu0 0
  %46 = vmatpush1.bf16.xpose.msra.mxu0 0
  %47 = vmatprep.subr.bf16.mxu0 0
  %48 = vmatpush1.bf16.xpose.msra.mxu0 0
  %49 = vmatprep.subr.bf16.mxu0 0
  %50 = vmatpush1.bf16.xpose.msra.mxu0 0
  %51 = vmatprep.subr.bf16.mxu0 0
  %52 = vmatpush1.bf16.xpose.msra.mxu0 0
  %53 = vmatprep.subr.bf16.mxu0 0
  %54 = vmatpush1.bf16.xpose.msra.mxu0 0
  %55 = vmatprep.mubr.bf16.mxu0 0
  %56 = vmatmul.mubr.bf16.gmra.mrb[0].mxu0 %v18
  %v57 = vpop.f32.mrb[0].mxu0
  %v58 = vadd.f32 0.0, %v57
  %v59 = vpop.f32.mrb[0].mxu0
  %v60 = vpop.f32.mrb[0].mxu0
  %v61 = vpop.f32.mrb[0].mxu0
  %62 = vdwg.mxu0
  %64 = vrot.lane.b32.xlu0 %v12, 96
  %v65 = vpop.permute.xlu0 %64
  %v67 = vsel %vm16, %v12, 0
  %v70 = vsel %vm16, %v65, 0
  %72 = vmatprep.subr.bf16.mxu0 0
  %73 = vmatpush1.bf16.xpose.msra.mxu0 %v70
  %74 = vmatprep.subr.bf16.mxu0 0
  %75 = vmatpush1.bf16.xpose.msra.mxu0 0
  %76 = vmatprep.subr.bf16.mxu0 0
  %77 = vmatpush1.bf16.xpose.msra.mxu0 0
  %78 = vmatprep.subr.bf16.mxu0 0
  %79 = vmatpush1.bf16.xpose.msra.mxu0 0
  %80 = vmatprep.subr.bf16.mxu0 0
  %81 = vmatpush1.bf16.xpose.msra.mxu0 0
  %82 = vmatprep.subr.bf16.mxu0 0
  %83 = vmatpush1.bf16.xpose.msra.mxu0 0
  %84 = vmatprep.subr.bf16.mxu0 0
  %85 = vmatpush1.bf16.xpose.msra.mxu0 0
  %86 = vmatprep.subr.bf16.mxu0 0
  %87 = vmatpush1.bf16.xpose.msra.mxu0 0
  %88 = vmatprep.subr.bf16.mxu0 0
  %89 = vmatpush1.bf16.xpose.msra.mxu0 0
  %90 = vmatprep.subr.bf16.mxu0 0
  %91 = vmatpush1.bf16.xpose.msra.mxu0 0
  %92 = vmatprep.subr.bf16.mxu0 0
  %93 = vmatpush1.bf16.xpose.msra.mxu0 0
  %94 = vmatprep.subr.bf16.mxu0 0
  %95 = vmatpush1.bf16.xpose.msra.mxu0 0
  %96 = vmatprep.subr.bf16.mxu0 0
  %97 = vmatpush1.bf16.xpose.msra.mxu0 0
  %98 = vmatprep.subr.bf16.mxu0 0
  %99 = vmatpush1.bf16.xpose.msra.mxu0 0
  %100 = vmatprep.subr.bf16.mxu0 0
  %101 = vmatpush1.bf16.xpose.msra.mxu0 0
  %102 = vmatprep.subr.bf16.mxu0 0
  %103 = vmatpush1.bf16.xpose.msra.mxu0 0
  %104 = vmatprep.mubr.bf16.mxu0 0
  %105 = vmatmul.mubr.bf16.gmra.mrb[0].mxu0 %v67
  %v106 = vpop.f32.mrb[0].mxu0
  %v107 = vadd.f32 0.0, %v106
  %v108 = vpop.f32.mrb[0].mxu0
  %v109 = vpop.f32.mrb[0].mxu0
  %v110 = vpop.f32.mrb[0].mxu0
  %111 = vdwg.mxu0
  %v112 = vmul.f32 %v58, 0.35355338
  %v113 = vmul.f32 %v107, 0.35355338
  %vm114 = vcmask 9216
  %v115 = vsel %vm114, %v112, -inf
  %116 = vmax.xlane.f32.xlu0 %v115
  %v117 = vpop.xlane.xlu0 %116
  %v118 = vsel %vm114, %v113, -inf
  %119 = vmax.xlane.f32.xlu0 %v118
  %v120 = vpop.xlane.xlu0 %119
  %v121 = vsub.f32 %v112, %v117
  %v122 = vsub.f32 %v113, %v120
  %v123 = vmul.f32 %v121, 1.442695
  %v124 = vpow.pop %v123
  %v125 = vmul.f32 %v122, 1.442695
  %v126 = vpow.pop %v125
  %v127 = vsel %vm114, %v124, 0.0
  %128 = vadd.xlane.f32.xlu0 %v127
  %v129 = vpop.xlane.xlu0 %128
  %v130 = vsel %vm114, %v126, 0.0
  %131 = vadd.xlane.f32.xlu0 %v130
  %v132 = vpop.xlane.xlu0 %131
  %v133 = vrcp.pop %v129
  %v134 = vrcp.pop %v132
  %v135 = vmul.f32 %v124, %v133
  %v136 = vmul.f32 %v126, %v134
  %v137 = vpack.c.bf16 %v135, %v135
  %v138 = vpack.c.bf16 %v136, %v136
  %139 = vrot.lane.b32.xlu0 %v11, 64
  %v140 = vpop.permute.xlu0 %139
  %vm141 = vcmask 15360
  %v143 = vsel %vm141, %v137, 0
  %vm145 = vcmask 1040384
  %v147 = vsel %vm145, %v140, 0
  %149 = vmatprep.subr.bf16.mxu0 0
  %150 = vmatpush1.bf16.msra.mxu0 %v147
  %151 = vmatprep.subr.bf16.mxu0 0
  %152 = vmatpush1.bf16.msra.mxu0 0
  %153 = vmatprep.subr.bf16.mxu0 0
  %154 = vmatpush1.bf16.msra.mxu0 0
  %155 = vmatprep.subr.bf16.mxu0 0
  %156 = vmatpush1.bf16.msra.mxu0 0
  %157 = vmatprep.subr.bf16.mxu0 0
  %158 = vmatpush1.bf16.msra.mxu0 0
  %159 = vmatprep.subr.bf16.mxu0 0
  %160 = vmatpush1.bf16.msra.mxu0 0
  %161 = vmatprep.subr.bf16.mxu0 0
  %162 = vmatpush1.bf16.msra.mxu0 0
  %163 = vmatprep.subr.bf16.mxu0 0
  %164 = vmatpush1.bf16.msra.mxu0 0
  %165 = vmatprep.subr.bf16.mxu0 0
  %166 = vmatpush1.bf16.msra.mxu0 0
  %167 = vmatprep.subr.bf16.mxu0 0
  %168 = vmatpush1.bf16.msra.mxu0 0
  %169 = vmatprep.subr.bf16.mxu0 0
  %170 = vmatpush1.bf16.msra.mxu0 0
  %171 = vmatprep.subr.bf16.mxu0 0
  %172 = vmatpush1.bf16.msra.mxu0 0
  %173 = vmatprep.subr.bf16.mxu0 0
  %174 = vmatpush1.bf16.msra.mxu0 0
  %175 = vmatprep.subr.bf16.mxu0 0
  %176 = vmatpush1.bf16.msra.mxu0 0
  %177 = vmatprep.subr.bf16.mxu0 0
  %178 = vmatpush1.bf16.msra.mxu0 0
  %179 = vmatprep.subr.bf16.mxu0 0
  %180 = vmatpush1.bf16.msra.mxu0 0
  %181 = vmatprep.mubr.bf16.mxu0 0
  %182 = vmatmul.mubr.bf16.gmra.mrb[0].mxu0 %v143
  %v183 = vpop.f32.mrb[0].mxu0
  %v184 = vadd.f32 0.0, %v183
  %v185 = vpop.f32.mrb[0].mxu0
  %v186 = vpop.f32.mrb[0].mxu0
  %v187 = vpop.f32.mrb[0].mxu0
  %188 = vdwg.mxu0
  %189 = vrot.lane.b32.xlu0 %v12, 64
  %v190 = vpop.permute.xlu0 %189
  %v192 = vsel %vm141, %v138, 0
  %v195 = vsel %vm145, %v190, 0
  %197 = vmatprep.subr.bf16.mxu0 0
  %198 = vmatpush1.bf16.msra.mxu0 %v195
  %199 = vmatprep.subr.bf16.mxu0 0
  %200 = vmatpush1.bf16.msra.mxu0 0
  %201 = vmatprep.subr.bf16.mxu0 0
  %202 = vmatpush1.bf16.msra.mxu0 0
  %203 = vmatprep.subr.bf16.mxu0 0
  %204 = vmatpush1.bf16.msra.mxu0 0
  %205 = vmatprep.subr.bf16.mxu0 0
  %206 = vmatpush1.bf16.msra.mxu0 0
  %207 = vmatprep.subr.bf16.mxu0 0
  %208 = vmatpush1.bf16.msra.mxu0 0
  %209 = vmatprep.subr.bf16.mxu0 0
  %210 = vmatpush1.bf16.msra.mxu0 0
  %211 = vmatprep.subr.bf16.mxu0 0
  %212 = vmatpush1.bf16.msra.mxu0 0
  %213 = vmatprep.subr.bf16.mxu0 0
  %214 = vmatpush1.bf16.msra.mxu0 0
  %215 = vmatprep.subr.bf16.mxu0 0
  %216 = vmatpush1.bf16.msra.mxu0 0
  %217 = vmatprep.subr.bf16.mxu0 0
  %218 = vmatpush1.bf16.msra.mxu0 0
  %219 = vmatprep.subr.bf16.mxu0 0
  %220 = vmatpush1.bf16.msra.mxu0 0
  %221 = vmatprep.subr.bf16.mxu0 0
  %222 = vmatpush1.bf16.msra.mxu0 0
  %223 = vmatprep.subr.bf16.mxu0 0
  %224 = vmatpush1.bf16.msra.mxu0 0
  %225 = vmatprep.subr.bf16.mxu0 0
  %226 = vmatpush1.bf16.msra.mxu0 0
  %227 = vmatprep.subr.bf16.mxu0 0
  %228 = vmatpush1.bf16.msra.mxu0 0
  %229 = vmatprep.mubr.bf16.mxu0 0
  %230 = vmatmul.mubr.bf16.gmra.mrb[0].mxu0 %v192
  %v231 = vpop.f32.mrb[0].mxu0
  %v232 = vadd.f32 0.0, %v231
  %v233 = vpop.f32.mrb[0].mxu0
  %v234 = vpop.f32.mrb[0].mxu0
  %v235 = vpop.f32.mrb[0].mxu0
  %236 = vdwg.mxu0
  %vm237 = vcmask 58368
  %238 = vst.msk [vmem:[%s1] sm:$0x3] %vm237, %v184
  %239 = vst.msk [vmem:[%s1 + $0x2] sm:$0x3] %vm237, %v232
  %v240 = vld [vmem:[%s0] sm:$0x3]
  %v241 = vld [vmem:[%s0 + $0x2] sm:$0x3]
  %v242 = vpack.c.bf16 %v240, %v240
  %v243 = vpack.c.bf16 %v241, %v241
  %245 = vrot.lane.b32.xlu0 %v242, 120
  %v246 = vpop.permute.xlu0 %245
  %247 = vrot.lane.b32.xlu0 %v242, 88
  %v248 = vpop.permute.xlu0 %247
  %v250 = vsel %vm16, %v246, 0
  %v253 = vsel %vm16, %v248, 0
  %255 = vmatprep.subr.bf16.mxu0 0
  %256 = vmatpush1.bf16.xpose.msra.mxu0 %v253
  %257 = vmatprep.subr.bf16.mxu0 0
  %258 = vmatpush1.bf16.xpose.msra.mxu0 0
  %259 = vmatprep.subr.bf16.mxu0 0
  %260 = vmatpush1.bf16.xpose.msra.mxu0 0
  %261 = vmatprep.subr.bf16.mxu0 0
  %262 = vmatpush1.bf16.xpose.msra.mxu0 0
  %263 = vmatprep.subr.bf16.mxu0 0
  %264 = vmatpush1.bf16.xpose.msra.mxu0 0
  %265 = vmatprep.subr.bf16.mxu0 0
  %266 = vmatpush1.bf16.xpose.msra.mxu0 0
  %267 = vmatprep.subr.bf16.mxu0 0
  %268 = vmatpush1.bf16.xpose.msra.mxu0 0
  %269 = vmatprep.subr.bf16.mxu0 0
  %270 = vmatpush1.bf16.xpose.msra.mxu0 0
  %271 = vmatprep.subr.bf16.mxu0 0
  %272 = vmatpush1.bf16.xpose.msra.mxu0 0
  %273 = vmatprep.subr.bf16.mxu0 0
  %274 = vmatpush1.bf16.xpose.msra.mxu0 0
  %275 = vmatprep.subr.bf16.mxu0 0
  %276 = vmatpush1.bf16.xpose.msra.mxu0 0
  %277 = vmatprep.subr.bf16.mxu0 0
  %278 = vmatpush1.bf16.xpose.msra.mxu0 0
  %279 = vmatprep.subr.bf16.mxu0 0
  %280 = vmatpush1.bf16.xpose.msra.mxu0 0
  %281 = vmatprep.subr.bf16.mxu0 0
  %282 = vmatpush1.bf16.xpose.msra.mxu0 0
  %283 = vmatprep.subr.bf16.mxu0 0
  %284 = vmatpush1.bf16.xpose.msra.mxu0 0
  %285 = vmatprep.subr.bf16.mxu0 0
  %286 = vmatpush1.bf16.xpose.msra.mxu0 0
  %287 = vmatprep.mubr.bf16.mxu0 0
  %288 = vmatmul.mubr.bf16.gmra.mrb[0].mxu0 %v250
  %v289 = vpop.f32.mrb[0].mxu0
  %v290 = vadd.f32 0.0, %v289
  %v291 = vpop.f32.mrb[0].mxu0
  %v292 = vpop.f32.mrb[0].mxu0
  %v293 = vpop.f32.mrb[0].mxu0
  %294 = vdwg.mxu0
  %296 = vrot.lane.b32.xlu0 %v243, 120
  %v297 = vpop.permute.xlu0 %296
  %298 = vrot.lane.b32.xlu0 %v243, 88
  %v299 = vpop.permute.xlu0 %298
  %v301 = vsel %vm16, %v297, 0
  %v304 = vsel %vm16, %v299, 0
  %306 = vmatprep.subr.bf16.mxu0 0
  %307 = vmatpush1.bf16.xpose.msra.mxu0 %v304
  %308 = vmatprep.subr.bf16.mxu0 0
  %309 = vmatpush1.bf16.xpose.msra.mxu0 0
  %310 = vmatprep.subr.bf16.mxu0 0
  %311 = vmatpush1.bf16.xpose.msra.mxu0 0
  %312 = vmatprep.subr.bf16.mxu0 0
  %313 = vmatpush1.bf16.xpose.msra.mxu0 0
  %314 = vmatprep.subr.bf16.mxu0 0
  %315 = vmatpush1.bf16.xpose.msra.mxu0 0
  %316 = vmatprep.subr.bf16.mxu0 0
  %317 = vmatpush1.bf16.xpose.msra.mxu0 0
  %318 = vmatprep.subr.bf16.mxu0 0
  %319 = vmatpush1.bf16.xpose.msra.mxu0 0
  %320 = vmatprep.subr.bf16.mxu0 0
  %321 = vmatpush1.bf16.xpose.msra.mxu0 0
  %322 = vmatprep.subr.bf16.mxu0 0
  %323 = vmatpush1.bf16.xpose.msra.mxu0 0
  %324 = vmatprep.subr.bf16.mxu0 0
  %325 = vmatpush1.bf16.xpose.msra.mxu0 0
  %326 = vmatprep.subr.bf16.mxu0 0
  %327 = vmatpush1.bf16.xpose.msra.mxu0 0
  %328 = vmatprep.subr.bf16.mxu0 0
  %329 = vmatpush1.bf16.xpose.msra.mxu0 0
  %330 = vmatprep.subr.bf16.mxu0 0
  %331 = vmatpush1.bf16.xpose.msra.mxu0 0
  %332 = vmatprep.subr.bf16.mxu0 0
  %333 = vmatpush1.bf16.xpose.msra.mxu0 0
  %334 = vmatprep.subr.bf16.mxu0 0
  %335 = vmatpush1.bf16.xpose.msra.mxu0 0
  %336 = vmatprep.subr.bf16.mxu0 0
  %337 = vmatpush1.bf16.xpose.msra.mxu0 0
  %338 = vmatprep.mubr.bf16.mxu0 0
  %339 = vmatmul.mubr.bf16.gmra.mrb[0].mxu0 %v301
  %v340 = vpop.f32.mrb[0].mxu0
  %v341 = vadd.f32 0.0, %v340
  %v342 = vpop.f32.mrb[0].mxu0
  %v343 = vpop.f32.mrb[0].mxu0
  %v344 = vpop.f32.mrb[0].mxu0
  %345 = vdwg.mxu0
  %v346 = vmul.f32 %v290, 0.35355338
  %v347 = vmul.f32 %v341, 0.35355338
  %v348 = vsel %vm114, %v346, -inf
  %349 = vmax.xlane.f32.xlu0 %v348
  %v350 = vpop.xlane.xlu0 %349
  %v351 = vsel %vm114, %v347, -inf
  %352 = vmax.xlane.f32.xlu0 %v351
  %v353 = vpop.xlane.xlu0 %352
  %v354 = vsub.f32 %v346, %v350
  %v355 = vsub.f32 %v347, %v353
  %v356 = vmul.f32 %v354, 1.442695
  %v357 = vpow.pop %v356
  %v358 = vmul.f32 %v355, 1.442695
  %v359 = vpow.pop %v358
  %v360 = vsel %vm114, %v357, 0.0
  %361 = vadd.xlane.f32.xlu0 %v360
  %v362 = vpop.xlane.xlu0 %361
  %v363 = vsel %vm114, %v359, 0.0
  %364 = vadd.xlane.f32.xlu0 %v363
  %v365 = vpop.xlane.xlu0 %364
  %v366 = vrcp.pop %v362
  %v367 = vrcp.pop %v365
  %v368 = vmul.f32 %v357, %v366
  %v369 = vmul.f32 %v359, %v367
  %v370 = vpack.c.bf16 %v368, %v368
  %v371 = vpack.c.bf16 %v369, %v369
  %372 = vrot.lane.b32.xlu0 %v242, 56
  %v373 = vpop.permute.xlu0 %372
  %v375 = vsel %vm141, %v370, 0
  %v378 = vsel %vm145, %v373, 0
  %380 = vmatprep.subr.bf16.mxu0 0
  %381 = vmatpush1.bf16.msra.mxu0 %v378
  %382 = vmatprep.subr.bf16.mxu0 0
  %383 = vmatpush1.bf16.msra.mxu0 0
  %384 = vmatprep.subr.bf16.mxu0 0
  %385 = vmatpush1.bf16.msra.mxu0 0
  %386 = vmatprep.subr.bf16.mxu0 0
  %387 = vmatpush1.bf16.msra.mxu0 0
  %388 = vmatprep.subr.bf16.mxu0 0
  %389 = vmatpush1.bf16.msra.mxu0 0
  %390 = vmatprep.subr.bf16.mxu0 0
  %391 = vmatpush1.bf16.msra.mxu0 0
  %392 = vmatprep.subr.bf16.mxu0 0
  %393 = vmatpush1.bf16.msra.mxu0 0
  %394 = vmatprep.subr.bf16.mxu0 0
  %395 = vmatpush1.bf16.msra.mxu0 0
  %396 = vmatprep.subr.bf16.mxu0 0
  %397 = vmatpush1.bf16.msra.mxu0 0
  %398 = vmatprep.subr.bf16.mxu0 0
  %399 = vmatpush1.bf16.msra.mxu0 0
  %400 = vmatprep.subr.bf16.mxu0 0
  %401 = vmatpush1.bf16.msra.mxu0 0
  %402 = vmatprep.subr.bf16.mxu0 0
  %403 = vmatpush1.bf16.msra.mxu0 0
  %404 = vmatprep.subr.bf16.mxu0 0
  %405 = vmatpush1.bf16.msra.mxu0 0
  %406 = vmatprep.subr.bf16.mxu0 0
  %407 = vmatpush1.bf16.msra.mxu0 0
  %408 = vmatprep.subr.bf16.mxu0 0
  %409 = vmatpush1.bf16.msra.mxu0 0
  %410 = vmatprep.subr.bf16.mxu0 0
  %411 = vmatpush1.bf16.msra.mxu0 0
  %412 = vmatprep.mubr.bf16.mxu0 0
  %413 = vmatmul.mubr.bf16.gmra.mrb[0].mxu0 %v375
  %v414 = vpop.f32.mrb[0].mxu0
  %v415 = vadd.f32 0.0, %v414
  %v416 = vpop.f32.mrb[0].mxu0
  %v417 = vpop.f32.mrb[0].mxu0
  %v418 = vpop.f32.mrb[0].mxu0
  %419 = vdwg.mxu0
  %420 = vrot.lane.b32.xlu0 %v243, 56
  %v421 = vpop.permute.xlu0 %420
  %v423 = vsel %vm141, %v371, 0
  %v426 = vsel %vm145, %v421, 0
  %428 = vmatprep.subr.bf16.mxu0 0
  %429 = vmatpush1.bf16.msra.mxu0 %v426
  %430 = vmatprep.subr.bf16.mxu0 0
  %431 = vmatpush1.bf16.msra.mxu0 0
  %432 = vmatprep.subr.bf16.mxu0 0
  %433 = vmatpush1.bf16.msra.mxu0 0
  %434 = vmatprep.subr.bf16.mxu0 0
  %435 = vmatpush1.bf16.msra.mxu0 0
  %436 = vmatprep.subr.bf16.mxu0 0
  %437 = vmatpush1.bf16.msra.mxu0 0
  %438 = vmatprep.subr.bf16.mxu0 0
  %439 = vmatpush1.bf16.msra.mxu0 0
  %440 = vmatprep.subr.bf16.mxu0 0
  %441 = vmatpush1.bf16.msra.mxu0 0
  %442 = vmatprep.subr.bf16.mxu0 0
  %443 = vmatpush1.bf16.msra.mxu0 0
  %444 = vmatprep.subr.bf16.mxu0 0
  %445 = vmatpush1.bf16.msra.mxu0 0
  %446 = vmatprep.subr.bf16.mxu0 0
  %447 = vmatpush1.bf16.msra.mxu0 0
  %448 = vmatprep.subr.bf16.mxu0 0
  %449 = vmatpush1.bf16.msra.mxu0 0
  %450 = vmatprep.subr.bf16.mxu0 0
  %451 = vmatpush1.bf16.msra.mxu0 0
  %452 = vmatprep.subr.bf16.mxu0 0
  %453 = vmatpush1.bf16.msra.mxu0 0
  %454 = vmatprep.subr.bf16.mxu0 0
  %455 = vmatpush1.bf16.msra.mxu0 0
  %456 = vmatprep.subr.bf16.mxu0 0
  %457 = vmatpush1.bf16.msra.mxu0 0
  %458 = vmatprep.subr.bf16.mxu0 0
  %459 = vmatpush1.bf16.msra.mxu0 0
  %460 = vmatprep.mubr.bf16.mxu0 0
  %461 = vmatmul.mubr.bf16.gmra.mrb[0].mxu0 %v423
  %v462 = vpop.f32.mrb[0].mxu0
  %v463 = vadd.f32 0.0, %v462
  %v464 = vpop.f32.mrb[0].mxu0
  %v465 = vpop.f32.mrb[0].mxu0
  %v466 = vpop.f32.mrb[0].mxu0
  %467 = vdwg.mxu0
  %470 = vrot.lane.b32.xlu0 %v415, 8
  %v471 = vpop.permute.xlu0 %470
  %472 = vrot.lane.b32.xlu0 %v463, 8
  %v473 = vpop.permute.xlu0 %472
  %vm476 = vcmask 123968
  %477 = vst.msk [vmem:[%s1] sm:$0x3] %vm476, %v471
  %478 = vst.msk [vmem:[%s1 + $0x2] sm:$0x3] %vm476, %v473
  %v479 = vld [vmem:[%s0] sm:$0x3]
  %v480 = vld [vmem:[%s0 + $0x2] sm:$0x3]
  %v481 = vpack.c.bf16 %v479, %v479
  %v482 = vpack.c.bf16 %v480, %v480
  %484 = vrot.lane.b32.xlu0 %v481, 112
  %v485 = vpop.permute.xlu0 %484
  %486 = vrot.lane.b32.xlu0 %v481, 80
  %v487 = vpop.permute.xlu0 %486
  %v489 = vsel %vm16, %v485, 0
  %v492 = vsel %vm16, %v487, 0
  %494 = vmatprep.subr.bf16.mxu0 0
  %495 = vmatpush1.bf16.xpose.msra.mxu0 %v492
  %496 = vmatprep.subr.bf16.mxu0 0
  %497 = vmatpush1.bf16.xpose.msra.mxu0 0
  %498 = vmatprep.subr.bf16.mxu0 0
  %499 = vmatpush1.bf16.xpose.msra.mxu0 0
  %500 = vmatprep.subr.bf16.mxu0 0
  %501 = vmatpush1.bf16.xpose.msra.mxu0 0
  %502 = vmatprep.subr.bf16.mxu0 0
  %503 = vmatpush1.bf16.xpose.msra.mxu0 0
  %504 = vmatprep.subr.bf16.mxu0 0
  %505 = vmatpush1.bf16.xpose.msra.mxu0 0
  %506 = vmatprep.subr.bf16.mxu0 0
  %507 = vmatpush1.bf16.xpose.msra.mxu0 0
  %508 = vmatprep.subr.bf16.mxu0 0
  %509 = vmatpush1.bf16.xpose.msra.mxu0 0
  %510 = vmatprep.subr.bf16.mxu0 0
  %511 = vmatpush1.bf16.xpose.msra.mxu0 0
  %512 = vmatprep.subr.bf16.mxu0 0
  %513 = vmatpush1.bf16.xpose.msra.mxu0 0
  %514 = vmatprep.subr.bf16.mxu0 0
  %515 = vmatpush1.bf16.xpose.msra.mxu0 0
  %516 = vmatprep.subr.bf16.mxu0 0
  %517 = vmatpush1.bf16.xpose.msra.mxu0 0
  %518 = vmatprep.subr.bf16.mxu0 0
  %519 = vmatpush1.bf16.xpose.msra.mxu0 0
  %520 = vmatprep.subr.bf16.mxu0 0
  %521 = vmatpush1.bf16.xpose.msra.mxu0 0
  %522 = vmatprep.subr.bf16.mxu0 0
  %523 = vmatpush1.bf16.xpose.msra.mxu0 0
  %524 = vmatprep.subr.bf16.mxu0 0
  %525 = vmatpush1.bf16.xpose.msra.mxu0 0
  %526 = vmatprep.mubr.bf16.mxu0 0
  %527 = vmatmul.mubr.bf16.gmra.mrb[0].mxu0 %v489
  %v528 = vpop.f32.mrb[0].mxu0
  %v529 = vadd.f32 0.0, %v528
  %v530 = vpop.f32.mrb[0].mxu0
  %v531 = vpop.f32.mrb[0].mxu0
  %v532 = vpop.f32.mrb[0].mxu0
  %533 = vdwg.mxu0
  %535 = vrot.lane.b32.xlu0 %v482, 112
  %v536 = vpop.permute.xlu0 %535
  %537 = vrot.lane.b32.xlu0 %v482, 80
  %v538 = vpop.permute.xlu0 %537
  %v540 = vsel %vm16, %v536, 0
  %v543 = vsel %vm16, %v538, 0
  %545 = vmatprep.subr.bf16.mxu0 0
  %546 = vmatpush1.bf16.xpose.msra.mxu0 %v543
  %547 = vmatprep.subr.bf16.mxu0 0
  %548 = vmatpush1.bf16.xpose.msra.mxu0 0
  %549 = vmatprep.subr.bf16.mxu0 0
  %550 = vmatpush1.bf16.xpose.msra.mxu0 0
  %551 = vmatprep.subr.bf16.mxu0 0
  %552 = vmatpush1.bf16.xpose.msra.mxu0 0
  %553 = vmatprep.subr.bf16.mxu0 0
  %554 = vmatpush1.bf16.xpose.msra.mxu0 0
  %555 = vmatprep.subr.bf16.mxu0 0
  %556 = vmatpush1.bf16.xpose.msra.mxu0 0
  %557 = vmatprep.subr.bf16.mxu0 0
  %558 = vmatpush1.bf16.xpose.msra.mxu0 0
  %559 = vmatprep.subr.bf16.mxu0 0
  %560 = vmatpush1.bf16.xpose.msra.mxu0 0
  %561 = vmatprep.subr.bf16.mxu0 0
  %562 = vmatpush1.bf16.xpose.msra.mxu0 0
  %563 = vmatprep.subr.bf16.mxu0 0
  %564 = vmatpush1.bf16.xpose.msra.mxu0 0
  %565 = vmatprep.subr.bf16.mxu0 0
  %566 = vmatpush1.bf16.xpose.msra.mxu0 0
  %567 = vmatprep.subr.bf16.mxu0 0
  %568 = vmatpush1.bf16.xpose.msra.mxu0 0
  %569 = vmatprep.subr.bf16.mxu0 0
  %570 = vmatpush1.bf16.xpose.msra.mxu0 0
  %571 = vmatprep.subr.bf16.mxu0 0
  %572 = vmatpush1.bf16.xpose.msra.mxu0 0
  %573 = vmatprep.subr.bf16.mxu0 0
  %574 = vmatpush1.bf16.xpose.msra.mxu0 0
  %575 = vmatprep.subr.bf16.mxu0 0
  %576 = vmatpush1.bf16.xpose.msra.mxu0 0
  %577 = vmatprep.mubr.bf16.mxu0 0
  %578 = vmatmul.mubr.bf16.gmra.mrb[0].mxu0 %v540
  %v579 = vpop.f32.mrb[0].mxu0
  %v580 = vadd.f32 0.0, %v579
  %v581 = vpop.f32.mrb[0].mxu0
  %v582 = vpop.f32.mrb[0].mxu0
  %v583 = vpop.f32.mrb[0].mxu0
  %584 = vdwg.mxu0
  %v585 = vmul.f32 %v529, 0.35355338
  %v586 = vmul.f32 %v580, 0.35355338
  %v587 = vsel %vm114, %v585, -inf
  %588 = vmax.xlane.f32.xlu0 %v587
  %v589 = vpop.xlane.xlu0 %588
  %v590 = vsel %vm114, %v586, -inf
  %591 = vmax.xlane.f32.xlu0 %v590
  %v592 = vpop.xlane.xlu0 %591
  %v593 = vsub.f32 %v585, %v589
  %v594 = vsub.f32 %v586, %v592
  %v595 = vmul.f32 %v593, 1.442695
  %v596 = vpow.pop %v595
  %v597 = vmul.f32 %v594, 1.442695
  %v598 = vpow.pop %v597
  %v599 = vsel %vm114, %v596, 0.0
  %600 = vadd.xlane.f32.xlu0 %v599
  %v601 = vpop.xlane.xlu0 %600
  %v602 = vsel %vm114, %v598, 0.0
  %603 = vadd.xlane.f32.xlu0 %v602
  %v604 = vpop.xlane.xlu0 %603
  %v605 = vrcp.pop %v601
  %v606 = vrcp.pop %v604
  %v607 = vmul.f32 %v596, %v605
  %v608 = vmul.f32 %v598, %v606
  %v609 = vpack.c.bf16 %v607, %v607
  %v610 = vpack.c.bf16 %v608, %v608
  %611 = vrot.lane.b32.xlu0 %v481, 48
  %v612 = vpop.permute.xlu0 %611
  %v614 = vsel %vm141, %v609, 0
  %v617 = vsel %vm145, %v612, 0
  %619 = vmatprep.subr.bf16.mxu0 0
  %620 = vmatpush1.bf16.msra.mxu0 %v617
  %621 = vmatprep.subr.bf16.mxu0 0
  %622 = vmatpush1.bf16.msra.mxu0 0
  %623 = vmatprep.subr.bf16.mxu0 0
  %624 = vmatpush1.bf16.msra.mxu0 0
  %625 = vmatprep.subr.bf16.mxu0 0
  %626 = vmatpush1.bf16.msra.mxu0 0
  %627 = vmatprep.subr.bf16.mxu0 0
  %628 = vmatpush1.bf16.msra.mxu0 0
  %629 = vmatprep.subr.bf16.mxu0 0
  %630 = vmatpush1.bf16.msra.mxu0 0
  %631 = vmatprep.subr.bf16.mxu0 0
  %632 = vmatpush1.bf16.msra.mxu0 0
  %633 = vmatprep.subr.bf16.mxu0 0
  %634 = vmatpush1.bf16.msra.mxu0 0
  %635 = vmatprep.subr.bf16.mxu0 0
  %636 = vmatpush1.bf16.msra.mxu0 0
  %637 = vmatprep.subr.bf16.mxu0 0
  %638 = vmatpush1.bf16.msra.mxu0 0
  %639 = vmatprep.subr.bf16.mxu0 0
  %640 = vmatpush1.bf16.msra.mxu0 0
  %641 = vmatprep.subr.bf16.mxu0 0
  %642 = vmatpush1.bf16.msra.mxu0 0
  %643 = vmatprep.subr.bf16.mxu0 0
  %644 = vmatpush1.bf16.msra.mxu0 0
  %645 = vmatprep.subr.bf16.mxu0 0
  %646 = vmatpush1.bf16.msra.mxu0 0
  %647 = vmatprep.subr.bf16.mxu0 0
  %648 = vmatpush1.bf16.msra.mxu0 0
  %649 = vmatprep.subr.bf16.mxu0 0
  %650 = vmatpush1.bf16.msra.mxu0 0
  %651 = vmatprep.mubr.bf16.mxu0 0
  %652 = vmatmul.mubr.bf16.gmra.mrb[0].mxu0 %v614
  %v653 = vpop.f32.mrb[0].mxu0
  %v654 = vadd.f32 0.0, %v653
  %v655 = vpop.f32.mrb[0].mxu0
  %v656 = vpop.f32.mrb[0].mxu0
  %v657 = vpop.f32.mrb[0].mxu0
  %658 = vdwg.mxu0
  %659 = vrot.lane.b32.xlu0 %v482, 48
  %v660 = vpop.permute.xlu0 %659
  %v662 = vsel %vm141, %v610, 0
  %v665 = vsel %vm145, %v660, 0
  %667 = vmatprep.subr.bf16.mxu0 0
  %668 = vmatpush1.bf16.msra.mxu0 %v665
  %669 = vmatprep.subr.bf16.mxu0 0
  %670 = vmatpush1.bf16.msra.mxu0 0
  %671 = vmatprep.subr.bf16.mxu0 0
  %672 = vmatpush1.bf16.msra.mxu0 0
  %673 = vmatprep.subr.bf16.mxu0 0
  %674 = vmatpush1.bf16.msra.mxu0 0
  %675 = vmatprep.subr.bf16.mxu0 0
  %676 = vmatpush1.bf16.msra.mxu0 0
  %677 = vmatprep.subr.bf16.mxu0 0
  %678 = vmatpush1.bf16.msra.mxu0 0
  %679 = vmatprep.subr.bf16.mxu0 0
  %680 = vmatpush1.bf16.msra.mxu0 0
  %681 = vmatprep.subr.bf16.mxu0 0
  %682 = vmatpush1.bf16.msra.mxu0 0
  %683 = vmatprep.subr.bf16.mxu0 0
  %684 = vmatpush1.bf16.msra.mxu0 0
  %685 = vmatprep.subr.bf16.mxu0 0
  %686 = vmatpush1.bf16.msra.mxu0 0
  %687 = vmatprep.subr.bf16.mxu0 0
  %688 = vmatpush1.bf16.msra.mxu0 0
  %689 = vmatprep.subr.bf16.mxu0 0
  %690 = vmatpush1.bf16.msra.mxu0 0
  %691 = vmatprep.subr.bf16.mxu0 0
  %692 = vmatpush1.bf16.msra.mxu0 0
  %693 = vmatprep.subr.bf16.mxu0 0
  %694 = vmatpush1.bf16.msra.mxu0 0
  %695 = vmatprep.subr.bf16.mxu0 0
  %696 = vmatpush1.bf16.msra.mxu0 0
  %697 = vmatprep.subr.bf16.mxu0 0
  %698 = vmatpush1.bf16.msra.mxu0 0
  %699 = vmatprep.mubr.bf16.mxu0 0
  %700 = vmatmul.mubr.bf16.gmra.mrb[0].mxu0 %v662
  %v701 = vpop.f32.mrb[0].mxu0
  %v702 = vadd.f32 0.0, %v701
  %v703 = vpop.f32.mrb[0].mxu0
  %v704 = vpop.f32.mrb[0].mxu0
  %v705 = vpop.f32.mrb[0].mxu0
  %706 = vdwg.mxu0
  %709 = vrot.lane.b32.xlu0 %v654, 16
  %v710 = vpop.permute.xlu0 %709
  %711 = vrot.lane.b32.xlu0 %v702, 16
  %v712 = vpop.permute.xlu0 %711
  %vm715 = vcmask 189568
  %716 = vst.msk [vmem:[%s1] sm:$0x3] %vm715, %v710
  %717 = vst.msk [vmem:[%s1 + $0x2] sm:$0x3] %vm715, %v712
  %v718 = vld [vmem:[%s0] sm:$0x3]
  %v719 = vld [vmem:[%s0 + $0x2] sm:$0x3]
  %v720 = vpack.c.bf16 %v718, %v718
  %v721 = vpack.c.bf16 %v719, %v719
  %723 = vrot.lane.b32.xlu0 %v720, 104
  %v724 = vpop.permute.xlu0 %723
  %725 = vrot.lane.b32.xlu0 %v720, 72
  %v726 = vpop.permute.xlu0 %725
  %v728 = vsel %vm16, %v724, 0
  %v731 = vsel %vm16, %v726, 0
  %733 = vmatprep.subr.bf16.mxu0 0
  %734 = vmatpush1.bf16.xpose.msra.mxu0 %v731
  %735 = vmatprep.subr.bf16.mxu0 0
  %736 = vmatpush1.bf16.xpose.msra.mxu0 0
  %737 = vmatprep.subr.bf16.mxu0 0
  %738 = vmatpush1.bf16.xpose.msra.mxu0 0
  %739 = vmatprep.subr.bf16.mxu0 0
  %740 = vmatpush1.bf16.xpose.msra.mxu0 0
  %741 = vmatprep.subr.bf16.mxu0 0
  %742 = vmatpush1.bf16.xpose.msra.mxu0 0
  %743 = vmatprep.subr.bf16.mxu0 0
  %744 = vmatpush1.bf16.xpose.msra.mxu0 0
  %745 = vmatprep.subr.bf16.mxu0 0
  %746 = vmatpush1.bf16.xpose.msra.mxu0 0
  %747 = vmatprep.subr.bf16.mxu0 0
  %748 = vmatpush1.bf16.xpose.msra.mxu0 0
  %749 = vmatprep.subr.bf16.mxu0 0
  %750 = vmatpush1.bf16.xpose.msra.mxu0 0
  %751 = vmatprep.subr.bf16.mxu0 0
  %752 = vmatpush1.bf16.xpose.msra.mxu0 0
  %753 = vmatprep.subr.bf16.mxu0 0
  %754 = vmatpush1.bf16.xpose.msra.mxu0 0
  %755 = vmatprep.subr.bf16.mxu0 0
  %756 = vmatpush1.bf16.xpose.msra.mxu0 0
  %757 = vmatprep.subr.bf16.mxu0 0
  %758 = vmatpush1.bf16.xpose.msra.mxu0 0
  %759 = vmatprep.subr.bf16.mxu0 0
  %760 = vmatpush1.bf16.xpose.msra.mxu0 0
  %761 = vmatprep.subr.bf16.mxu0 0
  %762 = vmatpush1.bf16.xpose.msra.mxu0 0
  %763 = vmatprep.subr.bf16.mxu0 0
  %764 = vmatpush1.bf16.xpose.msra.mxu0 0
  %765 = vmatprep.mubr.bf16.mxu0 0
  %766 = vmatmul.mubr.bf16.gmra.mrb[0].mxu0 %v728
  %v767 = vpop.f32.mrb[0].mxu0
  %v768 = vadd.f32 0.0, %v767
  %v769 = vpop.f32.mrb[0].mxu0
  %v770 = vpop.f32.mrb[0].mxu0
  %v771 = vpop.f32.mrb[0].mxu0
  %772 = vdwg.mxu0
  %774 = vrot.lane.b32.xlu0 %v721, 104
  %v775 = vpop.permute.xlu0 %774
  %776 = vrot.lane.b32.xlu0 %v721, 72
  %v777 = vpop.permute.xlu0 %776
  %v779 = vsel %vm16, %v775, 0
  %v782 = vsel %vm16, %v777, 0
  %784 = vmatprep.subr.bf16.mxu0 0
  %785 = vmatpush1.bf16.xpose.msra.mxu0 %v782
  %786 = vmatprep.subr.bf16.mxu0 0
  %787 = vmatpush1.bf16.xpose.msra.mxu0 0
  %788 = vmatprep.subr.bf16.mxu0 0
  %789 = vmatpush1.bf16.xpose.msra.mxu0 0
  %790 = vmatprep.subr.bf16.mxu0 0
  %791 = vmatpush1.bf16.xpose.msra.mxu0 0
  %792 = vmatprep.subr.bf16.mxu0 0
  %793 = vmatpush1.bf16.xpose.msra.mxu0 0
  %794 = vmatprep.subr.bf16.mxu0 0
  %795 = vmatpush1.bf16.xpose.msra.mxu0 0
  %796 = vmatprep.subr.bf16.mxu0 0
  %797 = vmatpush1.bf16.xpose.msra.mxu0 0
  %798 = vmatprep.subr.bf16.mxu0 0
  %799 = vmatpush1.bf16.xpose.msra.mxu0 0
  %800 = vmatprep.subr.bf16.mxu0 0
  %801 = vmatpush1.bf16.xpose.msra.mxu0 0
  %802 = vmatprep.subr.bf16.mxu0 0
  %803 = vmatpush1.bf16.xpose.msra.mxu0 0
  %804 = vmatprep.subr.bf16.mxu0 0
  %805 = vmatpush1.bf16.xpose.msra.mxu0 0
  %806 = vmatprep.subr.bf16.mxu0 0
  %807 = vmatpush1.bf16.xpose.msra.mxu0 0
  %808 = vmatprep.subr.bf16.mxu0 0
  %809 = vmatpush1.bf16.xpose.msra.mxu0 0
  %810 = vmatprep.subr.bf16.mxu0 0
  %811 = vmatpush1.bf16.xpose.msra.mxu0 0
  %812 = vmatprep.subr.bf16.mxu0 0
  %813 = vmatpush1.bf16.xpose.msra.mxu0 0
  %814 = vmatprep.subr.bf16.mxu0 0
  %815 = vmatpush1.bf16.xpose.msra.mxu0 0
  %816 = vmatprep.mubr.bf16.mxu0 0
  %817 = vmatmul.mubr.bf16.gmra.mrb[0].mxu0 %v779
  %v818 = vpop.f32.mrb[0].mxu0
  %v819 = vadd.f32 0.0, %v818
  %v820 = vpop.f32.mrb[0].mxu0
  %v821 = vpop.f32.mrb[0].mxu0
  %v822 = vpop.f32.mrb[0].mxu0
  %823 = vdwg.mxu0
  %v824 = vmul.f32 %v768, 0.35355338
  %v825 = vmul.f32 %v819, 0.35355338
  %v826 = vsel %vm114, %v824, -inf
  %827 = vmax.xlane.f32.xlu0 %v826
  %v828 = vpop.xlane.xlu0 %827
  %v829 = vsel %vm114, %v825, -inf
  %830 = vmax.xlane.f32.xlu0 %v829
  %v831 = vpop.xlane.xlu0 %830
  %v832 = vsub.f32 %v824, %v828
  %v833 = vsub.f32 %v825, %v831
  %v834 = vmul.f32 %v832, 1.442695
  %v835 = vpow.pop %v834
  %v836 = vmul.f32 %v833, 1.442695
  %v837 = vpow.pop %v836
  %v838 = vsel %vm114, %v835, 0.0
  %839 = vadd.xlane.f32.xlu0 %v838
  %v840 = vpop.xlane.xlu0 %839
  %v841 = vsel %vm114, %v837, 0.0
  %842 = vadd.xlane.f32.xlu0 %v841
  %v843 = vpop.xlane.xlu0 %842
  %v844 = vrcp.pop %v840
  %v845 = vrcp.pop %v843
  %v846 = vmul.f32 %v835, %v844
  %v847 = vmul.f32 %v837, %v845
  %v848 = vpack.c.bf16 %v846, %v846
  %v849 = vpack.c.bf16 %v847, %v847
  %850 = vrot.lane.b32.xlu0 %v720, 40
  %v851 = vpop.permute.xlu0 %850
  %v853 = vsel %vm141, %v848, 0
  %v856 = vsel %vm145, %v851, 0
  %858 = vmatprep.subr.bf16.mxu0 0
  %859 = vmatpush1.bf16.msra.mxu0 %v856
  %860 = vmatprep.subr.bf16.mxu0 0
  %861 = vmatpush1.bf16.msra.mxu0 0
  %862 = vmatprep.subr.bf16.mxu0 0
  %863 = vmatpush1.bf16.msra.mxu0 0
  %864 = vmatprep.subr.bf16.mxu0 0
  %865 = vmatpush1.bf16.msra.mxu0 0
  %866 = vmatprep.subr.bf16.mxu0 0
  %867 = vmatpush1.bf16.msra.mxu0 0
  %868 = vmatprep.subr.bf16.mxu0 0
  %869 = vmatpush1.bf16.msra.mxu0 0
  %870 = vmatprep.subr.bf16.mxu0 0
  %871 = vmatpush1.bf16.msra.mxu0 0
  %872 = vmatprep.subr.bf16.mxu0 0
  %873 = vmatpush1.bf16.msra.mxu0 0
  %874 = vmatprep.subr.bf16.mxu0 0
  %875 = vmatpush1.bf16.msra.mxu0 0
  %876 = vmatprep.subr.bf16.mxu0 0
  %877 = vmatpush1.bf16.msra.mxu0 0
  %878 = vmatprep.subr.bf16.mxu0 0
  %879 = vmatpush1.bf16.msra.mxu0 0
  %880 = vmatprep.subr.bf16.mxu0 0
  %881 = vmatpush1.bf16.msra.mxu0 0
  %882 = vmatprep.subr.bf16.mxu0 0
  %883 = vmatpush1.bf16.msra.mxu0 0
  %884 = vmatprep.subr.bf16.mxu0 0
  %885 = vmatpush1.bf16.msra.mxu0 0
  %886 = vmatprep.subr.bf16.mxu0 0
  %887 = vmatpush1.bf16.msra.mxu0 0
  %888 = vmatprep.subr.bf16.mxu0 0
  %889 = vmatpush1.bf16.msra.mxu0 0
  %890 = vmatprep.mubr.bf16.mxu0 0
  %891 = vmatmul.mubr.bf16.gmra.mrb[0].mxu0 %v853
  %v892 = vpop.f32.mrb[0].mxu0
  %v893 = vadd.f32 0.0, %v892
  %v894 = vpop.f32.mrb[0].mxu0
  %v895 = vpop.f32.mrb[0].mxu0
  %v896 = vpop.f32.mrb[0].mxu0
  %897 = vdwg.mxu0
  %898 = vrot.lane.b32.xlu0 %v721, 40
  %v899 = vpop.permute.xlu0 %898
  %v901 = vsel %vm141, %v849, 0
  %v904 = vsel %vm145, %v899, 0
  %906 = vmatprep.subr.bf16.mxu0 0
  %907 = vmatpush1.bf16.msra.mxu0 %v904
  %908 = vmatprep.subr.bf16.mxu0 0
  %909 = vmatpush1.bf16.msra.mxu0 0
  %910 = vmatprep.subr.bf16.mxu0 0
  %911 = vmatpush1.bf16.msra.mxu0 0
  %912 = vmatprep.subr.bf16.mxu0 0
  %913 = vmatpush1.bf16.msra.mxu0 0
  %914 = vmatprep.subr.bf16.mxu0 0
  %915 = vmatpush1.bf16.msra.mxu0 0
  %916 = vmatprep.subr.bf16.mxu0 0
  %917 = vmatpush1.bf16.msra.mxu0 0
  %918 = vmatprep.subr.bf16.mxu0 0
  %919 = vmatpush1.bf16.msra.mxu0 0
  %920 = vmatprep.subr.bf16.mxu0 0
  %921 = vmatpush1.bf16.msra.mxu0 0
  %922 = vmatprep.subr.bf16.mxu0 0
  %923 = vmatpush1.bf16.msra.mxu0 0
  %924 = vmatprep.subr.bf16.mxu0 0
  %925 = vmatpush1.bf16.msra.mxu0 0
  %926 = vmatprep.subr.bf16.mxu0 0
  %927 = vmatpush1.bf16.msra.mxu0 0
  %928 = vmatprep.subr.bf16.mxu0 0
  %929 = vmatpush1.bf16.msra.mxu0 0
  %930 = vmatprep.subr.bf16.mxu0 0
  %931 = vmatpush1.bf16.msra.mxu0 0
  %932 = vmatprep.subr.bf16.mxu0 0
  %933 = vmatpush1.bf16.msra.mxu0 0
  %934 = vmatprep.subr.bf16.mxu0 0
  %935 = vmatpush1.bf16.msra.mxu0 0
  %936 = vmatprep.subr.bf16.mxu0 0
  %937 = vmatpush1.bf16.msra.mxu0 0
  %938 = vmatprep.mubr.bf16.mxu0 0
  %939 = vmatmul.mubr.bf16.gmra.mrb[0].mxu0 %v901
  %v940 = vpop.f32.mrb[0].mxu0
  %v941 = vadd.f32 0.0, %v940
  %v942 = vpop.f32.mrb[0].mxu0
  %v943 = vpop.f32.mrb[0].mxu0
  %v944 = vpop.f32.mrb[0].mxu0
  %945 = vdwg.mxu0
  %948 = vrot.lane.b32.xlu0 %v893, 24
  %v949 = vpop.permute.xlu0 %948
  %950 = vrot.lane.b32.xlu0 %v941, 24
  %v951 = vpop.permute.xlu0 %950
  %vm954 = vcmask 255168
  %955 = vst.msk [vmem:[%s1] sm:$0x3] %vm954, %v949
  %956 = vst.msk [vmem:[%s1 + $0x2] sm:$0x3] %vm954, %v951
  // Predicated region
  $region6: #{_lambda_.20} parent=0 // pred_check
    _
  $region7: #{_lambda_.20} parent=0 // pred_check_branch
    %958 = sbr.rel (0) target = $region9
  $region8: #{_lambda_.20} parent=0 // pred_region
    _
  $region9: #{_lambda_.20} parent=0 // pred_fallthru
    _
  // Predicated region
  $region10: #{_lambda_.20} parent=0 // pred_check
    _
  $region11: #{_lambda_.20} parent=0 // pred_check_branch
    %960 = sbr.rel (0) target = $region13
  $region12: #{_lambda_.20} parent=0 // pred_region
    _
  $region13: #{_lambda_.20} parent=0 // pred_fallthru
    _

// kernel: _lambda_.21
$region0: #{_lambda_.21}
  #allocation0 [shape = 'u32[]', space=smem, size = 0x4, offset = 0x4, fixed_abs, tag = 'smem constant byte address 0x4 - core index']
  #allocation1 [shape = 'u32[144,128]{1,0:T(1,128)}', space=vmem, size = 0x12000, scoped, tag = 'internal scratch']
  %s0 = inlined_call_operand.vmem [shape: f32[4,32], index: 0, kind: input, shape index: {}]
  %s1 = inlined_call_operand.vmem [shape: bf16[32,32], index: 1, kind: input, shape index: {}]
  %s2 = inlined_call_operand.vmem [shape: f32[1,32], index: 2, kind: input, shape index: {}]
  %s3 = inlined_call_operand.vmem [shape: f32[4,32], index: 3, kind: input, shape index: {}, may-alias: {3,4}]
  %s4 = inlined_call_operand.vmem [shape: f32[4,32], index: 4, kind: output, shape index: {}, may-alias: {3,4}]
  %s5 = sld [smem:[#allocation0]]
  $region26: #{_lambda_.21} parent=0
    _
  %s7 = ssub.s32 1, %s5
  %s8 = scalar_select 0, %s7, %s5
  // Predicated region
  $region2: #{_lambda_.21} parent=0 // pred_check
    _
  $region3: #{_lambda_.21} parent=0 // pred_check_branch
    %10 = sbr.rel (0) target = $region5
  $region4: #{_lambda_.21} parent=0 // pred_region
    _
  $region5: #{_lambda_.21} parent=0 // pred_fallthru
    _
  // Predicated region
  $region6: #{_lambda_.21} parent=0 // pred_check
    _
  $region7: #{_lambda_.21} parent=0 // pred_check_branch
    %12 = sbr.rel (0) target = $region9
  $region8: #{_lambda_.21} parent=0 // pred_region
    _
  $region9: #{_lambda_.21} parent=0 // pred_fallthru
    _
  // Predicated region
  $region10: #{_lambda_.21} parent=0 // pred_check
    _
  $region11: #{_lambda_.21} parent=0 // pred_check_branch
    %14 = sbr.rel (0) target = $region13
  $region12: #{_lambda_.21} parent=0 // pred_region
    _
  $region13: #{_lambda_.21} parent=0 // pred_fallthru
    _
  // Predicated region
  $region14: #{_lambda_.21} parent=0 // pred_check
    _
  $region15: #{_lambda_.21} parent=0 // pred_check_branch
    %16 = sbr.rel (0) target = $region17
  $region16: #{_lambda_.21} parent=0 // pred_region
    _
  $region17: #{_lambda_.21} parent=0 // pred_fallthru
    _
  %v18 = vld [vmem:[%s0] sm:$0xf]
  %v19 = vpack.c.bf16 %v18, %v18
  %v20 = vld [vmem:[%s1] sm:$0xf]
  %v21 = vld [vmem:[%s1 + $0x4] sm:$0xf]
  %v22 = vld [vmem:[%s1 + $0x8] sm:$0xf]
  %v23 = vld [vmem:[%s1 + $0xc] sm:$0xf]
  %v24 = vld [vmem:[%s2] sm:$0x1]
  %v26 = vlaneseq
  %v27 = vshrl.u32 %v26, 7
  %v28 = vsub.s32 0, %v27
  %v29 = vrot.slane %v24, %v28
  %v35 = vunpack.c.l.b16 %v20
  %v36 = vunpack.c.l.b16 %v21
  %v37 = vunpack.c.l.b16 %v22
  %v38 = vunpack.c.l.b16 %v23
  %v39 = vpack.c.b16 %v36, %v35
  %v40 = vpack.c.b16 %v38, %v37
  %vm43 = vcmask 261120
  %v45 = vsel %vm43, %v19, 0
  %47 = vmatprep.subr.bf16.mxu0 0
  %48 = vmatpush1.bf16.msra.mxu0 %v39
  %49 = vmatprep.subr.bf16.mxu0 0
  %50 = vmatpush1.bf16.msra.mxu0 %v40
  %51 = vmatprep.subr.bf16.mxu0 0
  %52 = vmatpush1.bf16.msra.mxu0 0
  %53 = vmatprep.subr.bf16.mxu0 0
  %54 = vmatpush1.bf16.msra.mxu0 0
  %55 = vmatprep.subr.bf16.mxu0 0
  %56 = vmatpush1.bf16.msra.mxu0 0
  %57 = vmatprep.subr.bf16.mxu0 0
  %58 = vmatpush1.bf16.msra.mxu0 0
  %59 = vmatprep.subr.bf16.mxu0 0
  %60 = vmatpush1.bf16.msra.mxu0 0
  %61 = vmatprep.subr.bf16.mxu0 0
  %62 = vmatpush1.bf16.msra.mxu0 0
  %63 = vmatprep.subr.bf16.mxu0 0
  %64 = vmatpush1.bf16.msra.mxu0 0
  %65 = vmatprep.subr.bf16.mxu0 0
  %66 = vmatpush1.bf16.msra.mxu0 0
  %67 = vmatprep.subr.bf16.mxu0 0
  %68 = vmatpush1.bf16.msra.mxu0 0
  %69 = vmatprep.subr.bf16.mxu0 0
  %70 = vmatpush1.bf16.msra.mxu0 0
  %71 = vmatprep.subr.bf16.mxu0 0
  %72 = vmatpush1.bf16.msra.mxu0 0
  %73 = vmatprep.subr.bf16.mxu0 0
  %74 = vmatpush1.bf16.msra.mxu0 0
  %75 = vmatprep.subr.bf16.mxu0 0
  %76 = vmatpush1.bf16.msra.mxu0 0
  %77 = vmatprep.subr.bf16.mxu0 0
  %78 = vmatpush1.bf16.msra.mxu0 0
  %79 = vmatprep.mubr.bf16.mxu0 0
  %80 = vmatmul.mubr.bf16.gmra.mrb[0].mxu0 %v45
  %v81 = vpop.f32.mrb[0].mxu0
  %v82 = vadd.f32 %v29, %v81
  %v83 = vpop.f32.mrb[0].mxu0
  %v84 = vpop.f32.mrb[0].mxu0
  %v85 = vpop.f32.mrb[0].mxu0
  %86 = vdwg.mxu0
  %v87 = vld [vmem:[%s3] sm:$0xf]
  %v88 = vadd.f32 %v82, %v87
  %vm89 = vcmask 257024
  %90 = vst.msk [vmem:[%s4] sm:$0xf] %vm89, %v88
  // Predicated region
  $region18: #{_lambda_.21} parent=0 // pred_check
    _
  $region19: #{_lambda_.21} parent=0 // pred_check_branch
    %92 = sbr.rel (0) target = $region21
  $region20: #{_lambda_.21} parent=0 // pred_region
    _
  $region21: #{_lambda_.21} parent=0 // pred_fallthru
    _
  // Predicated region
  $region22: #{_lambda_.21} parent=0 // pred_check
    _
  $region23: #{_lambda_.21} parent=0 // pred_check_branch
    %94 = sbr.rel (0) target = $region25
  $region24: #{_lambda_.21} parent=0 // pred_region
    _
  $region25: #{_lambda_.21} parent=0 // pred_fallthru
    _

// kernel: _lambda_.24
$region0: #{_lambda_.24}
  #allocation0 [shape = 'u32[]', space=smem, size = 0x4, offset = 0x4, fixed_abs, tag = 'smem constant byte address 0x4 - core index']
  #allocation1 [shape = 'u32[144,128]{1,0:T(1,128)}', space=vmem, size = 0x12000, scoped, tag = 'internal scratch']
  %s0 = inlined_call_operand.vmem [shape: f32[36,32], index: 0, kind: input, shape index: {}]
  %s1 = inlined_call_operand.vmem [shape: bf16[32,32], index: 1, kind: input, shape index: {}]
  %s2 = inlined_call_operand.vmem [shape: f32[1,32], index: 2, kind: input, shape index: {}]
  %s3 = inlined_call_operand.vmem [shape: f32[36,32], index: 3, kind: input, shape index: {}, may-alias: {3,4}]
  %s4 = inlined_call_operand.vmem [shape: f32[36,32], index: 4, kind: output, shape index: {}, may-alias: {3,4}]
  %s5 = sld [smem:[#allocation0]]
  $region26: #{_lambda_.24} parent=0
    _
  %s7 = ssub.s32 1, %s5
  %s8 = scalar_select 0, %s7, %s5
  // Predicated region
  $region2: #{_lambda_.24} parent=0 // pred_check
    _
  $region3: #{_lambda_.24} parent=0 // pred_check_branch
    %10 = sbr.rel (0) target = $region5
  $region4: #{_lambda_.24} parent=0 // pred_region
    _
  $region5: #{_lambda_.24} parent=0 // pred_fallthru
    _
  // Predicated region
  $region6: #{_lambda_.24} parent=0 // pred_check
    _
  $region7: #{_lambda_.24} parent=0 // pred_check_branch
    %12 = sbr.rel (0) target = $region9
  $region8: #{_lambda_.24} parent=0 // pred_region
    _
  $region9: #{_lambda_.24} parent=0 // pred_fallthru
    _
  // Predicated region
  $region10: #{_lambda_.24} parent=0 // pred_check
    _
  $region11: #{_lambda_.24} parent=0 // pred_check_branch
    %14 = sbr.rel (0) target = $region13
  $region12: #{_lambda_.24} parent=0 // pred_region
    _
  $region13: #{_lambda_.24} parent=0 // pred_fallthru
    _
  // Predicated region
  $region14: #{_lambda_.24} parent=0 // pred_check
    _
  $region15: #{_lambda_.24} parent=0 // pred_check_branch
    %16 = sbr.rel (0) target = $region17
  $region16: #{_lambda_.24} parent=0 // pred_region
    _
  $region17: #{_lambda_.24} parent=0 // pred_fallthru
    _
  %v18 = vld [vmem:[%s0] sm:$0xff]
  %v19 = vld [vmem:[%s0 + $0x8] sm:$0xff]
  %v20 = vld [vmem:[%s0 + $0x10] sm:$0xff]
  %v21 = vld [vmem:[%s0 + $0x18] sm:$0xff]
  %v22 = vld [vmem:[%s0 + $0x20] sm:$0xf]
  %v23 = vpack.c.bf16 %v19, %v18
  %v24 = vpack.c.bf16 %v21, %v20
  %v25 = vpack.c.bf16 %v22, %v22
  %v26 = vld [vmem:[%s1] sm:$0xf]
  %v27 = vld [vmem:[%s1 + $0x4] sm:$0xf]
  %v28 = vld [vmem:[%s1 + $0x8] sm:$0xf]
  %v29 = vld [vmem:[%s1 + $0xc] sm:$0xf]
  %v30 = vld [vmem:[%s2] sm:$0x1]
  %v32 = vlaneseq
  %v33 = vshrl.u32 %v32, 7
  %v34 = vsub.s32 0, %v33
  %v35 = vrot.slane %v30, %v34
  %v41 = vunpack.c.l.b16 %v26
  %v42 = vunpack.c.l.b16 %v27
  %v43 = vunpack.c.l.b16 %v28
  %v44 = vunpack.c.l.b16 %v29
  %v45 = vpack.c.b16 %v42, %v41
  %v46 = vpack.c.b16 %v44, %v43
  %vm49 = vcmask 261120
  %v51 = vsel %vm49, %v23, 0
  %v54 = vsel %vm49, %v24, 0
  %v57 = vsel %vm49, %v25, 0
  %59 = vmatprep.subr.bf16.mxu0 0
  %60 = vmatpush1.bf16.msra.mxu0 %v45
  %61 = vmatprep.subr.bf16.mxu0 0
  %62 = vmatpush1.bf16.msra.mxu0 %v46
  %63 = vmatprep.subr.bf16.mxu0 0
  %64 = vmatpush1.bf16.msra.mxu0 0
  %65 = vmatprep.subr.bf16.mxu0 0
  %66 = vmatpush1.bf16.msra.mxu0 0
  %67 = vmatprep.subr.bf16.mxu0 0
  %68 = vmatpush1.bf16.msra.mxu0 0
  %69 = vmatprep.subr.bf16.mxu0 0
  %70 = vmatpush1.bf16.msra.mxu0 0
  %71 = vmatprep.subr.bf16.mxu0 0
  %72 = vmatpush1.bf16.msra.mxu0 0
  %73 = vmatprep.subr.bf16.mxu0 0
  %74 = vmatpush1.bf16.msra.mxu0 0
  %75 = vmatprep.subr.bf16.mxu0 0
  %76 = vmatpush1.bf16.msra.mxu0 0
  %77 = vmatprep.subr.bf16.mxu0 0
  %78 = vmatpush1.bf16.msra.mxu0 0
  %79 = vmatprep.subr.bf16.mxu0 0
  %80 = vmatpush1.bf16.msra.mxu0 0
  %81 = vmatprep.subr.bf16.mxu0 0
  %82 = vmatpush1.bf16.msra.mxu0 0
  %83 = vmatprep.subr.bf16.mxu0 0
  %84 = vmatpush1.bf16.msra.mxu0 0
  %85 = vmatprep.subr.bf16.mxu0 0
  %86 = vmatpush1.bf16.msra.mxu0 0
  %87 = vmatprep.subr.bf16.mxu0 0
  %88 = vmatpush1.bf16.msra.mxu0 0
  %89 = vmatprep.subr.bf16.mxu0 0
  %90 = vmatpush1.bf16.msra.mxu0 0
  %91 = vmatprep.mubr.bf16.mxu0 0
  %92 = vmatmul.mubr.bf16.gmra.mrb[0].mxu0 %v51
  %v93 = vpop.f32.mrb[0].mxu0
  %v94 = vadd.f32 %v35, %v93
  %v95 = vpop.f32.mrb[0].mxu0
  %v96 = vpop.f32.mrb[0].mxu0
  %v97 = vadd.f32 %v35, %v96
  %v98 = vpop.f32.mrb[0].mxu0
  %99 = vmatprep.mubr.bf16.mxu0 0
  %100 = vmatmul.mubr.bf16.gmra.mrb[0].mxu0 %v54
  %v101 = vpop.f32.mrb[0].mxu0
  %v102 = vadd.f32 %v35, %v101
  %v103 = vpop.f32.mrb[0].mxu0
  %v104 = vpop.f32.mrb[0].mxu0
  %v105 = vadd.f32 %v35, %v104
  %v106 = vpop.f32.mrb[0].mxu0
  %107 = vmatprep.mubr.bf16.mxu0 0
  %108 = vmatmul.mubr.bf16.gmra.mrb[0].mxu0 %v57
  %v109 = vpop.f32.mrb[0].mxu0
  %v110 = vadd.f32 %v35, %v109
  %v111 = vpop.f32.mrb[0].mxu0
  %v112 = vpop.f32.mrb[0].mxu0
  %v113 = vpop.f32.mrb[0].mxu0
  %114 = vdwg.mxu0
  %v115 = vld [vmem:[%s3] sm:$0xff]
  %v116 = vld [vmem:[%s3 + $0x8] sm:$0xff]
  %v117 = vld [vmem:[%s3 + $0x10] sm:$0xff]
  %v118 = vld [vmem:[%s3 + $0x18] sm:$0xff]
  %v119 = vld [vmem:[%s3 + $0x20] sm:$0xf]
  %v120 = vadd.f32 %v94, %v115
  %v121 = vadd.f32 %v97, %v116
  %v122 = vadd.f32 %v102, %v117
  %v123 = vadd.f32 %v105, %v118
  %v124 = vadd.f32 %v110, %v119
  %125 = vst.msk [vmem:[%s4] sm:$0xff] %vm49, %v120
  %126 = vst.msk [vmem:[%s4 + $0x8] sm:$0xff] %vm49, %v121
  %127 = vst.msk [vmem:[%s4 + $0x10] sm:$0xff] %vm49, %v122
  %128 = vst.msk [vmem:[%s4 + $0x18] sm:$0xff] %vm49, %v123
  %vm129 = vcmask 257024
  %130 = vst.msk [vmem:[%s4 + $0x20] sm:$0xf] %vm129, %v124
  // Predicated region
  $region18: #{_lambda_.24} parent=0 // pred_check
    _
  $region19: #{_lambda_.24} parent=0 // pred_check_branch
    %132 = sbr.rel (0) target = $region21
  $region20: #{_lambda_.24} parent=0 // pred_region
    _
  $region21: #{_lambda_.24} parent=0 // pred_fallthru
    _
  // Predicated region
  $region22: #{_lambda_.24} parent=0 // pred_check
    _
  $region23: #{_lambda_.24} parent=0 // pred_check_branch
    %134 = sbr.rel (0) target = $region25
  $region24: #{_lambda_.24} parent=0 // pred_region
    _
  $region25: #{_lambda_.24} parent=0 // pred_fallthru
    _

// kernel: _lambda_.22
$region0: #{_lambda_.22}
  #allocation0 [shape = 'u32[]', space=smem, size = 0x4, offset = 0x4, fixed_abs, tag = 'smem constant byte address 0x4 - core index']
  #allocation1 [shape = 'u32[144,128]{1,0:T(1,128)}', space=vmem, size = 0x12000, scoped, tag = 'internal scratch']
  %s0 = inlined_call_operand.vmem [shape: f32[36,32], index: 0, kind: input, shape index: {}]
  %s1 = inlined_call_operand.vmem [shape: f32[1,32], index: 1, kind: input, shape index: {}]
  %s2 = inlined_call_operand.vmem [shape: f32[1,32], index: 2, kind: input, shape index: {}]
  %s3 = inlined_call_operand.vmem [shape: bf16[32,96], index: 3, kind: input, shape index: {}]
  %s4 = inlined_call_operand.vmem [shape: f32[1,96], index: 4, kind: input, shape index: {}]
  %s5 = inlined_call_operand.vmem [shape: f32[36,96], index: 5, kind: output, shape index: {}]
  %s6 = sld [smem:[#allocation0]]
  $region30: #{_lambda_.22} parent=0
    _
  %s8 = ssub.s32 1, %s6
  %s9 = scalar_select 0, %s8, %s6
  // Predicated region
  $region2: #{_lambda_.22} parent=0 // pred_check
    _
  $region3: #{_lambda_.22} parent=0 // pred_check_branch
    %11 = sbr.rel (0) target = $region5
  $region4: #{_lambda_.22} parent=0 // pred_region
    _
  $region5: #{_lambda_.22} parent=0 // pred_fallthru
    _
  // Predicated region
  $region6: #{_lambda_.22} parent=0 // pred_check
    _
  $region7: #{_lambda_.22} parent=0 // pred_check_branch
    %13 = sbr.rel (0) target = $region9
  $region8: #{_lambda_.22} parent=0 // pred_region
    _
  $region9: #{_lambda_.22} parent=0 // pred_fallthru
    _
  // Predicated region
  $region10: #{_lambda_.22} parent=0 // pred_check
    _
  $region11: #{_lambda_.22} parent=0 // pred_check_branch
    %15 = sbr.rel (0) target = $region13
  $region12: #{_lambda_.22} parent=0 // pred_region
    _
  $region13: #{_lambda_.22} parent=0 // pred_fallthru
    _
  // Predicated region
  $region14: #{_lambda_.22} parent=0 // pred_check
    _
  $region15: #{_lambda_.22} parent=0 // pred_check_branch
    %17 = sbr.rel (0) target = $region17
  $region16: #{_lambda_.22} parent=0 // pred_region
    _
  $region17: #{_lambda_.22} parent=0 // pred_fallthru
    _
  // Predicated region
  $region18: #{_lambda_.22} parent=0 // pred_check
    _
  $region19: #{_lambda_.22} parent=0 // pred_check_branch
    %19 = sbr.rel (0) target = $region21
  $region20: #{_lambda_.22} parent=0 // pred_region
    _
  $region21: #{_lambda_.22} parent=0 // pred_fallthru
    _
  %v21 = vld [vmem:[%s0] sm:$0xff]
  %v22 = vld [vmem:[%s0 + $0x8] sm:$0xff]
  %v23 = vld [vmem:[%s0 + $0x10] sm:$0xff]
  %v24 = vld [vmem:[%s0 + $0x18] sm:$0xff]
  %v25 = vld [vmem:[%s0 + $0x20] sm:$0xf]
  %vm26 = vcmask 261120
  %v27 = vsel %vm26, %v21, 0.0
  %28 = vadd.xlane.f32.xlu0 %v27
  %v29 = vpop.xlane.xlu0 %28
  %v30 = vsel %vm26, %v22, 0.0
  %31 = vadd.xlane.f32.xlu0 %v30
  %v32 = vpop.xlane.xlu0 %31
  %v33 = vsel %vm26, %v23, 0.0
  %34 = vadd.xlane.f32.xlu0 %v33
  %v35 = vpop.xlane.xlu0 %34
  %v36 = vsel %vm26, %v24, 0.0
  %37 = vadd.xlane.f32.xlu0 %v36
  %v38 = vpop.xlane.xlu0 %37
  %vm39 = vcmask 257024
  %v40 = vsel %vm39, %v25, 0.0
  %41 = vadd.xlane.f32.xlu0 %v40
  %v42 = vpop.xlane.xlu0 %41
  %v43 = vrcp.pop 32.0
  %v44 = vmul.f32 %v29, %v43
  %v45 = vmul.f32 %v32, %v43
  %v46 = vmul.f32 %v35, %v43
  %v47 = vmul.f32 %v38, %v43
  %v48 = vmul.f32 %v42, %v43
  %v49 = vsub.f32 %v21, %v44
  %v50 = vsub.f32 %v22, %v45
  %v51 = vsub.f32 %v23, %v46
  %v52 = vsub.f32 %v24, %v47
  %v53 = vsub.f32 %v25, %v48
  %v54 = vmul.f32 %v49, %v49
  %v55 = vmul.f32 %v50, %v50
  %v56 = vmul.f32 %v51, %v51
  %v57 = vmul.f32 %v52, %v52
  %v58 = vmul.f32 %v53, %v53
  %v59 = vsel %vm26, %v54, 0.0
  %60 = vadd.xlane.f32.xlu0 %v59
  %v61 = vpop.xlane.xlu0 %60
  %v62 = vsel %vm26, %v55, 0.0
  %63 = vadd.xlane.f32.xlu0 %v62
  %v64 = vpop.xlane.xlu0 %63
  %v65 = vsel %vm26, %v56, 0.0
  %66 = vadd.xlane.f32.xlu0 %v65
  %v67 = vpop.xlane.xlu0 %66
  %v68 = vsel %vm26, %v57, 0.0
  %69 = vadd.xlane.f32.xlu0 %v68
  %v70 = vpop.xlane.xlu0 %69
  %v71 = vsel %vm39, %v58, 0.0
  %72 = vadd.xlane.f32.xlu0 %v71
  %v73 = vpop.xlane.xlu0 %72
  %v74 = vmul.f32 %v61, %v43
  %v75 = vmul.f32 %v64, %v43
  %v76 = vmul.f32 %v67, %v43
  %v77 = vmul.f32 %v70, %v43
  %v78 = vmul.f32 %v73, %v43
  %v79 = vadd.f32 %v74, 1e-05
  %v80 = vadd.f32 %v75, 1e-05
  %v81 = vadd.f32 %v76, 1e-05
  %v82 = vadd.f32 %v77, 1e-05
  %v83 = vadd.f32 %v78, 1e-05
  %v84 = vrsqrt.pop %v79
  %v85 = vrsqrt.pop %v80
  %v86 = vrsqrt.pop %v81
  %v87 = vrsqrt.pop %v82
  %v88 = vrsqrt.pop %v83
  %v89 = vmul.f32 %v49, %v84
  %v90 = vmul.f32 %v50, %v85
  %v91 = vmul.f32 %v51, %v86
  %v92 = vmul.f32 %v52, %v87
  %v93 = vmul.f32 %v53, %v88
  %v94 = vld [vmem:[%s1] sm:$0x1]
  %v96 = vlaneseq
  %v97 = vshrl.u32 %v96, 7
  %v98 = vsub.s32 0, %v97
  %v99 = vrot.slane %v94, %v98
  %v101 = vmul.f32 %v89, %v99
  %v102 = vmul.f32 %v90, %v99
  %v103 = vmul.f32 %v91, %v99
  %v104 = vmul.f32 %v92, %v99
  %v105 = vmul.f32 %v93, %v99
  %v106 = vld [vmem:[%s2] sm:$0x1]
  %v108 = vlaneseq
  %v109 = vshrl.u32 %v108, 7
  %v110 = vsub.s32 0, %v109
  %v111 = vrot.slane %v106, %v110
  %v113 = vadd.f32 %v101, %v111
  %v114 = vadd.f32 %v102, %v111
  %v115 = vadd.f32 %v103, %v111
  %v116 = vadd.f32 %v104, %v111
  %v117 = vadd.f32 %v105, %v111
  %v118 = vpack.c.bf16 %v114, %v113
  %v119 = vpack.c.bf16 %v116, %v115
  %v120 = vpack.c.bf16 %v117, %v117
  %v121 = vld [vmem:[%s3] sm:$0xf]
  %v122 = vld [vmem:[%s3 + $0x4] sm:$0xf]
  %v123 = vld [vmem:[%s3 + $0x8] sm:$0xf]
  %v124 = vld [vmem:[%s3 + $0xc] sm:$0xf]
  %v125 = vld [vmem:[%s4] sm:$0x1]
  %v127 = vlaneseq
  %v128 = vshrl.u32 %v127, 7
  %v129 = vsub.s32 0, %v128
  %v130 = vrot.slane %v125, %v129
  %v136 = vunpack.c.l.b16 %v121
  %v137 = vunpack.c.l.b16 %v122
  %v138 = vunpack.c.l.b16 %v123
  %v139 = vunpack.c.l.b16 %v124
  %v140 = vpack.c.b16 %v137, %v136
  %v141 = vpack.c.b16 %v139, %v138
  %v145 = vsel %vm26, %v118, 0
  %v148 = vsel %vm26, %v119, 0
  %v151 = vsel %vm26, %v120, 0
  %153 = vmatprep.subr.bf16.mxu0 0
  %154 = vmatpush1.bf16.msra.mxu0 %v140
  %155 = vmatprep.subr.bf16.mxu0 0
  %156 = vmatpush1.bf16.msra.mxu0 %v141
  %157 = vmatprep.subr.bf16.mxu0 0
  %158 = vmatpush1.bf16.msra.mxu0 0
  %159 = vmatprep.subr.bf16.mxu0 0
  %160 = vmatpush1.bf16.msra.mxu0 0
  %161 = vmatprep.subr.bf16.mxu0 0
  %162 = vmatpush1.bf16.msra.mxu0 0
  %163 = vmatprep.subr.bf16.mxu0 0
  %164 = vmatpush1.bf16.msra.mxu0 0
  %165 = vmatprep.subr.bf16.mxu0 0
  %166 = vmatpush1.bf16.msra.mxu0 0
  %167 = vmatprep.subr.bf16.mxu0 0
  %168 = vmatpush1.bf16.msra.mxu0 0
  %169 = vmatprep.subr.bf16.mxu0 0
  %170 = vmatpush1.bf16.msra.mxu0 0
  %171 = vmatprep.subr.bf16.mxu0 0
  %172 = vmatpush1.bf16.msra.mxu0 0
  %173 = vmatprep.subr.bf16.mxu0 0
  %174 = vmatpush1.bf16.msra.mxu0 0
  %175 = vmatprep.subr.bf16.mxu0 0
  %176 = vmatpush1.bf16.msra.mxu0 0
  %177 = vmatprep.subr.bf16.mxu0 0
  %178 = vmatpush1.bf16.msra.mxu0 0
  %179 = vmatprep.subr.bf16.mxu0 0
  %180 = vmatpush1.bf16.msra.mxu0 0
  %181 = vmatprep.subr.bf16.mxu0 0
  %182 = vmatpush1.bf16.msra.mxu0 0
  %183 = vmatprep.subr.bf16.mxu0 0
  %184 = vmatpush1.bf16.msra.mxu0 0
  %185 = vmatprep.mubr.bf16.mxu0 0
  %186 = vmatmul.mubr.bf16.gmra.mrb[0].mxu0 %v145
  %v187 = vpop.f32.mrb[0].mxu0
  %v188 = vadd.f32 %v130, %v187
  %v189 = vpop.f32.mrb[0].mxu0
  %v190 = vpop.f32.mrb[0].mxu0
  %v191 = vadd.f32 %v130, %v190
  %v192 = vpop.f32.mrb[0].mxu0
  %193 = vmatprep.mubr.bf16.mxu0 0
  %194 = vmatmul.mubr.bf16.gmra.mrb[0].mxu0 %v148
  %v195 = vpop.f32.mrb[0].mxu0
  %v196 = vadd.f32 %v130, %v195
  %v197 = vpop.f32.mrb[0].mxu0
  %v198 = vpop.f32.mrb[0].mxu0
  %v199 = vadd.f32 %v130, %v198
  %v200 = vpop.f32.mrb[0].mxu0
  %201 = vmatprep.mubr.bf16.mxu0 0
  %202 = vmatmul.mubr.bf16.gmra.mrb[0].mxu0 %v151
  %v203 = vpop.f32.mrb[0].mxu0
  %v204 = vadd.f32 %v130, %v203
  %v205 = vpop.f32.mrb[0].mxu0
  %v206 = vpop.f32.mrb[0].mxu0
  %v207 = vpop.f32.mrb[0].mxu0
  %208 = vdwg.mxu0
  %vm209 = vcmask 785408
  %210 = vst.msk [vmem:[%s5] sm:$0xff] %vm209, %v188
  %211 = vst.msk [vmem:[%s5 + $0x8] sm:$0xff] %vm209, %v191
  %212 = vst.msk [vmem:[%s5 + $0x10] sm:$0xff] %vm209, %v196
  %213 = vst.msk [vmem:[%s5 + $0x18] sm:$0xff] %vm209, %v199
  %vm214 = vcmask 781312
  %215 = vst.msk [vmem:[%s5 + $0x20] sm:$0xf] %vm214, %v204
  // Predicated region
  $region22: #{_lambda_.22} parent=0 // pred_check
    _
  $region23: #{_lambda_.22} parent=0 // pred_check_branch
    %217 = sbr.rel (0) target = $region25
  $region24: #{_lambda_.22} parent=0 // pred_region
    _
  $region25: #{_lambda_.22} parent=0 // pred_fallthru
    _
  // Predicated region
  $region26: #{_lambda_.22} parent=0 // pred_check
    _
  $region27: #{_lambda_.22} parent=0 // pred_check_branch
    %219 = sbr.rel (0) target = $region29
  $region28: #{_lambda_.22} parent=0 // pred_region
    _
  $region29: #{_lambda_.22} parent=0 // pred_fallthru
    _

// kernel: _lambda_.25
$region0: #{_lambda_.25}
  #allocation0 [shape = 'u32[]', space=smem, size = 0x4, offset = 0x4, fixed_abs, tag = 'smem constant byte address 0x4 - core index']
  #allocation1 [shape = 'u32[144,128]{1,0:T(1,128)}', space=vmem, size = 0x12000, scoped, tag = 'internal scratch']
  %s0 = inlined_call_operand.vmem [shape: f32[32,32], index: 0, kind: input, shape index: {}]
  %s1 = inlined_call_operand.vmem [shape: f32[1,32], index: 1, kind: input, shape index: {}]
  %s2 = inlined_call_operand.vmem [shape: f32[1,32], index: 2, kind: input, shape index: {}]
  %s3 = inlined_call_operand.vmem [shape: bf16[32,128], index: 3, kind: input, shape index: {}]
  %s4 = inlined_call_operand.vmem [shape: f32[1,128], index: 4, kind: input, shape index: {}]
  %s5 = inlined_call_operand.vmem [shape: f32[32,128], index: 5, kind: output, shape index: {}]
  %s6 = sld [smem:[#allocation0]]
  $region30: #{_lambda_.25} parent=0
    _
  %s8 = ssub.s32 1, %s6
  %s9 = scalar_select 0, %s8, %s6
  // Predicated region
  $region2: #{_lambda_.25} parent=0 // pred_check
    _
  $region3: #{_lambda_.25} parent=0 // pred_check_branch
    %11 = sbr.rel (0) target = $region5
  $region4: #{_lambda_.25} parent=0 // pred_region
    _
  $region5: #{_lambda_.25} parent=0 // pred_fallthru
    _
  // Predicated region
  $region6: #{_lambda_.25} parent=0 // pred_check
    _
  $region7: #{_lambda_.25} parent=0 // pred_check_branch
    %13 = sbr.rel (0) target = $region9
  $region8: #{_lambda_.25} parent=0 // pred_region
    _
  $region9: #{_lambda_.25} parent=0 // pred_fallthru
    _
  // Predicated region
  $region10: #{_lambda_.25} parent=0 // pred_check
    _
  $region11: #{_lambda_.25} parent=0 // pred_check_branch
    %15 = sbr.rel (0) target = $region13
  $region12: #{_lambda_.25} parent=0 // pred_region
    _
  $region13: #{_lambda_.25} parent=0 // pred_fallthru
    _
  // Predicated region
  $region14: #{_lambda_.25} parent=0 // pred_check
    _
  $region15: #{_lambda_.25} parent=0 // pred_check_branch
    %17 = sbr.rel (0) target = $region17
  $region16: #{_lambda_.25} parent=0 // pred_region
    _
  $region17: #{_lambda_.25} parent=0 // pred_fallthru
    _
  // Predicated region
  $region18: #{_lambda_.25} parent=0 // pred_check
    _
  $region19: #{_lambda_.25} parent=0 // pred_check_branch
    %19 = sbr.rel (0) target = $region21
  $region20: #{_lambda_.25} parent=0 // pred_region
    _
  $region21: #{_lambda_.25} parent=0 // pred_fallthru
    _
  %v21 = vld [vmem:[%s0] sm:$0xff]
  %v22 = vld [vmem:[%s0 + $0x8] sm:$0xff]
  %v23 = vld [vmem:[%s0 + $0x10] sm:$0xff]
  %v24 = vld [vmem:[%s0 + $0x18] sm:$0xff]
  %vm25 = vcmask 261120
  %v26 = vsel %vm25, %v21, 0.0
  %27 = vadd.xlane.f32.xlu0 %v26
  %v28 = vpop.xlane.xlu0 %27
  %v29 = vsel %vm25, %v22, 0.0
  %30 = vadd.xlane.f32.xlu0 %v29
  %v31 = vpop.xlane.xlu0 %30
  %v32 = vsel %vm25, %v23, 0.0
  %33 = vadd.xlane.f32.xlu0 %v32
  %v34 = vpop.xlane.xlu0 %33
  %v35 = vsel %vm25, %v24, 0.0
  %36 = vadd.xlane.f32.xlu0 %v35
  %v37 = vpop.xlane.xlu0 %36
  %v38 = vrcp.pop 32.0
  %v39 = vmul.f32 %v28, %v38
  %v40 = vmul.f32 %v31, %v38
  %v41 = vmul.f32 %v34, %v38
  %v42 = vmul.f32 %v37, %v38
  %v43 = vsub.f32 %v21, %v39
  %v44 = vsub.f32 %v22, %v40
  %v45 = vsub.f32 %v23, %v41
  %v46 = vsub.f32 %v24, %v42
  %v47 = vmul.f32 %v43, %v43
  %v48 = vmul.f32 %v44, %v44
  %v49 = vmul.f32 %v45, %v45
  %v50 = vmul.f32 %v46, %v46
  %v51 = vsel %vm25, %v47, 0.0
  %52 = vadd.xlane.f32.xlu0 %v51
  %v53 = vpop.xlane.xlu0 %52
  %v54 = vsel %vm25, %v48, 0.0
  %55 = vadd.xlane.f32.xlu0 %v54
  %v56 = vpop.xlane.xlu0 %55
  %v57 = vsel %vm25, %v49, 0.0
  %58 = vadd.xlane.f32.xlu0 %v57
  %v59 = vpop.xlane.xlu0 %58
  %v60 = vsel %vm25, %v50, 0.0
  %61 = vadd.xlane.f32.xlu0 %v60
  %v62 = vpop.xlane.xlu0 %61
  %v63 = vmul.f32 %v53, %v38
  %v64 = vmul.f32 %v56, %v38
  %v65 = vmul.f32 %v59, %v38
  %v66 = vmul.f32 %v62, %v38
  %v67 = vadd.f32 %v63, 1e-05
  %v68 = vadd.f32 %v64, 1e-05
  %v69 = vadd.f32 %v65, 1e-05
  %v70 = vadd.f32 %v66, 1e-05
  %v71 = vrsqrt.pop %v67
  %v72 = vrsqrt.pop %v68
  %v73 = vrsqrt.pop %v69
  %v74 = vrsqrt.pop %v70
  %v75 = vmul.f32 %v43, %v71
  %v76 = vmul.f32 %v44, %v72
  %v77 = vmul.f32 %v45, %v73
  %v78 = vmul.f32 %v46, %v74
  %v79 = vld [vmem:[%s1] sm:$0x1]
  %v81 = vlaneseq
  %v82 = vshrl.u32 %v81, 7
  %v83 = vsub.s32 0, %v82
  %v84 = vrot.slane %v79, %v83
  %v86 = vmul.f32 %v75, %v84
  %v87 = vmul.f32 %v76, %v84
  %v88 = vmul.f32 %v77, %v84
  %v89 = vmul.f32 %v78, %v84
  %v90 = vld [vmem:[%s2] sm:$0x1]
  %v92 = vlaneseq
  %v93 = vshrl.u32 %v92, 7
  %v94 = vsub.s32 0, %v93
  %v95 = vrot.slane %v90, %v94
  %v97 = vadd.f32 %v86, %v95
  %v98 = vadd.f32 %v87, %v95
  %v99 = vadd.f32 %v88, %v95
  %v100 = vadd.f32 %v89, %v95
  %v101 = vpack.c.bf16 %v98, %v97
  %v102 = vpack.c.bf16 %v100, %v99
  %v103 = vld [vmem:[%s3] sm:$0xf]
  %v104 = vld [vmem:[%s3 + $0x4] sm:$0xf]
  %v105 = vld [vmem:[%s3 + $0x8] sm:$0xf]
  %v106 = vld [vmem:[%s3 + $0xc] sm:$0xf]
  %v107 = vld [vmem:[%s4] sm:$0x1]
  %v109 = vlaneseq
  %v110 = vshrl.u32 %v109, 7
  %v111 = vsub.s32 0, %v110
  %v112 = vrot.slane %v107, %v111
  %v118 = vunpack.c.l.b16 %v103
  %v119 = vunpack.c.l.b16 %v104
  %v120 = vunpack.c.l.b16 %v105
  %v121 = vunpack.c.l.b16 %v106
  %v122 = vpack.c.b16 %v119, %v118
  %v123 = vpack.c.b16 %v121, %v120
  %v127 = vsel %vm25, %v101, 0
  %v130 = vsel %vm25, %v102, 0
  %132 = vmatprep.subr.bf16.mxu0 0
  %133 = vmatpush1.bf16.msra.mxu0 %v122
  %134 = vmatprep.subr.bf16.mxu0 0
  %135 = vmatpush1.bf16.msra.mxu0 %v123
  %136 = vmatprep.subr.bf16.mxu0 0
  %137 = vmatpush1.bf16.msra.mxu0 0
  %138 = vmatprep.subr.bf16.mxu0 0
  %139 = vmatpush1.bf16.msra.mxu0 0
  %140 = vmatprep.subr.bf16.mxu0 0
  %141 = vmatpush1.bf16.msra.mxu0 0
  %142 = vmatprep.subr.bf16.mxu0 0
  %143 = vmatpush1.bf16.msra.mxu0 0
  %144 = vmatprep.subr.bf16.mxu0 0
  %145 = vmatpush1.bf16.msra.mxu0 0
  %146 = vmatprep.subr.bf16.mxu0 0
  %147 = vmatpush1.bf16.msra.mxu0 0
  %148 = vmatprep.subr.bf16.mxu0 0
  %149 = vmatpush1.bf16.msra.mxu0 0
  %150 = vmatprep.subr.bf16.mxu0 0
  %151 = vmatpush1.bf16.msra.mxu0 0
  %152 = vmatprep.subr.bf16.mxu0 0
  %153 = vmatpush1.bf16.msra.mxu0 0
  %154 = vmatprep.subr.bf16.mxu0 0
  %155 = vmatpush1.bf16.msra.mxu0 0
  %156 = vmatprep.subr.bf16.mxu0 0
  %157 = vmatpush1.bf16.msra.mxu0 0
  %158 = vmatprep.subr.bf16.mxu0 0
  %159 = vmatpush1.bf16.msra.mxu0 0
  %160 = vmatprep.subr.bf16.mxu0 0
  %161 = vmatpush1.bf16.msra.mxu0 0
  %162 = vmatprep.subr.bf16.mxu0 0
  %163 = vmatpush1.bf16.msra.mxu0 0
  %164 = vmatprep.mubr.bf16.mxu0 0
  %165 = vmatmul.mubr.bf16.gmra.mrb[0].mxu0 %v127
  %v166 = vpop.f32.mrb[0].mxu0
  %v167 = vadd.f32 %v112, %v166
  %v168 = vpop.f32.mrb[0].mxu0
  %v169 = vpop.f32.mrb[0].mxu0
  %v170 = vadd.f32 %v112, %v169
  %v171 = vpop.f32.mrb[0].mxu0
  %172 = vmatprep.mubr.bf16.mxu0 0
  %173 = vmatmul.mubr.bf16.gmra.mrb[0].mxu0 %v130
  %v174 = vpop.f32.mrb[0].mxu0
  %v175 = vadd.f32 %v112, %v174
  %v176 = vpop.f32.mrb[0].mxu0
  %v177 = vpop.f32.mrb[0].mxu0
  %v178 = vadd.f32 %v112, %v177
  %v179 = vpop.f32.mrb[0].mxu0
  %180 = vdwg.mxu0
  %v181 = vmul.f32 %v167, -1.702
  %v182 = vmul.f32 %v170, -1.702
  %v183 = vmul.f32 %v175, -1.702
  %v184 = vmul.f32 %v178, -1.702
  %v185 = vmul.f32 %v181, 1.442695
  %v186 = vpow.pop %v185
  %v187 = vmul.f32 %v182, 1.442695
  %v188 = vpow.pop %v187
  %v189 = vmul.f32 %v183, 1.442695
  %v190 = vpow.pop %v189
  %v191 = vmul.f32 %v184, 1.442695
  %v192 = vpow.pop %v191
  %v193 = vadd.f32 %v186, 1.0
  %v194 = vadd.f32 %v188, 1.0
  %v195 = vadd.f32 %v190, 1.0
  %v196 = vadd.f32 %v192, 1.0
  %v197 = vrcp.pop %v193
  %v198 = vmul.f32 1.0, %v197
  %v199 = vrcp.pop %v194
  %v200 = vmul.f32 1.0, %v199
  %v201 = vrcp.pop %v195
  %v202 = vmul.f32 1.0, %v201
  %v203 = vrcp.pop %v196
  %v204 = vmul.f32 1.0, %v203
  %v205 = vmul.f32 %v167, %v198
  %v206 = vmul.f32 %v170, %v200
  %v207 = vmul.f32 %v175, %v202
  %v208 = vmul.f32 %v178, %v204
  %209 = vst [vmem:[%s5] sm:$0xff] %v205
  %210 = vst [vmem:[%s5 + $0x8] sm:$0xff] %v206
  %211 = vst [vmem:[%s5 + $0x10] sm:$0xff] %v207
  %212 = vst [vmem:[%s5 + $0x18] sm:$0xff] %v208
  // Predicated region
  $region22: #{_lambda_.25} parent=0 // pred_check
    _
  $region23: #{_lambda_.25} parent=0 // pred_check_branch
    %214 = sbr.rel (0) target = $region25
  $region24: #{_lambda_.25} parent=0 // pred_region
    _
  $region25: #{_lambda_.25} parent=0 // pred_fallthru
    _
  // Predicated region
  $region26: #{_lambda_.25} parent=0 // pred_check
    _
  $region27: #{_lambda_.25} parent=0 // pred_check_branch
    %216 = sbr.rel (0) target = $region29
  $region28: #{_lambda_.25} parent=0 // pred_region
    _
  $region29: #{_lambda_.25} parent=0 // pred_fallthru
    _

// kernel: _lambda_.26
$region0: #{_lambda_.26}
  #allocation0 [shape = 'u32[]', space=smem, size = 0x4, offset = 0x4, fixed_abs, tag = 'smem constant byte address 0x4 - core index']
  #allocation1 [shape = 'u32[144,128]{1,0:T(1,128)}', space=vmem, size = 0x12000, scoped, tag = 'internal scratch']
  %s0 = inlined_call_operand.vmem [shape: f32[32,128], index: 0, kind: input, shape index: {}]
  %s1 = inlined_call_operand.vmem [shape: bf16[128,32], index: 1, kind: input, shape index: {}]
  %s2 = inlined_call_operand.vmem [shape: f32[1,32], index: 2, kind: input, shape index: {}]
  %s3 = inlined_call_operand.vmem [shape: f32[32,32], index: 3, kind: input, shape index: {}, may-alias: {3,4}]
  %s4 = inlined_call_operand.vmem [shape: f32[32,32], index: 4, kind: output, shape index: {}, may-alias: {3,4}]
  %s5 = sld [smem:[#allocation0]]
  $region26: #{_lambda_.26} parent=0
    _
  %s7 = ssub.s32 1, %s5
  %s8 = scalar_select 0, %s7, %s5
  // Predicated region
  $region2: #{_lambda_.26} parent=0 // pred_check
    _
  $region3: #{_lambda_.26} parent=0 // pred_check_branch
    %10 = sbr.rel (0) target = $region5
  $region4: #{_lambda_.26} parent=0 // pred_region
    _
  $region5: #{_lambda_.26} parent=0 // pred_fallthru
    _
  // Predicated region
  $region6: #{_lambda_.26} parent=0 // pred_check
    _
  $region7: #{_lambda_.26} parent=0 // pred_check_branch
    %12 = sbr.rel (0) target = $region9
  $region8: #{_lambda_.26} parent=0 // pred_region
    _
  $region9: #{_lambda_.26} parent=0 // pred_fallthru
    _
  // Predicated region
  $region10: #{_lambda_.26} parent=0 // pred_check
    _
  $region11: #{_lambda_.26} parent=0 // pred_check_branch
    %14 = sbr.rel (0) target = $region13
  $region12: #{_lambda_.26} parent=0 // pred_region
    _
  $region13: #{_lambda_.26} parent=0 // pred_fallthru
    _
  // Predicated region
  $region14: #{_lambda_.26} parent=0 // pred_check
    _
  $region15: #{_lambda_.26} parent=0 // pred_check_branch
    %16 = sbr.rel (0) target = $region17
  $region16: #{_lambda_.26} parent=0 // pred_region
    _
  $region17: #{_lambda_.26} parent=0 // pred_fallthru
    _
  %v18 = vld [vmem:[%s0] sm:$0xff]
  %v19 = vld [vmem:[%s0 + $0x8] sm:$0xff]
  %v20 = vld [vmem:[%s0 + $0x10] sm:$0xff]
  %v21 = vld [vmem:[%s0 + $0x18] sm:$0xff]
  %v22 = vpack.c.bf16 %v19, %v18
  %v23 = vpack.c.bf16 %v21, %v20
  %v24 = vld [vmem:[%s1] sm:$0xf]
  %v25 = vld [vmem:[%s1 + $0x4] sm:$0xf]
  %v26 = vld [vmem:[%s1 + $0x8] sm:$0xf]
  %v27 = vld [vmem:[%s1 + $0xc] sm:$0xf]
  %v28 = vld [vmem:[%s1 + $0x10] sm:$0xf]
  %v29 = vld [vmem:[%s1 + $0x14] sm:$0xf]
  %v30 = vld [vmem:[%s1 + $0x18] sm:$0xf]
  %v31 = vld [vmem:[%s1 + $0x1c] sm:$0xf]
  %v32 = vld [vmem:[%s1 + $0x20] sm:$0xf]
  %v33 = vld [vmem:[%s1 + $0x24] sm:$0xf]
  %v34 = vld [vmem:[%s1 + $0x28] sm:$0xf]
  %v35 = vld [vmem:[%s1 + $0x2c] sm:$0xf]
  %v36 = vld [vmem:[%s1 + $0x30] sm:$0xf]
  %v37 = vld [vmem:[%s1 + $0x34] sm:$0xf]
  %v38 = vld [vmem:[%s1 + $0x38] sm:$0xf]
  %v39 = vld [vmem:[%s1 + $0x3c] sm:$0xf]
  %v40 = vld [vmem:[%s2] sm:$0x1]
  %v42 = vlaneseq
  %v43 = vshrl.u32 %v42, 7
  %v44 = vsub.s32 0, %v43
  %v45 = vrot.slane %v40, %v44
  %v63 = vunpack.c.l.b16 %v24
  %v64 = vunpack.c.l.b16 %v25
  %v65 = vunpack.c.l.b16 %v26
  %v66 = vunpack.c.l.b16 %v27
  %v67 = vunpack.c.l.b16 %v28
  %v68 = vunpack.c.l.b16 %v29
  %v69 = vunpack.c.l.b16 %v30
  %v70 = vunpack.c.l.b16 %v31
  %v71 = vunpack.c.l.b16 %v32
  %v72 = vunpack.c.l.b16 %v33
  %v73 = vunpack.c.l.b16 %v34
  %v74 = vunpack.c.l.b16 %v35
  %v75 = vunpack.c.l.b16 %v36
  %v76 = vunpack.c.l.b16 %v37
  %v77 = vunpack.c.l.b16 %v38
  %v78 = vunpack.c.l.b16 %v39
  %v79 = vpack.c.b16 %v64, %v63
  %v80 = vpack.c.b16 %v66, %v65
  %v81 = vpack.c.b16 %v68, %v67
  %v82 = vpack.c.b16 %v70, %v69
  %v83 = vpack.c.b16 %v72, %v71
  %v84 = vpack.c.b16 %v74, %v73
  %v85 = vpack.c.b16 %v76, %v75
  %v86 = vpack.c.b16 %v78, %v77
  %95 = vmatprep.subr.bf16.mxu0 0
  %96 = vmatpush1.bf16.msra.mxu0 %v79
  %97 = vmatprep.subr.bf16.mxu0 0
  %98 = vmatpush1.bf16.msra.mxu0 %v80
  %99 = vmatprep.subr.bf16.mxu0 0
  %100 = vmatpush1.bf16.msra.mxu0 %v81
  %101 = vmatprep.subr.bf16.mxu0 0
  %102 = vmatpush1.bf16.msra.mxu0 %v82
  %103 = vmatprep.subr.bf16.mxu0 0
  %104 = vmatpush1.bf16.msra.mxu0 %v83
  %105 = vmatprep.subr.bf16.mxu0 0
  %106 = vmatpush1.bf16.msra.mxu0 %v84
  %107 = vmatprep.subr.bf16.mxu0 0
  %108 = vmatpush1.bf16.msra.mxu0 %v85
  %109 = vmatprep.subr.bf16.mxu0 0
  %110 = vmatpush1.bf16.msra.mxu0 %v86
  %111 = vmatprep.subr.bf16.mxu0 0
  %112 = vmatpush1.bf16.msra.mxu0 0
  %113 = vmatprep.subr.bf16.mxu0 0
  %114 = vmatpush1.bf16.msra.mxu0 0
  %115 = vmatprep.subr.bf16.mxu0 0
  %116 = vmatpush1.bf16.msra.mxu0 0
  %117 = vmatprep.subr.bf16.mxu0 0
  %118 = vmatpush1.bf16.msra.mxu0 0
  %119 = vmatprep.subr.bf16.mxu0 0
  %120 = vmatpush1.bf16.msra.mxu0 0
  %121 = vmatprep.subr.bf16.mxu0 0
  %122 = vmatpush1.bf16.msra.mxu0 0
  %123 = vmatprep.subr.bf16.mxu0 0
  %124 = vmatpush1.bf16.msra.mxu0 0
  %125 = vmatprep.subr.bf16.mxu0 0
  %126 = vmatpush1.bf16.msra.mxu0 0
  %127 = vmatprep.mubr.bf16.mxu0 0
  %128 = vmatmul.mubr.bf16.gmra.mrb[0].mxu0 %v22
  %v129 = vpop.f32.mrb[0].mxu0
  %v130 = vadd.f32 %v45, %v129
  %v131 = vpop.f32.mrb[0].mxu0
  %v132 = vpop.f32.mrb[0].mxu0
  %v133 = vadd.f32 %v45, %v132
  %v134 = vpop.f32.mrb[0].mxu0
  %135 = vmatprep.mubr.bf16.mxu0 0
  %136 = vmatmul.mubr.bf16.gmra.mrb[0].mxu0 %v23
  %v137 = vpop.f32.mrb[0].mxu0
  %v138 = vadd.f32 %v45, %v137
  %v139 = vpop.f32.mrb[0].mxu0
  %v140 = vpop.f32.mrb[0].mxu0
  %v141 = vadd.f32 %v45, %v140
  %v142 = vpop.f32.mrb[0].mxu0
  %143 = vdwg.mxu0
  %v144 = vld [vmem:[%s3] sm:$0xff]
  %v145 = vld [vmem:[%s3 + $0x8] sm:$0xff]
  %v146 = vld [vmem:[%s3 + $0x10] sm:$0xff]
  %v147 = vld [vmem:[%s3 + $0x18] sm:$0xff]
  %v148 = vadd.f32 %v130, %v144
  %v149 = vadd.f32 %v133, %v145
  %v150 = vadd.f32 %v138, %v146
  %v151 = vadd.f32 %v141, %v147
  %vm152 = vcmask 261120
  %153 = vst.msk [vmem:[%s4] sm:$0xff] %vm152, %v148
  %154 = vst.msk [vmem:[%s4 + $0x8] sm:$0xff] %vm152, %v149
  %155 = vst.msk [vmem:[%s4 + $0x10] sm:$0xff] %vm152, %v150
  %156 = vst.msk [vmem:[%s4 + $0x18] sm:$0xff] %vm152, %v151
  // Predicated region
  $region18: #{_lambda_.26} parent=0 // pred_check
    _
  $region19: #{_lambda_.26} parent=0 // pred_check_branch
    %158 = sbr.rel (0) target = $region21
  $region20: #{_lambda_.26} parent=0 // pred_region
    _
  $region21: #{_lambda_.26} parent=0 // pred_fallthru
    _
  // Predicated region
  $region22: #{_lambda_.26} parent=0 // pred_check
    _
  $region23: #{_lambda_.26} parent=0 // pred_check_branch
    %160 = sbr.rel (0) target = $region25
  $region24: #{_lambda_.26} parent=0 // pred_region
    _
  $region25: #{_lambda_.26} parent=0 // pred_fallthru
    _

// kernel: _lambda_.23
$region0: #{_lambda_.23}
  #allocation0 [shape = 'u32[]', space=smem, size = 0x4, offset = 0x4, fixed_abs, tag = 'smem constant byte address 0x4 - core index']
  #allocation1 [shape = 'u32[144,128]{1,0:T(1,128)}', space=vmem, size = 0x12000, scoped, tag = 'internal scratch']
  %s0 = inlined_call_operand.vmem [shape: f32[4,9,96], index: 0, kind: input, shape index: {}]
  %s1 = inlined_call_operand.vmem [shape: f32[4,9,32], index: 1, kind: output, shape index: {}]
  %s2 = sld [smem:[#allocation0]]
  $region14: #{_lambda_.23} parent=0
    _
  %s4 = ssub.s32 1, %s2
  %s5 = scalar_select 0, %s4, %s2
  // Predicated region
  $region2: #{_lambda_.23} parent=0 // pred_check
    _
  $region3: #{_lambda_.23} parent=0 // pred_check_branch
    %7 = sbr.rel (0) target = $region5
  $region4: #{_lambda_.23} parent=0 // pred_region
    _
  $region5: #{_lambda_.23} parent=0 // pred_fallthru
    _
  %v9 = vld [vmem:[%s0] sm:$0xff]
  %v10 = vld [vmem:[%s0 + $0x8] sm:$0x1]
  %v11 = vld [vmem:[%s0 + $0x10] sm:$0xff]
  %v12 = vld [vmem:[%s0 + $0x18] sm:$0x1]
  %v13 = vld [vmem:[%s0 + $0x20] sm:$0xff]
  %v14 = vld [vmem:[%s0 + $0x28] sm:$0x1]
  %v15 = vld [vmem:[%s0 + $0x30] sm:$0xff]
  %v16 = vld [vmem:[%s0 + $0x38] sm:$0x1]
  %v17 = vpack.c.bf16 %v10, %v9
  %v18 = vpack.c.bf16 %v12, %v11
  %v19 = vpack.c.bf16 %v14, %v13
  %v20 = vpack.c.bf16 %v16, %v15
  %22 = vrot.lane.b32.xlu0 %v17, 96
  %v23 = vpop.permute.xlu0 %22
  %vm24 = vcmask 64512
  %v26 = vsel %vm24, %v17, 0
  %v29 = vsel %vm24, %v23, 0
  %31 = vmatprep.subr.bf16.mxu0 0
  %32 = vmatpush1.bf16.xpose.msra.mxu0 %v29
  %33 = vmatprep.subr.bf16.mxu0 0
  %34 = vmatpush1.bf16.xpose.msra.mxu0 0
  %35 = vmatprep.subr.bf16.mxu0 0
  %36 = vmatpush1.bf16.xpose.msra.mxu0 0
  %37 = vmatprep.subr.bf16.mxu0 0
  %38 = vmatpush1.bf16.xpose.msra.mxu0 0
  %39 = vmatprep.subr.bf16.mxu0 0
  %40 = vmatpush1.bf16.xpose.msra.mxu0 0
  %41 = vmatprep.subr.bf16.mxu0 0
  %42 = vmatpush1.bf16.xpose.msra.mxu0 0
  %43 = vmatprep.subr.bf16.mxu0 0
  %44 = vmatpush1.bf16.xpose.msra.mxu0 0
  %45 = vmatprep.subr.bf16.mxu0 0
  %46 = vmatpush1.bf16.xpose.msra.mxu0 0
  %47 = vmatprep.subr.bf16.mxu0 0
  %48 = vmatpush1.bf16.xpose.msra.mxu0 0
  %49 = vmatprep.subr.bf16.mxu0 0
  %50 = vmatpush1.bf16.xpose.msra.mxu0 0
  %51 = vmatprep.subr.bf16.mxu0 0
  %52 = vmatpush1.bf16.xpose.msra.mxu0 0
  %53 = vmatprep.subr.bf16.mxu0 0
  %54 = vmatpush1.bf16.xpose.msra.mxu0 0
  %55 = vmatprep.subr.bf16.mxu0 0
  %56 = vmatpush1.bf16.xpose.msra.mxu0 0
  %57 = vmatprep.subr.bf16.mxu0 0
  %58 = vmatpush1.bf16.xpose.msra.mxu0 0
  %59 = vmatprep.subr.bf16.mxu0 0
  %60 = vmatpush1.bf16.xpose.msra.mxu0 0
  %61 = vmatprep.subr.bf16.mxu0 0
  %62 = vmatpush1.bf16.xpose.msra.mxu0 0
  %63 = vmatprep.mubr.bf16.mxu0 0
  %64 = vmatmul.mubr.bf16.gmra.mrb[0].mxu0 %v26
  %v65 = vpop.f32.mrb[0].mxu0
  %v66 = vadd.f32 0.0, %v65
  %v67 = vpop.f32.mrb[0].mxu0
  %v68 = vpop.f32.mrb[0].mxu0
  %v69 = vadd.f32 0.0, %v68
  %v70 = vpop.f32.mrb[0].mxu0
  %71 = vdwg.mxu0
  %73 = vrot.lane.b32.xlu0 %v18, 96
  %v74 = vpop.permute.xlu0 %73
  %v76 = vsel %vm24, %v18, 0
  %v79 = vsel %vm24, %v74, 0
  %81 = vmatprep.subr.bf16.mxu0 0
  %82 = vmatpush1.bf16.xpose.msra.mxu0 %v79
  %83 = vmatprep.subr.bf16.mxu0 0
  %84 = vmatpush1.bf16.xpose.msra.mxu0 0
  %85 = vmatprep.subr.bf16.mxu0 0
  %86 = vmatpush1.bf16.xpose.msra.mxu0 0
  %87 = vmatprep.subr.bf16.mxu0 0
  %88 = vmatpush1.bf16.xpose.msra.mxu0 0
  %89 = vmatprep.subr.bf16.mxu0 0
  %90 = vmatpush1.bf16.xpose.msra.mxu0 0
  %91 = vmatprep.subr.bf16.mxu0 0
  %92 = vmatpush1.bf16.xpose.msra.mxu0 0
  %93 = vmatprep.subr.bf16.mxu0 0
  %94 = vmatpush1.bf16.xpose.msra.mxu0 0
  %95 = vmatprep.subr.bf16.mxu0 0
  %96 = vmatpush1.bf16.xpose.msra.mxu0 0
  %97 = vmatprep.subr.bf16.mxu0 0
  %98 = vmatpush1.bf16.xpose.msra.mxu0 0
  %99 = vmatprep.subr.bf16.mxu0 0
  %100 = vmatpush1.bf16.xpose.msra.mxu0 0
  %101 = vmatprep.subr.bf16.mxu0 0
  %102 = vmatpush1.bf16.xpose.msra.mxu0 0
  %103 = vmatprep.subr.bf16.mxu0 0
  %104 = vmatpush1.bf16.xpose.msra.mxu0 0
  %105 = vmatprep.subr.bf16.mxu0 0
  %106 = vmatpush1.bf16.xpose.msra.mxu0 0
  %107 = vmatprep.subr.bf16.mxu0 0
  %108 = vmatpush1.bf16.xpose.msra.mxu0 0
  %109 = vmatprep.subr.bf16.mxu0 0
  %110 = vmatpush1.bf16.xpose.msra.mxu0 0
  %111 = vmatprep.subr.bf16.mxu0 0
  %112 = vmatpush1.bf16.xpose.msra.mxu0 0
  %113 = vmatprep.mubr.bf16.mxu0 0
  %114 = vmatmul.mubr.bf16.gmra.mrb[0].mxu0 %v76
  %v115 = vpop.f32.mrb[0].mxu0
  %v116 = vadd.f32 0.0, %v115
  %v117 = vpop.f32.mrb[0].mxu0
  %v118 = vpop.f32.mrb[0].mxu0
  %v119 = vadd.f32 0.0, %v118
  %v120 = vpop.f32.mrb[0].mxu0
  %121 = vdwg.mxu0
  %123 = vrot.lane.b32.xlu0 %v19, 96
  %v124 = vpop.permute.xlu0 %123
  %v126 = vsel %vm24, %v19, 0
  %v129 = vsel %vm24, %v124, 0
  %131 = vmatprep.subr.bf16.mxu0 0
  %132 = vmatpush1.bf16.xpose.msra.mxu0 %v129
  %133 = vmatprep.subr.bf16.mxu0 0
  %134 = vmatpush1.bf16.xpose.msra.mxu0 0
  %135 = vmatprep.subr.bf16.mxu0 0
  %136 = vmatpush1.bf16.xpose.msra.mxu0 0
  %137 = vmatprep.subr.bf16.mxu0 0
  %138 = vmatpush1.bf16.xpose.msra.mxu0 0
  %139 = vmatprep.subr.bf16.mxu0 0
  %140 = vmatpush1.bf16.xpose.msra.mxu0 0
  %141 = vmatprep.subr.bf16.mxu0 0
  %142 = vmatpush1.bf16.xpose.msra.mxu0 0
  %143 = vmatprep.subr.bf16.mxu0 0
  %144 = vmatpush1.bf16.xpose.msra.mxu0 0
  %145 = vmatprep.subr.bf16.mxu0 0
  %146 = vmatpush1.bf16.xpose.msra.mxu0 0
  %147 = vmatprep.subr.bf16.mxu0 0
  %148 = vmatpush1.bf16.xpose.msra.mxu0 0
  %149 = vmatprep.subr.bf16.mxu0 0
  %150 = vmatpush1.bf16.xpose.msra.mxu0 0
  %151 = vmatprep.subr.bf16.mxu0 0
  %152 = vmatpush1.bf16.xpose.msra.mxu0 0
  %153 = vmatprep.subr.bf16.mxu0 0
  %154 = vmatpush1.bf16.xpose.msra.mxu0 0
  %155 = vmatprep.subr.bf16.mxu0 0
  %156 = vmatpush1.bf16.xpose.msra.mxu0 0
  %157 = vmatprep.subr.bf16.mxu0 0
  %158 = vmatpush1.bf16.xpose.msra.mxu0 0
  %159 = vmatprep.subr.bf16.mxu0 0
  %160 = vmatpush1.bf16.xpose.msra.mxu0 0
  %161 = vmatprep.subr.bf16.mxu0 0
  %162 = vmatpush1.bf16.xpose.msra.mxu0 0
  %163 = vmatprep.mubr.bf16.mxu0 0
  %164 = vmatmul.mubr.bf16.gmra.mrb[0].mxu0 %v126
  %v165 = vpop.f32.mrb[0].mxu0
  %v166 = vadd.f32 0.0, %v165
  %v167 = vpop.f32.mrb[0].mxu0
  %v168 = vpop.f32.mrb[0].mxu0
  %v169 = vadd.f32 0.0, %v168
  %v170 = vpop.f32.mrb[0].mxu0
  %171 = vdwg.mxu0
  %173 = vrot.lane.b32.xlu0 %v20, 96
  %v174 = vpop.permute.xlu0 %173
  %v176 = vsel %vm24, %v20, 0
  %v179 = vsel %vm24, %v174, 0
  %181 = vmatprep.subr.bf16.mxu0 0
  %182 = vmatpush1.bf16.xpose.msra.mxu0 %v179
  %183 = vmatprep.subr.bf16.mxu0 0
  %184 = vmatpush1.bf16.xpose.msra.mxu0 0
  %185 = vmatprep.subr.bf16.mxu0 0
  %186 = vmatpush1.bf16.xpose.msra.mxu0 0
  %187 = vmatprep.subr.bf16.mxu0 0
  %188 = vmatpush1.bf16.xpose.msra.mxu0 0
  %189 = vmatprep.subr.bf16.mxu0 0
  %190 = vmatpush1.bf16.xpose.msra.mxu0 0
  %191 = vmatprep.subr.bf16.mxu0 0
  %192 = vmatpush1.bf16.xpose.msra.mxu0 0
  %193 = vmatprep.subr.bf16.mxu0 0
  %194 = vmatpush1.bf16.xpose.msra.mxu0 0
  %195 = vmatprep.subr.bf16.mxu0 0
  %196 = vmatpush1.bf16.xpose.msra.mxu0 0
  %197 = vmatprep.subr.bf16.mxu0 0
  %198 = vmatpush1.bf16.xpose.msra.mxu0 0
  %199 = vmatprep.subr.bf16.mxu0 0
  %200 = vmatpush1.bf16.xpose.msra.mxu0 0
  %201 = vmatprep.subr.bf16.mxu0 0
  %202 = vmatpush1.bf16.xpose.msra.mxu0 0
  %203 = vmatprep.subr.bf16.mxu0 0
  %204 = vmatpush1.bf16.xpose.msra.mxu0 0
  %205 = vmatprep.subr.bf16.mxu0 0
  %206 = vmatpush1.bf16.xpose.msra.mxu0 0
  %207 = vmatprep.subr.bf16.mxu0 0
  %208 = vmatpush1.bf16.xpose.msra.mxu0 0
  %209 = vmatprep.subr.bf16.mxu0 0
  %210 = vmatpush1.bf16.xpose.msra.mxu0 0
  %211 = vmatprep.subr.bf16.mxu0 0
  %212 = vmatpush1.bf16.xpose.msra.mxu0 0
  %213 = vmatprep.mubr.bf16.mxu0 0
  %214 = vmatmul.mubr.bf16.gmra.mrb[0].mxu0 %v176
  %v215 = vpop.f32.mrb[0].mxu0
  %v216 = vadd.f32 0.0, %v215
  %v217 = vpop.f32.mrb[0].mxu0
  %v218 = vpop.f32.mrb[0].mxu0
  %v219 = vadd.f32 0.0, %v218
  %v220 = vpop.f32.mrb[0].mxu0
  %221 = vdwg.mxu0
  %v222 = vmul.f32 %v66, 0.35355338
  %v223 = vmul.f32 %v69, 0.35355338
  %v224 = vmul.f32 %v116, 0.35355338
  %v225 = vmul.f32 %v119, 0.35355338
  %v226 = vmul.f32 %v166, 0.35355338
  %v227 = vmul.f32 %v169, 0.35355338
  %v228 = vmul.f32 %v216, 0.35355338
  %v229 = vmul.f32 %v219, 0.35355338
  %vm230 = vcmask 72704
  %v231 = vsel %vm230, %v222, -inf
  %232 = vmax.xlane.f32.xlu0 %v231
  %v233 = vpop.xlane.xlu0 %232
  %vm234 = vcmask 65536
  %v235 = vsel %vm234, %v223, -inf
  %236 = vmax.xlane.f32.xlu0 %v235
  %v237 = vpop.xlane.xlu0 %236
  %v238 = vsel %vm230, %v224, -inf
  %239 = vmax.xlane.f32.xlu0 %v238
  %v240 = vpop.xlane.xlu0 %239
  %v241 = vsel %vm234, %v225, -inf
  %242 = vmax.xlane.f32.xlu0 %v241
  %v243 = vpop.xlane.xlu0 %242
  %v244 = vsel %vm230, %v226, -inf
  %245 = vmax.xlane.f32.xlu0 %v244
  %v246 = vpop.xlane.xlu0 %245
  %v247 = vsel %vm234, %v227, -inf
  %248 = vmax.xlane.f32.xlu0 %v247
  %v249 = vpop.xlane.xlu0 %248
  %v250 = vsel %vm230, %v228, -inf
  %251 = vmax.xlane.f32.xlu0 %v250
  %v252 = vpop.xlane.xlu0 %251
  %v253 = vsel %vm234, %v229, -inf
  %254 = vmax.xlane.f32.xlu0 %v253
  %v255 = vpop.xlane.xlu0 %254
  %v256 = vsub.f32 %v222, %v233
  %v257 = vsub.f32 %v223, %v237
  %v258 = vsub.f32 %v224, %v240
  %v259 = vsub.f32 %v225, %v243
  %v260 = vsub.f32 %v226, %v246
  %v261 = vsub.f32 %v227, %v249
  %v262 = vsub.f32 %v228, %v252
  %v263 = vsub.f32 %v229, %v255
  %v264 = vmul.f32 %v256, 1.442695
  %v265 = vpow.pop %v264
  %v266 = vmul.f32 %v257, 1.442695
  %v267 = vpow.pop %v266
  %v268 = vmul.f32 %v258, 1.442695
  %v269 = vpow.pop %v268
  %v270 = vmul.f32 %v259, 1.442695
  %v271 = vpow.pop %v270
  %v272 = vmul.f32 %v260, 1.442695
  %v273 = vpow.pop %v272
  %v274 = vmul.f32 %v261, 1.442695
  %v275 = vpow.pop %v274
  %v276 = vmul.f32 %v262, 1.442695
  %v277 = vpow.pop %v276
  %v278 = vmul.f32 %v263, 1.442695
  %v279 = vpow.pop %v278
  %v280 = vsel %vm230, %v265, 0.0
  %281 = vadd.xlane.f32.xlu0 %v280
  %v282 = vpop.xlane.xlu0 %281
  %v283 = vsel %vm234, %v267, 0.0
  %284 = vadd.xlane.f32.xlu0 %v283
  %v285 = vpop.xlane.xlu0 %284
  %v286 = vsel %vm230, %v269, 0.0
  %287 = vadd.xlane.f32.xlu0 %v286
  %v288 = vpop.xlane.xlu0 %287
  %v289 = vsel %vm234, %v271, 0.0
  %290 = vadd.xlane.f32.xlu0 %v289
  %v291 = vpop.xlane.xlu0 %290
  %v292 = vsel %vm230, %v273, 0.0
  %293 = vadd.xlane.f32.xlu0 %v292
  %v294 = vpop.xlane.xlu0 %293
  %v295 = vsel %vm234, %v275, 0.0
  %296 = vadd.xlane.f32.xlu0 %v295
  %v297 = vpop.xlane.xlu0 %296
  %v298 = vsel %vm230, %v277, 0.0
  %299 = vadd.xlane.f32.xlu0 %v298
  %v300 = vpop.xlane.xlu0 %299
  %v301 = vsel %vm234, %v279, 0.0
  %302 = vadd.xlane.f32.xlu0 %v301
  %v303 = vpop.xlane.xlu0 %302
  %v304 = vrcp.pop %v282
  %v305 = vrcp.pop %v285
  %v306 = vrcp.pop %v288
  %v307 = vrcp.pop %v291
  %v308 = vrcp.pop %v294
  %v309 = vrcp.pop %v297
  %v310 = vrcp.pop %v300
  %v311 = vrcp.pop %v303
  %v312 = vmul.f32 %v265, %v304
  %v313 = vmul.f32 %v267, %v305
  %v314 = vmul.f32 %v269, %v306
  %v315 = vmul.f32 %v271, %v307
  %v316 = vmul.f32 %v273, %v308
  %v317 = vmul.f32 %v275, %v309
  %v318 = vmul.f32 %v277, %v310
  %v319 = vmul.f32 %v279, %v311
  %v320 = vpack.c.bf16 %v313, %v312
  %v321 = vpack.c.bf16 %v315, %v314
  %v322 = vpack.c.bf16 %v317, %v316
  %v323 = vpack.c.bf16 %v319, %v318
  %324 = vrot.lane.b32.xlu0 %v17, 64
  %v325 = vpop.permute.xlu0 %324
  %v327 = vsel %vm230, %v320, 0
  %vm329 = vcmask 1043456
  %vm330 = vcmask 1044480
  %v331 = vsel %vm329, 4294967295, 65535
  %v332 = vsel %vm330, %v331, 0
  %v334 = vand.u32 %v325, %v332
  %336 = vmatprep.subr.bf16.mxu0 0
  %337 = vmatpush1.bf16.msra.mxu0 %v334
  %338 = vmatprep.subr.bf16.mxu0 0
  %339 = vmatpush1.bf16.msra.mxu0 0
  %340 = vmatprep.subr.bf16.mxu0 0
  %341 = vmatpush1.bf16.msra.mxu0 0
  %342 = vmatprep.subr.bf16.mxu0 0
  %343 = vmatpush1.bf16.msra.mxu0 0
  %344 = vmatprep.subr.bf16.mxu0 0
  %345 = vmatpush1.bf16.msra.mxu0 0
  %346 = vmatprep.subr.bf16.mxu0 0
  %347 = vmatpush1.bf16.msra.mxu0 0
  %348 = vmatprep.subr.bf16.mxu0 0
  %349 = vmatpush1.bf16.msra.mxu0 0
  %350 = vmatprep.subr.bf16.mxu0 0
  %351 = vmatpush1.bf16.msra.mxu0 0
  %352 = vmatprep.subr.bf16.mxu0 0
  %353 = vmatpush1.bf16.msra.mxu0 0
  %354 = vmatprep.subr.bf16.mxu0 0
  %355 = vmatpush1.bf16.msra.mxu0 0
  %356 = vmatprep.subr.bf16.mxu0 0
  %357 = vmatpush1.bf16.msra.mxu0 0
  %358 = vmatprep.subr.bf16.mxu0 0
  %359 = vmatpush1.bf16.msra.mxu0 0
  %360 = vmatprep.subr.bf16.mxu0 0
  %361 = vmatpush1.bf16.msra.mxu0 0
  %362 = vmatprep.subr.bf16.mxu0 0
  %363 = vmatpush1.bf16.msra.mxu0 0
  %364 = vmatprep.subr.bf16.mxu0 0
  %365 = vmatpush1.bf16.msra.mxu0 0
  %366 = vmatprep.subr.bf16.mxu0 0
  %367 = vmatpush1.bf16.msra.mxu0 0
  %368 = vmatprep.mubr.bf16.mxu0 0
  %369 = vmatmul.mubr.bf16.gmra.mrb[0].mxu0 %v327
  %v370 = vpop.f32.mrb[0].mxu0
  %v371 = vadd.f32 0.0, %v370
  %v372 = vpop.f32.mrb[0].mxu0
  %v373 = vpop.f32.mrb[0].mxu0
  %v374 = vadd.f32 0.0, %v373
  %v375 = vpop.f32.mrb[0].mxu0
  %376 = vdwg.mxu0
  %377 = vrot.lane.b32.xlu0 %v18, 64
  %v378 = vpop.permute.xlu0 %377
  %v380 = vsel %vm230, %v321, 0
  %v383 = vand.u32 %v378, %v332
  %385 = vmatprep.subr.bf16.mxu0 0
  %386 = vmatpush1.bf16.msra.mxu0 %v383
  %387 = vmatprep.subr.bf16.mxu0 0
  %388 = vmatpush1.bf16.msra.mxu0 0
  %389 = vmatprep.subr.bf16.mxu0 0
  %390 = vmatpush1.bf16.msra.mxu0 0
  %391 = vmatprep.subr.bf16.mxu0 0
  %392 = vmatpush1.bf16.msra.mxu0 0
  %393 = vmatprep.subr.bf16.mxu0 0
  %394 = vmatpush1.bf16.msra.mxu0 0
  %395 = vmatprep.subr.bf16.mxu0 0
  %396 = vmatpush1.bf16.msra.mxu0 0
  %397 = vmatprep.subr.bf16.mxu0 0
  %398 = vmatpush1.bf16.msra.mxu0 0
  %399 = vmatprep.subr.bf16.mxu0 0
  %400 = vmatpush1.bf16.msra.mxu0 0
  %401 = vmatprep.subr.bf16.mxu0 0
  %402 = vmatpush1.bf16.msra.mxu0 0
  %403 = vmatprep.subr.bf16.mxu0 0
  %404 = vmatpush1.bf16.msra.mxu0 0
  %405 = vmatprep.subr.bf16.mxu0 0
  %406 = vmatpush1.bf16.msra.mxu0 0
  %407 = vmatprep.subr.bf16.mxu0 0
  %408 = vmatpush1.bf16.msra.mxu0 0
  %409 = vmatprep.subr.bf16.mxu0 0
  %410 = vmatpush1.bf16.msra.mxu0 0
  %411 = vmatprep.subr.bf16.mxu0 0
  %412 = vmatpush1.bf16.msra.mxu0 0
  %413 = vmatprep.subr.bf16.mxu0 0
  %414 = vmatpush1.bf16.msra.mxu0 0
  %415 = vmatprep.subr.bf16.mxu0 0
  %416 = vmatpush1.bf16.msra.mxu0 0
  %417 = vmatprep.mubr.bf16.mxu0 0
  %418 = vmatmul.mubr.bf16.gmra.mrb[0].mxu0 %v380
  %v419 = vpop.f32.mrb[0].mxu0
  %v420 = vadd.f32 0.0, %v419
  %v421 = vpop.f32.mrb[0].mxu0
  %v422 = vpop.f32.mrb[0].mxu0
  %v423 = vadd.f32 0.0, %v422
  %v424 = vpop.f32.mrb[0].mxu0
  %425 = vdwg.mxu0
  %426 = vrot.lane.b32.xlu0 %v19, 64
  %v427 = vpop.permute.xlu0 %426
  %v429 = vsel %vm230, %v322, 0
  %v432 = vand.u32 %v427, %v332
  %434 = vmatprep.subr.bf16.mxu0 0
  %435 = vmatpush1.bf16.msra.mxu0 %v432
  %436 = vmatprep.subr.bf16.mxu0 0
  %437 = vmatpush1.bf16.msra.mxu0 0
  %438 = vmatprep.subr.bf16.mxu0 0
  %439 = vmatpush1.bf16.msra.mxu0 0
  %440 = vmatprep.subr.bf16.mxu0 0
  %441 = vmatpush1.bf16.msra.mxu0 0
  %442 = vmatprep.subr.bf16.mxu0 0
  %443 = vmatpush1.bf16.msra.mxu0 0
  %444 = vmatprep.subr.bf16.mxu0 0
  %445 = vmatpush1.bf16.msra.mxu0 0
  %446 = vmatprep.subr.bf16.mxu0 0
  %447 = vmatpush1.bf16.msra.mxu0 0
  %448 = vmatprep.subr.bf16.mxu0 0
  %449 = vmatpush1.bf16.msra.mxu0 0
  %450 = vmatprep.subr.bf16.mxu0 0
  %451 = vmatpush1.bf16.msra.mxu0 0
  %452 = vmatprep.subr.bf16.mxu0 0
  %453 = vmatpush1.bf16.msra.mxu0 0
  %454 = vmatprep.subr.bf16.mxu0 0
  %455 = vmatpush1.bf16.msra.mxu0 0
  %456 = vmatprep.subr.bf16.mxu0 0
  %457 = vmatpush1.bf16.msra.mxu0 0
  %458 = vmatprep.subr.bf16.mxu0 0
  %459 = vmatpush1.bf16.msra.mxu0 0
  %460 = vmatprep.subr.bf16.mxu0 0
  %461 = vmatpush1.bf16.msra.mxu0 0
  %462 = vmatprep.subr.bf16.mxu0 0
  %463 = vmatpush1.bf16.msra.mxu0 0
  %464 = vmatprep.subr.bf16.mxu0 0
  %465 = vmatpush1.bf16.msra.mxu0 0
  %466 = vmatprep.mubr.bf16.mxu0 0
  %467 = vmatmul.mubr.bf16.gmra.mrb[0].mxu0 %v429
  %v468 = vpop.f32.mrb[0].mxu0
  %v469 = vadd.f32 0.0, %v468
  %v470 = vpop.f32.mrb[0].mxu0
  %v471 = vpop.f32.mrb[0].mxu0
  %v472 = vadd.f32 0.0, %v471
  %v473 = vpop.f32.mrb[0].mxu0
  %474 = vdwg.mxu0
  %475 = vrot.lane.b32.xlu0 %v20, 64
  %v476 = vpop.permute.xlu0 %475
  %v478 = vsel %vm230, %v323, 0
  %v481 = vand.u32 %v476, %v332
  %483 = vmatprep.subr.bf16.mxu0 0
  %484 = vmatpush1.bf16.msra.mxu0 %v481
  %485 = vmatprep.subr.bf16.mxu0 0
  %486 = vmatpush1.bf16.msra.mxu0 0
  %487 = vmatprep.subr.bf16.mxu0 0
  %488 = vmatpush1.bf16.msra.mxu0 0
  %489 = vmatprep.subr.bf16.mxu0 0
  %490 = vmatpush1.bf16.msra.mxu0 0
  %491 = vmatprep.subr.bf16.mxu0 0
  %492 = vmatpush1.bf16.msra.mxu0 0
  %493 = vmatprep.subr.bf16.mxu0 0
  %494 = vmatpush1.bf16.msra.mxu0 0
  %495 = vmatprep.subr.bf16.mxu0 0
  %496 = vmatpush1.bf16.msra.mxu0 0
  %497 = vmatprep.subr.bf16.mxu0 0
  %498 = vmatpush1.bf16.msra.mxu0 0
  %499 = vmatprep.subr.bf16.mxu0 0
  %500 = vmatpush1.bf16.msra.mxu0 0
  %501 = vmatprep.subr.bf16.mxu0 0
  %502 = vmatpush1.bf16.msra.mxu0 0
  %503 = vmatprep.subr.bf16.mxu0 0
  %504 = vmatpush1.bf16.msra.mxu0 0
  %505 = vmatprep.subr.bf16.mxu0 0
  %506 = vmatpush1.bf16.msra.mxu0 0
  %507 = vmatprep.subr.bf16.mxu0 0
  %508 = vmatpush1.bf16.msra.mxu0 0
  %509 = vmatprep.subr.bf16.mxu0 0
  %510 = vmatpush1.bf16.msra.mxu0 0
  %511 = vmatprep.subr.bf16.mxu0 0
  %512 = vmatpush1.bf16.msra.mxu0 0
  %513 = vmatprep.subr.bf16.mxu0 0
  %514 = vmatpush1.bf16.msra.mxu0 0
  %515 = vmatprep.mubr.bf16.mxu0 0
  %516 = vmatmul.mubr.bf16.gmra.mrb[0].mxu0 %v478
  %v517 = vpop.f32.mrb[0].mxu0
  %v518 = vadd.f32 0.0, %v517
  %v519 = vpop.f32.mrb[0].mxu0
  %v520 = vpop.f32.mrb[0].mxu0
  %v521 = vadd.f32 0.0, %v520
  %v522 = vpop.f32.mrb[0].mxu0
  %523 = vdwg.mxu0
  %524 = vst.msk [vmem:[%s1] sm:$0xff] %vm24, %v371
  %vm525 = vcmask 57344
  %526 = vst.msk [vmem:[%s1 + $0x8] sm:$0x1] %vm525, %v374
  %527 = vst.msk [vmem:[%s1 + $0x10] sm:$0xff] %vm24, %v420
  %528 = vst.msk [vmem:[%s1 + $0x18] sm:$0x1] %vm525, %v423
  %529 = vst.msk [vmem:[%s1 + $0x20] sm:$0xff] %vm24, %v469
  %530 = vst.msk [vmem:[%s1 + $0x28] sm:$0x1] %vm525, %v472
  %531 = vst.msk [vmem:[%s1 + $0x30] sm:$0xff] %vm24, %v518
  %532 = vst.msk [vmem:[%s1 + $0x38] sm:$0x1] %vm525, %v521
  %v533 = vld [vmem:[%s0] sm:$0xff]
  %v534 = vld [vmem:[%s0 + $0x8] sm:$0x1]
  %v535 = vld [vmem:[%s0 + $0x10] sm:$0xff]
  %v536 = vld [vmem:[%s0 + $0x18] sm:$0x1]
  %v537 = vld [vmem:[%s0 + $0x20] sm:$0xff]
  %v538 = vld [vmem:[%s0 + $0x28] sm:$0x1]
  %v539 = vld [vmem:[%s0 + $0x30] sm:$0xff]
  %v540 = vld [vmem:[%s0 + $0x38] sm:$0x1]
  %v541 = vpack.c.bf16 %v534, %v533
  %v542 = vpack.c.bf16 %v536, %v535
  %v543 = vpack.c.bf16 %v538, %v537
  %v544 = vpack.c.bf16 %v540, %v539
  %546 = vrot.lane.b32.xlu0 %v541, 120
  %v547 = vpop.permute.xlu0 %546
  %548 = vrot.lane.b32.xlu0 %v541, 88
  %v549 = vpop.permute.xlu0 %548
  %v551 = vsel %vm24, %v547, 0
  %v554 = vsel %vm24, %v549, 0
  %556 = vmatprep.subr.bf16.mxu0 0
  %557 = vmatpush1.bf16.xpose.msra.mxu0 %v554
  %558 = vmatprep.subr.bf16.mxu0 0
  %559 = vmatpush1.bf16.xpose.msra.mxu0 0
  %560 = vmatprep.subr.bf16.mxu0 0
  %561 = vmatpush1.bf16.xpose.msra.mxu0 0
  %562 = vmatprep.subr.bf16.mxu0 0
  %563 = vmatpush1.bf16.xpose.msra.mxu0 0
  %564 = vmatprep.subr.bf16.mxu0 0
  %565 = vmatpush1.bf16.xpose.msra.mxu0 0
  %566 = vmatprep.subr.bf16.mxu0 0
  %567 = vmatpush1.bf16.xpose.msra.mxu0 0
  %568 = vmatprep.subr.bf16.mxu0 0
  %569 = vmatpush1.bf16.xpose.msra.mxu0 0
  %570 = vmatprep.subr.bf16.mxu0 0
  %571 = vmatpush1.bf16.xpose.msra.mxu0 0
  %572 = vmatprep.subr.bf16.mxu0 0
  %573 = vmatpush1.bf16.xpose.msra.mxu0 0
  %574 = vmatprep.subr.bf16.mxu0 0
  %575 = vmatpush1.bf16.xpose.msra.mxu0 0
  %576 = vmatprep.subr.bf16.mxu0 0
  %577 = vmatpush1.bf16.xpose.msra.mxu0 0
  %578 = vmatprep.subr.bf16.mxu0 0
  %579 = vmatpush1.bf16.xpose.msra.mxu0 0
  %580 = vmatprep.subr.bf16.mxu0 0
  %581 = vmatpush1.bf16.xpose.msra.mxu0 0
  %582 = vmatprep.subr.bf16.mxu0 0
  %583 = vmatpush1.bf16.xpose.msra.mxu0 0
  %584 = vmatprep.subr.bf16.mxu0 0
  %585 = vmatpush1.bf16.xpose.msra.mxu0 0
  %586 = vmatprep.subr.bf16.mxu0 0
  %587 = vmatpush1.bf16.xpose.msra.mxu0 0
  %588 = vmatprep.mubr.bf16.mxu0 0
  %589 = vmatmul.mubr.bf16.gmra.mrb[0].mxu0 %v551
  %v590 = vpop.f32.mrb[0].mxu0
  %v591 = vadd.f32 0.0, %v590
  %v592 = vpop.f32.mrb[0].mxu0
  %v593 = vpop.f32.mrb[0].mxu0
  %v594 = vadd.f32 0.0, %v593
  %v595 = vpop.f32.mrb[0].mxu0
  %596 = vdwg.mxu0
  %598 = vrot.lane.b32.xlu0 %v542, 120
  %v599 = vpop.permute.xlu0 %598
  %600 = vrot.lane.b32.xlu0 %v542, 88
  %v601 = vpop.permute.xlu0 %600
  %v603 = vsel %vm24, %v599, 0
  %v606 = vsel %vm24, %v601, 0
  %608 = vmatprep.subr.bf16.mxu0 0
  %609 = vmatpush1.bf16.xpose.msra.mxu0 %v606
  %610 = vmatprep.subr.bf16.mxu0 0
  %611 = vmatpush1.bf16.xpose.msra.mxu0 0
  %612 = vmatprep.subr.bf16.mxu0 0
  %613 = vmatpush1.bf16.xpose.msra.mxu0 0
  %614 = vmatprep.subr.bf16.mxu0 0
  %615 = vmatpush1.bf16.xpose.msra.mxu0 0
  %616 = vmatprep.subr.bf16.mxu0 0
  %617 = vmatpush1.bf16.xpose.msra.mxu0 0
  %618 = vmatprep.subr.bf16.mxu0 0
  %619 = vmatpush1.bf16.xpose.msra.mxu0 0
  %620 = vmatprep.subr.bf16.mxu0 0
  %621 = vmatpush1.bf16.xpose.msra.mxu0 0
  %622 = vmatprep.subr.bf16.mxu0 0
  %623 = vmatpush1.bf16.xpose.msra.mxu0 0
  %624 = vmatprep.subr.bf16.mxu0 0
  %625 = vmatpush1.bf16.xpose.msra.mxu0 0
  %626 = vmatprep.subr.bf16.mxu0 0
  %627 = vmatpush1.bf16.xpose.msra.mxu0 0
  %628 = vmatprep.subr.bf16.mxu0 0
  %629 = vmatpush1.bf16.xpose.msra.mxu0 0
  %630 = vmatprep.subr.bf16.mxu0 0
  %631 = vmatpush1.bf16.xpose.msra.mxu0 0
  %632 = vmatprep.subr.bf16.mxu0 0
  %633 = vmatpush1.bf16.xpose.msra.mxu0 0
  %634 = vmatprep.subr.bf16.mxu0 0
  %635 = vmatpush1.bf16.xpose.msra.mxu0 0
  %636 = vmatprep.subr.bf16.mxu0 0
  %637 = vmatpush1.bf16.xpose.msra.mxu0 0
  %638 = vmatprep.subr.bf16.mxu0 0
  %639 = vmatpush1.bf16.xpose.msra.mxu0 0
  %640 = vmatprep.mubr.bf16.mxu0 0
  %641 = vmatmul.mubr.bf16.gmra.mrb[0].mxu0 %v603
  %v642 = vpop.f32.mrb[0].mxu0
  %v643 = vadd.f32 0.0, %v642
  %v644 = vpop.f32.mrb[0].mxu0
  %v645 = vpop.f32.mrb[0].mxu0
  %v646 = vadd.f32 0.0, %v645
  %v647 = vpop.f32.mrb[0].mxu0
  %648 = vdwg.mxu0
  %650 = vrot.lane.b32.xlu0 %v543, 120
  %v651 = vpop.permute.xlu0 %650
  %652 = vrot.lane.b32.xlu0 %v543, 88
  %v653 = vpop.permute.xlu0 %652
  %v655 = vsel %vm24, %v651, 0
  %v658 = vsel %vm24, %v653, 0
  %660 = vmatprep.subr.bf16.mxu0 0
  %661 = vmatpush1.bf16.xpose.msra.mxu0 %v658
  %662 = vmatprep.subr.bf16.mxu0 0
  %663 = vmatpush1.bf16.xpose.msra.mxu0 0
  %664 = vmatprep.subr.bf16.mxu0 0
  %665 = vmatpush1.bf16.xpose.msra.mxu0 0
  %666 = vmatprep.subr.bf16.mxu0 0
  %667 = vmatpush1.bf16.xpose.msra.mxu0 0
  %668 = vmatprep.subr.bf16.mxu0 0
  %669 = vmatpush1.bf16.xpose.msra.mxu0 0
  %670 = vmatprep.subr.bf16.mxu0 0
  %671 = vmatpush1.bf16.xpose.msra.mxu0 0
  %672 = vmatprep.subr.bf16.mxu0 0
  %673 = vmatpush1.bf16.xpose.msra.mxu0 0
  %674 = vmatprep.subr.bf16.mxu0 0
  %675 = vmatpush1.bf16.xpose.msra.mxu0 0
  %676 = vmatprep.subr.bf16.mxu0 0
  %677 = vmatpush1.bf16.xpose.msra.mxu0 0
  %678 = vmatprep.subr.bf16.mxu0 0
  %679 = vmatpush1.bf16.xpose.msra.mxu0 0
  %680 = vmatprep.subr.bf16.mxu0 0
  %681 = vmatpush1.bf16.xpose.msra.mxu0 0
  %682 = vmatprep.subr.bf16.mxu0 0
  %683 = vmatpush1.bf16.xpose.msra.mxu0 0
  %684 = vmatprep.subr.bf16.mxu0 0
  %685 = vmatpush1.bf16.xpose.msra.mxu0 0
  %686 = vmatprep.subr.bf16.mxu0 0
  %687 = vmatpush1.bf16.xpose.msra.mxu0 0
  %688 = vmatprep.subr.bf16.mxu0 0
  %689 = vmatpush1.bf16.xpose.msra.mxu0 0
  %690 = vmatprep.subr.bf16.mxu0 0
  %691 = vmatpush1.bf16.xpose.msra.mxu0 0
  %692 = vmatprep.mubr.bf16.mxu0 0
  %693 = vmatmul.mubr.bf16.gmra.mrb[0].mxu0 %v655
  %v694 = vpop.f32.mrb[0].mxu0
  %v695 = vadd.f32 0.0, %v694
  %v696 = vpop.f32.mrb[0].mxu0
  %v697 = vpop.f32.mrb[0].mxu0
  %v698 = vadd.f32 0.0, %v697
  %v699 = vpop.f32.mrb[0].mxu0
  %700 = vdwg.mxu0
  %702 = vrot.lane.b32.xlu0 %v544, 120
  %v703 = vpop.permute.xlu0 %702
  %704 = vrot.lane.b32.xlu0 %v544, 88
  %v705 = vpop.permute.xlu0 %704
  %v707 = vsel %vm24, %v703, 0
  %v710 = vsel %vm24, %v705, 0
  %712 = vmatprep.subr.bf16.mxu0 0
  %713 = vmatpush1.bf16.xpose.msra.mxu0 %v710
  %714 = vmatprep.subr.bf16.mxu0 0
  %715 = vmatpush1.bf16.xpose.msra.mxu0 0
  %716 = vmatprep.subr.bf16.mxu0 0
  %717 = vmatpush1.bf16.xpose.msra.mxu0 0
  %718 = vmatprep.subr.bf16.mxu0 0
  %719 = vmatpush1.bf16.xpose.msra.mxu0 0
  %720 = vmatprep.subr.bf16.mxu0 0
  %721 = vmatpush1.bf16.xpose.msra.mxu0 0
  %722 = vmatprep.subr.bf16.mxu0 0
  %723 = vmatpush1.bf16.xpose.msra.mxu0 0
  %724 = vmatprep.subr.bf16.mxu0 0
  %725 = vmatpush1.bf16.xpose.msra.mxu0 0
  %726 = vmatprep.subr.bf16.mxu0 0
  %727 = vmatpush1.bf16.xpose.msra.mxu0 0
  %728 = vmatprep.subr.bf16.mxu0 0
  %729 = vmatpush1.bf16.xpose.msra.mxu0 0
  %730 = vmatprep.subr.bf16.mxu0 0
  %731 = vmatpush1.bf16.xpose.msra.mxu0 0
  %732 = vmatprep.subr.bf16.mxu0 0
  %733 = vmatpush1.bf16.xpose.msra.mxu0 0
  %734 = vmatprep.subr.bf16.mxu0 0
  %735 = vmatpush1.bf16.xpose.msra.mxu0 0
  %736 = vmatprep.subr.bf16.mxu0 0
  %737 = vmatpush1.bf16.xpose.msra.mxu0 0
  %738 = vmatprep.subr.bf16.mxu0 0
  %739 = vmatpush1.bf16.xpose.msra.mxu0 0
  %740 = vmatprep.subr.bf16.mxu0 0
  %741 = vmatpush1.bf16.xpose.msra.mxu0 0
  %742 = vmatprep.subr.bf16.mxu0 0
  %743 = vmatpush1.bf16.xpose.msra.mxu0 0
  %744 = vmatprep.mubr.bf16.mxu0 0
  %745 = vmatmul.mubr.bf16.gmra.mrb[0].mxu0 %v707
  %v746 = vpop.f32.mrb[0].mxu0
  %v747 = vadd.f32 0.0, %v746
  %v748 = vpop.f32.mrb[0].mxu0
  %v749 = vpop.f32.mrb[0].mxu0
  %v750 = vadd.f32 0.0, %v749
  %v751 = vpop.f32.mrb[0].mxu0
  %752 = vdwg.mxu0
  %v753 = vmul.f32 %v591, 0.35355338
  %v754 = vmul.f32 %v594, 0.35355338
  %v755 = vmul.f32 %v643, 0.35355338
  %v756 = vmul.f32 %v646, 0.35355338
  %v757 = vmul.f32 %v695, 0.35355338
  %v758 = vmul.f32 %v698, 0.35355338
  %v759 = vmul.f32 %v747, 0.35355338
  %v760 = vmul.f32 %v750, 0.35355338
  %v761 = vsel %vm230, %v753, -inf
  %762 = vmax.xlane.f32.xlu0 %v761
  %v763 = vpop.xlane.xlu0 %762
  %v764 = vsel %vm234, %v754, -inf
  %765 = vmax.xlane.f32.xlu0 %v764
  %v766 = vpop.xlane.xlu0 %765
  %v767 = vsel %vm230, %v755, -inf
  %768 = vmax.xlane.f32.xlu0 %v767
  %v769 = vpop.xlane.xlu0 %768
  %v770 = vsel %vm234, %v756, -inf
  %771 = vmax.xlane.f32.xlu0 %v770
  %v772 = vpop.xlane.xlu0 %771
  %v773 = vsel %vm230, %v757, -inf
  %774 = vmax.xlane.f32.xlu0 %v773
  %v775 = vpop.xlane.xlu0 %774
  %v776 = vsel %vm234, %v758, -inf
  %777 = vmax.xlane.f32.xlu0 %v776
  %v778 = vpop.xlane.xlu0 %777
  %v779 = vsel %vm230, %v759, -inf
  %780 = vmax.xlane.f32.xlu0 %v779
  %v781 = vpop.xlane.xlu0 %780
  %v782 = vsel %vm234, %v760, -inf
  %783 = vmax.xlane.f32.xlu0 %v782
  %v784 = vpop.xlane.xlu0 %783
  %v785 = vsub.f32 %v753, %v763
  %v786 = vsub.f32 %v754, %v766
  %v787 = vsub.f32 %v755, %v769
  %v788 = vsub.f32 %v756, %v772
  %v789 = vsub.f32 %v757, %v775
  %v790 = vsub.f32 %v758, %v778
  %v791 = vsub.f32 %v759, %v781
  %v792 = vsub.f32 %v760, %v784
  %v793 = vmul.f32 %v785, 1.442695
  %v794 = vpow.pop %v793
  %v795 = vmul.f32 %v786, 1.442695
  %v796 = vpow.pop %v795
  %v797 = vmul.f32 %v787, 1.442695
  %v798 = vpow.pop %v797
  %v799 = vmul.f32 %v788, 1.442695
  %v800 = vpow.pop %v799
  %v801 = vmul.f32 %v789, 1.442695
  %v802 = vpow.pop %v801
  %v803 = vmul.f32 %v790, 1.442695
  %v804 = vpow.pop %v803
  %v805 = vmul.f32 %v791, 1.442695
  %v806 = vpow.pop %v805
  %v807 = vmul.f32 %v792, 1.442695
  %v808 = vpow.pop %v807
  %v809 = vsel %vm230, %v794, 0.0
  %810 = vadd.xlane.f32.xlu0 %v809
  %v811 = vpop.xlane.xlu0 %810
  %v812 = vsel %vm234, %v796, 0.0
  %813 = vadd.xlane.f32.xlu0 %v812
  %v814 = vpop.xlane.xlu0 %813
  %v815 = vsel %vm230, %v798, 0.0
  %816 = vadd.xlane.f32.xlu0 %v815
  %v817 = vpop.xlane.xlu0 %816
  %v818 = vsel %vm234, %v800, 0.0
  %819 = vadd.xlane.f32.xlu0 %v818
  %v820 = vpop.xlane.xlu0 %819
  %v821 = vsel %vm230, %v802, 0.0
  %822 = vadd.xlane.f32.xlu0 %v821
  %v823 = vpop.xlane.xlu0 %822
  %v824 = vsel %vm234, %v804, 0.0
  %825 = vadd.xlane.f32.xlu0 %v824
  %v826 = vpop.xlane.xlu0 %825
  %v827 = vsel %vm230, %v806, 0.0
  %828 = vadd.xlane.f32.xlu0 %v827
  %v829 = vpop.xlane.xlu0 %828
  %v830 = vsel %vm234, %v808, 0.0
  %831 = vadd.xlane.f32.xlu0 %v830
  %v832 = vpop.xlane.xlu0 %831
  %v833 = vrcp.pop %v811
  %v834 = vrcp.pop %v814
  %v835 = vrcp.pop %v817
  %v836 = vrcp.pop %v820
  %v837 = vrcp.pop %v823
  %v838 = vrcp.pop %v826
  %v839 = vrcp.pop %v829
  %v840 = vrcp.pop %v832
  %v841 = vmul.f32 %v794, %v833
  %v842 = vmul.f32 %v796, %v834
  %v843 = vmul.f32 %v798, %v835
  %v844 = vmul.f32 %v800, %v836
  %v845 = vmul.f32 %v802, %v837
  %v846 = vmul.f32 %v804, %v838
  %v847 = vmul.f32 %v806, %v839
  %v848 = vmul.f32 %v808, %v840
  %v849 = vpack.c.bf16 %v842, %v841
  %v850 = vpack.c.bf16 %v844, %v843
  %v851 = vpack.c.bf16 %v846, %v845
  %v852 = vpack.c.bf16 %v848, %v847
  %853 = vrot.lane.b32.xlu0 %v541, 56
  %v854 = vpop.permute.xlu0 %853
  %v856 = vsel %vm230, %v849, 0
  %v859 = vand.u32 %v854, %v332
  %861 = vmatprep.subr.bf16.mxu0 0
  %862 = vmatpush1.bf16.msra.mxu0 %v859
  %863 = vmatprep.subr.bf16.mxu0 0
  %864 = vmatpush1.bf16.msra.mxu0 0
  %865 = vmatprep.subr.bf16.mxu0 0
  %866 = vmatpush1.bf16.msra.mxu0 0
  %867 = vmatprep.subr.bf16.mxu0 0
  %868 = vmatpush1.bf16.msra.mxu0 0
  %869 = vmatprep.subr.bf16.mxu0 0
  %870 = vmatpush1.bf16.msra.mxu0 0
  %871 = vmatprep.subr.bf16.mxu0 0
  %872 = vmatpush1.bf16.msra.mxu0 0
  %873 = vmatprep.subr.bf16.mxu0 0
  %874 = vmatpush1.bf16.msra.mxu0 0
  %875 = vmatprep.subr.bf16.mxu0 0
  %876 = vmatpush1.bf16.msra.mxu0 0
  %877 = vmatprep.subr.bf16.mxu0 0
  %878 = vmatpush1.bf16.msra.mxu0 0
  %879 = vmatprep.subr.bf16.mxu0 0
  %880 = vmatpush1.bf16.msra.mxu0 0
  %881 = vmatprep.subr.bf16.mxu0 0
  %882 = vmatpush1.bf16.msra.mxu0 0
  %883 = vmatprep.subr.bf16.mxu0 0
  %884 = vmatpush1.bf16.msra.mxu0 0
  %885 = vmatprep.subr.bf16.mxu0 0
  %886 = vmatpush1.bf16.msra.mxu0 0
  %887 = vmatprep.subr.bf16.mxu0 0
  %888 = vmatpush1.bf16.msra.mxu0 0
  %889 = vmatprep.subr.bf16.mxu0 0
  %890 = vmatpush1.bf16.msra.mxu0 0
  %891 = vmatprep.subr.bf16.mxu0 0
  %892 = vmatpush1.bf16.msra.mxu0 0
  %893 = vmatprep.mubr.bf16.mxu0 0
  %894 = vmatmul.mubr.bf16.gmra.mrb[0].mxu0 %v856
  %v895 = vpop.f32.mrb[0].mxu0
  %v896 = vadd.f32 0.0, %v895
  %v897 = vpop.f32.mrb[0].mxu0
  %v898 = vpop.f32.mrb[0].mxu0
  %v899 = vadd.f32 0.0, %v898
  %v900 = vpop.f32.mrb[0].mxu0
  %901 = vdwg.mxu0
  %902 = vrot.lane.b32.xlu0 %v542, 56
  %v903 = vpop.permute.xlu0 %902
  %v905 = vsel %vm230, %v850, 0
  %v908 = vand.u32 %v903, %v332
  %910 = vmatprep.subr.bf16.mxu0 0
  %911 = vmatpush1.bf16.msra.mxu0 %v908
  %912 = vmatprep.subr.bf16.mxu0 0
  %913 = vmatpush1.bf16.msra.mxu0 0
  %914 = vmatprep.subr.bf16.mxu0 0
  %915 = vmatpush1.bf16.msra.mxu0 0
  %916 = vmatprep.subr.bf16.mxu0 0
  %917 = vmatpush1.bf16.msra.mxu0 0
  %918 = vmatprep.subr.bf16.mxu0 0
  %919 = vmatpush1.bf16.msra.mxu0 0
  %920 = vmatprep.subr.bf16.mxu0 0
  %921 = vmatpush1.bf16.msra.mxu0 0
  %922 = vmatprep.subr.bf16.mxu0 0
  %923 = vmatpush1.bf16.msra.mxu0 0
  %924 = vmatprep.subr.bf16.mxu0 0
  %925 = vmatpush1.bf16.msra.mxu0 0
  %926 = vmatprep.subr.bf16.mxu0 0
  %927 = vmatpush1.bf16.msra.mxu0 0
  %928 = vmatprep.subr.bf16.mxu0 0
  %929 = vmatpush1.bf16.msra.mxu0 0
  %930 = vmatprep.subr.bf16.mxu0 0
  %931 = vmatpush1.bf16.msra.mxu0 0
  %932 = vmatprep.subr.bf16.mxu0 0
  %933 = vmatpush1.bf16.msra.mxu0 0
  %934 = vmatprep.subr.bf16.mxu0 0
  %935 = vmatpush1.bf16.msra.mxu0 0
  %936 = vmatprep.subr.bf16.mxu0 0
  %937 = vmatpush1.bf16.msra.mxu0 0
  %938 = vmatprep.subr.bf16.mxu0 0
  %939 = vmatpush1.bf16.msra.mxu0 0
  %940 = vmatprep.subr.bf16.mxu0 0
  %941 = vmatpush1.bf16.msra.mxu0 0
  %942 = vmatprep.mubr.bf16.mxu0 0
  %943 = vmatmul.mubr.bf16.gmra.mrb[0].mxu0 %v905
  %v944 = vpop.f32.mrb[0].mxu0
  %v945 = vadd.f32 0.0, %v944
  %v946 = vpop.f32.mrb[0].mxu0
  %v947 = vpop.f32.mrb[0].mxu0
  %v948 = vadd.f32 0.0, %v947
  %v949 = vpop.f32.mrb[0].mxu0
  %950 = vdwg.mxu0
  %951 = vrot.lane.b32.xlu0 %v543, 56
  %v952 = vpop.permute.xlu0 %951
  %v954 = vsel %vm230, %v851, 0
  %v957 = vand.u32 %v952, %v332
  %959 = vmatprep.subr.bf16.mxu0 0
  %960 = vmatpush1.bf16.msra.mxu0 %v957
  %961 = vmatprep.subr.bf16.mxu0 0
  %962 = vmatpush1.bf16.msra.mxu0 0
  %963 = vmatprep.subr.bf16.mxu0 0
  %964 = vmatpush1.bf16.msra.mxu0 0
  %965 = vmatprep.subr.bf16.mxu0 0
  %966 = vmatpush1.bf16.msra.mxu0 0
  %967 = vmatprep.subr.bf16.mxu0 0
  %968 = vmatpush1.bf16.msra.mxu0 0
  %969 = vmatprep.subr.bf16.mxu0 0
  %970 = vmatpush1.bf16.msra.mxu0 0
  %971 = vmatprep.subr.bf16.mxu0 0
  %972 = vmatpush1.bf16.msra.mxu0 0
  %973 = vmatprep.subr.bf16.mxu0 0
  %974 = vmatpush1.bf16.msra.mxu0 0
  %975 = vmatprep.subr.bf16.mxu0 0
  %976 = vmatpush1.bf16.msra.mxu0 0
  %977 = vmatprep.subr.bf16.mxu0 0
  %978 = vmatpush1.bf16.msra.mxu0 0
  %979 = vmatprep.subr.bf16.mxu0 0
  %980 = vmatpush1.bf16.msra.mxu0 0
  %981 = vmatprep.subr.bf16.mxu0 0
  %982 = vmatpush1.bf16.msra.mxu0 0
  %983 = vmatprep.subr.bf16.mxu0 0
  %984 = vmatpush1.bf16.msra.mxu0 0
  %985 = vmatprep.subr.bf16.mxu0 0
  %986 = vmatpush1.bf16.msra.mxu0 0
  %987 = vmatprep.subr.bf16.mxu0 0
  %988 = vmatpush1.bf16.msra.mxu0 0
  %989 = vmatprep.subr.bf16.mxu0 0
  %990 = vmatpush1.bf16.msra.mxu0 0
  %991 = vmatprep.mubr.bf16.mxu0 0
  %992 = vmatmul.mubr.bf16.gmra.mrb[0].mxu0 %v954
  %v993 = vpop.f32.mrb[0].mxu0
  %v994 = vadd.f32 0.0, %v993
  %v995 = vpop.f32.mrb[0].mxu0
  %v996 = vpop.f32.mrb[0].mxu0
  %v997 = vadd.f32 0.0, %v996
  %v998 = vpop.f32.mrb[0].mxu0
  %999 = vdwg.mxu0
  %1000 = vrot.lane.b32.xlu0 %v544, 56
  %v1001 = vpop.permute.xlu0 %1000
  %v1003 = vsel %vm230, %v852, 0
  %v1006 = vand.u32 %v1001, %v332
  %1008 = vmatprep.subr.bf16.mxu0 0
  %1009 = vmatpush1.bf16.msra.mxu0 %v1006
  %1010 = vmatprep.subr.bf16.mxu0 0
  %1011 = vmatpush1.bf16.msra.mxu0 0
  %1012 = vmatprep.subr.bf16.mxu0 0
  %1013 = vmatpush1.bf16.msra.mxu0 0
  %1014 = vmatprep.subr.bf16.mxu0 0
  %1015 = vmatpush1.bf16.msra.mxu0 0
  %1016 = vmatprep.subr.bf16.mxu0 0
  %1017 = vmatpush1.bf16.msra.mxu0 0
  %1018 = vmatprep.subr.bf16.mxu0 0
  %1019 = vmatpush1.bf16.msra.mxu0 0
  %1020 = vmatprep.subr.bf16.mxu0 0
  %1021 = vmatpush1.bf16.msra.mxu0 0
  %1022 = vmatprep.subr.bf16.mxu0 0
  %1023 = vmatpush1.bf16.msra.mxu0 0
  %1024 = vmatprep.subr.bf16.mxu0 0
  %1025 = vmatpush1.bf16.msra.mxu0 0
  %1026 = vmatprep.subr.bf16.mxu0 0
  %1027 = vmatpush1.bf16.msra.mxu0 0
  %1028 = vmatprep.subr.bf16.mxu0 0
  %1029 = vmatpush1.bf16.msra.mxu0 0
  %1030 = vmatprep.subr.bf16.mxu0 0
  %1031 = vmatpush1.bf16.msra.mxu0 0
  %1032 = vmatprep.subr.bf16.mxu0 0
  %1033 = vmatpush1.bf16.msra.mxu0 0
  %1034 = vmatprep.subr.bf16.mxu0 0
  %1035 = vmatpush1.bf16.msra.mxu0 0
  %1036 = vmatprep.subr.bf16.mxu0 0
  %1037 = vmatpush1.bf16.msra.mxu0 0
  %1038 = vmatprep.subr.bf16.mxu0 0
  %1039 = vmatpush1.bf16.msra.mxu0 0
  %1040 = vmatprep.mubr.bf16.mxu0 0
  %1041 = vmatmul.mubr.bf16.gmra.mrb[0].mxu0 %v1003
  %v1042 = vpop.f32.mrb[0].mxu0
  %v1043 = vadd.f32 0.0, %v1042
  %v1044 = vpop.f32.mrb[0].mxu0
  %v1045 = vpop.f32.mrb[0].mxu0
  %v1046 = vadd.f32 0.0, %v1045
  %v1047 = vpop.f32.mrb[0].mxu0
  %1048 = vdwg.mxu0
  %1057 = vrot.lane.b32.xlu0 %v896, 8
  %v1058 = vpop.permute.xlu0 %1057
  %1059 = vrot.lane.b32.xlu0 %v899, 8
  %v1060 = vpop.permute.xlu0 %1059
  %1061 = vrot.lane.b32.xlu0 %v945, 8
  %v1062 = vpop.permute.xlu0 %1061
  %1063 = vrot.lane.b32.xlu0 %v948, 8
  %v1064 = vpop.permute.xlu0 %1063
  %1065 = vrot.lane.b32.xlu0 %v994, 8
  %v1066 = vpop.permute.xlu0 %1065
  %1067 = vrot.lane.b32.xlu0 %v997, 8
  %v1068 = vpop.permute.xlu0 %1067
  %1069 = vrot.lane.b32.xlu0 %v1043, 8
  %v1070 = vpop.permute.xlu0 %1069
  %1071 = vrot.lane.b32.xlu0 %v1046, 8
  %v1072 = vpop.permute.xlu0 %1071
  %vm1081 = vcmask 130112
  %1082 = vst.msk [vmem:[%s1] sm:$0xff] %vm1081, %v1058
  %vm1083 = vcmask 122944
  %1084 = vst.msk [vmem:[%s1 + $0x8] sm:$0x1] %vm1083, %v1060
  %1085 = vst.msk [vmem:[%s1 + $0x10] sm:$0xff] %vm1081, %v1062
  %1086 = vst.msk [vmem:[%s1 + $0x18] sm:$0x1] %vm1083, %v1064
  %1087 = vst.msk [vmem:[%s1 + $0x20] sm:$0xff] %vm1081, %v1066
  %1088 = vst.msk [vmem:[%s1 + $0x28] sm:$0x1] %vm1083, %v1068
  %1089 = vst.msk [vmem:[%s1 + $0x30] sm:$0xff] %vm1081, %v1070
  %1090 = vst.msk [vmem:[%s1 + $0x38] sm:$0x1] %vm1083, %v1072
  %v1091 = vld [vmem:[%s0] sm:$0xff]
  %v1092 = vld [vmem:[%s0 + $0x8] sm:$0x1]
  %v1093 = vld [vmem:[%s0 + $0x10] sm:$0xff]
  %v1094 = vld [vmem:[%s0 + $0x18] sm:$0x1]
  %v1095 = vld [vmem:[%s0 + $0x20] sm:$0xff]
  %v1096 = vld [vmem:[%s0 + $0x28] sm:$0x1]
  %v1097 = vld [vmem:[%s0 + $0x30] sm:$0xff]
  %v1098 = vld [vmem:[%s0 + $0x38] sm:$0x1]
  %v1099 = vpack.c.bf16 %v1092, %v1091
  %v1100 = vpack.c.bf16 %v1094, %v1093
  %v1101 = vpack.c.bf16 %v1096, %v1095
  %v1102 = vpack.c.bf16 %v1098, %v1097
  %1104 = vrot.lane.b32.xlu0 %v1099, 112
  %v1105 = vpop.permute.xlu0 %1104
  %1106 = vrot.lane.b32.xlu0 %v1099, 80
  %v1107 = vpop.permute.xlu0 %1106
  %v1109 = vsel %vm24, %v1105, 0
  %v1112 = vsel %vm24, %v1107, 0
  %1114 = vmatprep.subr.bf16.mxu0 0
  %1115 = vmatpush1.bf16.xpose.msra.mxu0 %v1112
  %1116 = vmatprep.subr.bf16.mxu0 0
  %1117 = vmatpush1.bf16.xpose.msra.mxu0 0
  %1118 = vmatprep.subr.bf16.mxu0 0
  %1119 = vmatpush1.bf16.xpose.msra.mxu0 0
  %1120 = vmatprep.subr.bf16.mxu0 0
  %1121 = vmatpush1.bf16.xpose.msra.mxu0 0
  %1122 = vmatprep.subr.bf16.mxu0 0
  %1123 = vmatpush1.bf16.xpose.msra.mxu0 0
  %1124 = vmatprep.subr.bf16.mxu0 0
  %1125 = vmatpush1.bf16.xpose.msra.mxu0 0
  %1126 = vmatprep.subr.bf16.mxu0 0
  %1127 = vmatpush1.bf16.xpose.msra.mxu0 0
  %1128 = vmatprep.subr.bf16.mxu0 0
  %1129 = vmatpush1.bf16.xpose.msra.mxu0 0
  %1130 = vmatprep.subr.bf16.mxu0 0
  %1131 = vmatpush1.bf16.xpose.msra.mxu0 0
  %1132 = vmatprep.subr.bf16.mxu0 0
  %1133 = vmatpush1.bf16.xpose.msra.mxu0 0
  %1134 = vmatprep.subr.bf16.mxu0 0
  %1135 = vmatpush1.bf16.xpose.msra.mxu0 0
  %1136 = vmatprep.subr.bf16.mxu0 0
  %1137 = vmatpush1.bf16.xpose.msra.mxu0 0
  %1138 = vmatprep.subr.bf16.mxu0 0
  %1139 = vmatpush1.bf16.xpose.msra.mxu0 0
  %1140 = vmatprep.subr.bf16.mxu0 0
  %1141 = vmatpush1.bf16.xpose.msra.mxu0 0
  %1142 = vmatprep.subr.bf16.mxu0 0
  %1143 = vmatpush1.bf16.xpose.msra.mxu0 0
  %1144 = vmatprep.subr.bf16.mxu0 0
  %1145 = vmatpush1.bf16.xpose.msra.mxu0 0
  %1146 = vmatprep.mubr.bf16.mxu0 0
  %1147 = vmatmul.mubr.bf16.gmra.mrb[0].mxu0 %v1109
  %v1148 = vpop.f32.mrb[0].mxu0
  %v1149 = vadd.f32 0.0, %v1148
  %v1150 = vpop.f32.mrb[0].mxu0
  %v1151 = vpop.f32.mrb[0].mxu0
  %v1152 = vadd.f32 0.0, %v1151
  %v1153 = vpop.f32.mrb[0].mxu0
  %1154 = vdwg.mxu0
  %1156 = vrot.lane.b32.xlu0 %v1100, 112
  %v1157 = vpop.permute.xlu0 %1156
  %1158 = vrot.lane.b32.xlu0 %v1100, 80
  %v1159 = vpop.permute.xlu0 %1158
  %v1161 = vsel %vm24, %v1157, 0
  %v1164 = vsel %vm24, %v1159, 0
  %1166 = vmatprep.subr.bf16.mxu0 0
  %1167 = vmatpush1.bf16.xpose.msra.mxu0 %v1164
  %1168 = vmatprep.subr.bf16.mxu0 0
  %1169 = vmatpush1.bf16.xpose.msra.mxu0 0
  %1170 = vmatprep.subr.bf16.mxu0 0
  %1171 = vmatpush1.bf16.xpose.msra.mxu0 0
  %1172 = vmatprep.subr.bf16.mxu0 0
  %1173 = vmatpush1.bf16.xpose.msra.mxu0 0
  %1174 = vmatprep.subr.bf16.mxu0 0
  %1175 = vmatpush1.bf16.xpose.msra.mxu0 0
  %1176 = vmatprep.subr.bf16.mxu0 0
  %1177 = vmatpush1.bf16.xpose.msra.mxu0 0
  %1178 = vmatprep.subr.bf16.mxu0 0
  %1179 = vmatpush1.bf16.xpose.msra.mxu0 0
  %1180 = vmatprep.subr.bf16.mxu0 0
  %1181 = vmatpush1.bf16.xpose.msra.mxu0 0
  %1182 = vmatprep.subr.bf16.mxu0 0
  %1183 = vmatpush1.bf16.xpose.msra.mxu0 0
  %1184 = vmatprep.subr.bf16.mxu0 0
  %1185 = vmatpush1.bf16.xpose.msra.mxu0 0
  %1186 = vmatprep.subr.bf16.mxu0 0
  %1187 = vmatpush1.bf16.xpose.msra.mxu0 0
  %1188 = vmatprep.subr.bf16.mxu0 0
  %1189 = vmatpush1.bf16.xpose.msra.mxu0 0
  %1190 = vmatprep.subr.bf16.mxu0 0
  %1191 = vmatpush1.bf16.xpose.msra.mxu0 0
  %1192 = vmatprep.subr.bf16.mxu0 0
  %1193 = vmatpush1.bf16.xpose.msra.mxu0 0
  %1194 = vmatprep.subr.bf16.mxu0 0
  %1195 = vmatpush1.bf16.xpose.msra.mxu0 0
  %1196 = vmatprep.subr.bf16.mxu0 0
  %1197 = vmatpush1.bf16.xpose.msra.mxu0 0
  %1198 = vmatprep.mubr.bf16.mxu0 0
  %1199 = vmatmul.mubr.bf16.gmra.mrb[0].mxu0 %v1161
  %v1200 = vpop.f32.mrb[0].mxu0
  %v1201 = vadd.f32 0.0, %v1200
  %v1202 = vpop.f32.mrb[0].mxu0
  %v1203 = vpop.f32.mrb[0].mxu0
  %v1204 = vadd.f32 0.0, %v1203
  %v1205 = vpop.f32.mrb[0].mxu0
  %1206 = vdwg.mxu0
  %1208 = vrot.lane.b32.xlu0 %v1101, 112
  %v1209 = vpop.permute.xlu0 %1208
  %1210 = vrot.lane.b32.xlu0 %v1101, 80
  %v1211 = vpop.permute.xlu0 %1210
  %v1213 = vsel %vm24, %v1209, 0
  %v1216 = vsel %vm24, %v1211, 0
  %1218 = vmatprep.subr.bf16.mxu0 0
  %1219 = vmatpush1.bf16.xpose.msra.mxu0 %v1216
  %1220 = vmatprep.subr.bf16.mxu0 0
  %1221 = vmatpush1.bf16.xpose.msra.mxu0 0
  %1222 = vmatprep.subr.bf16.mxu0 0
  %1223 = vmatpush1.bf16.xpose.msra.mxu0 0
  %1224 = vmatprep.subr.bf16.mxu0 0
  %1225 = vmatpush1.bf16.xpose.msra.mxu0 0
  %1226 = vmatprep.subr.bf16.mxu0 0
  %1227 = vmatpush1.bf16.xpose.msra.mxu0 0
  %1228 = vmatprep.subr.bf16.mxu0 0
  %1229 = vmatpush1.bf16.xpose.msra.mxu0 0
  %1230 = vmatprep.subr.bf16.mxu0 0
  %1231 = vmatpush1.bf16.xpose.msra.mxu0 0
  %1232 = vmatprep.subr.bf16.mxu0 0
  %1233 = vmatpush1.bf16.xpose.msra.mxu0 0
  %1234 = vmatprep.subr.bf16.mxu0 0
  %1235 = vmatpush1.bf16.xpose.msra.mxu0 0
  %1236 = vmatprep.subr.bf16.mxu0 0
  %1237 = vmatpush1.bf16.xpose.msra.mxu0 0
  %1238 = vmatprep.subr.bf16.mxu0 0
  %1239 = vmatpush1.bf16.xpose.msra.mxu0 0
  %1240 = vmatprep.subr.bf16.mxu0 0
  %1241 = vmatpush1.bf16.xpose.msra.mxu0 0
  %1242 = vmatprep.subr.bf16.mxu0 0
  %1243 = vmatpush1.bf16.xpose.msra.mxu0 0
  %1244 = vmatprep.subr.bf16.mxu0 0
  %1245 = vmatpush1.bf16.xpose.msra.mxu0 0
  %1246 = vmatprep.subr.bf16.mxu0 0
  %1247 = vmatpush1.bf16.xpose.msra.mxu0 0
  %1248 = vmatprep.subr.bf16.mxu0 0
  %1249 = vmatpush1.bf16.xpose.msra.mxu0 0
  %1250 = vmatprep.mubr.bf16.mxu0 0
  %1251 = vmatmul.mubr.bf16.gmra.mrb[0].mxu0 %v1213
  %v1252 = vpop.f32.mrb[0].mxu0
  %v1253 = vadd.f32 0.0, %v1252
  %v1254 = vpop.f32.mrb[0].mxu0
  %v1255 = vpop.f32.mrb[0].mxu0
  %v1256 = vadd.f32 0.0, %v1255
  %v1257 = vpop.f32.mrb[0].mxu0
  %1258 = vdwg.mxu0
  %1260 = vrot.lane.b32.xlu0 %v1102, 112
  %v1261 = vpop.permute.xlu0 %1260
  %1262 = vrot.lane.b32.xlu0 %v1102, 80
  %v1263 = vpop.permute.xlu0 %1262
  %v1265 = vsel %vm24, %v1261, 0
  %v1268 = vsel %vm24, %v1263, 0
  %1270 = vmatprep.subr.bf16.mxu0 0
  %1271 = vmatpush1.bf16.xpose.msra.mxu0 %v1268
  %1272 = vmatprep.subr.bf16.mxu0 0
  %1273 = vmatpush1.bf16.xpose.msra.mxu0 0
  %1274 = vmatprep.subr.bf16.mxu0 0
  %1275 = vmatpush1.bf16.xpose.msra.mxu0 0
  %1276 = vmatprep.subr.bf16.mxu0 0
  %1277 = vmatpush1.bf16.xpose.msra.mxu0 0
  %1278 = vmatprep.subr.bf16.mxu0 0
  %1279 = vmatpush1.bf16.xpose.msra.mxu0 0
  %1280 = vmatprep.subr.bf16.mxu0 0
  %1281 = vmatpush1.bf16.xpose.msra.mxu0 0
  %1282 = vmatprep.subr.bf16.mxu0 0
  %1283 = vmatpush1.bf16.xpose.msra.mxu0 0
  %1284 = vmatprep.subr.bf16.mxu0 0
  %1285 = vmatpush1.bf16.xpose.msra.mxu0 0
  %1286 = vmatprep.subr.bf16.mxu0 0
  %1287 = vmatpush1.bf16.xpose.msra.mxu0 0
  %1288 = vmatprep.subr.bf16.mxu0 0
  %1289 = vmatpush1.bf16.xpose.msra.mxu0 0
  %1290 = vmatprep.subr.bf16.mxu0 0
  %1291 = vmatpush1.bf16.xpose.msra.mxu0 0
  %1292 = vmatprep.subr.bf16.mxu0 0
  %1293 = vmatpush1.bf16.xpose.msra.mxu0 0
  %1294 = vmatprep.subr.bf16.mxu0 0
  %1295 = vmatpush1.bf16.xpose.msra.mxu0 0
  %1296 = vmatprep.subr.bf16.mxu0 0
  %1297 = vmatpush1.bf16.xpose.msra.mxu0 0
  %1298 = vmatprep.subr.bf16.mxu0 0
  %1299 = vmatpush1.bf16.xpose.msra.mxu0 0
  %1300 = vmatprep.subr.bf16.mxu0 0
  %1301 = vmatpush1.bf16.xpose.msra.mxu0 0
  %1302 = vmatprep.mubr.bf16.mxu0 0
  %1303 = vmatmul.mubr.bf16.gmra.mrb[0].mxu0 %v1265
  %v1304 = vpop.f32.mrb[0].mxu0
  %v1305 = vadd.f32 0.0, %v1304
  %v1306 = vpop.f32.mrb[0].mxu0
  %v1307 = vpop.f32.mrb[0].mxu0
  %v1308 = vadd.f32 0.0, %v1307
  %v1309 = vpop.f32.mrb[0].mxu0
  %1310 = vdwg.mxu0
  %v1311 = vmul.f32 %v1149, 0.35355338
  %v1312 = vmul.f32 %v1152, 0.35355338
  %v1313 = vmul.f32 %v1201, 0.35355338
  %v1314 = vmul.f32 %v1204, 0.35355338
  %v1315 = vmul.f32 %v1253, 0.35355338
  %v1316 = vmul.f32 %v1256, 0.35355338
  %v1317 = vmul.f32 %v1305, 0.35355338
  %v1318 = vmul.f32 %v1308, 0.35355338
  %v1319 = vsel %vm230, %v1311, -inf
  %1320 = vmax.xlane.f32.xlu0 %v1319
  %v1321 = vpop.xlane.xlu0 %1320
  %v1322 = vsel %vm234, %v1312, -inf
  %1323 = vmax.xlane.f32.xlu0 %v1322
  %v1324 = vpop.xlane.xlu0 %1323
  %v1325 = vsel %vm230, %v1313, -inf
  %1326 = vmax.xlane.f32.xlu0 %v1325
  %v1327 = vpop.xlane.xlu0 %1326
  %v1328 = vsel %vm234, %v1314, -inf
  %1329 = vmax.xlane.f32.xlu0 %v1328
  %v1330 = vpop.xlane.xlu0 %1329
  %v1331 = vsel %vm230, %v1315, -inf
  %1332 = vmax.xlane.f32.xlu0 %v1331
  %v1333 = vpop.xlane.xlu0 %1332
  %v1334 = vsel %vm234, %v1316, -inf
  %1335 = vmax.xlane.f32.xlu0 %v1334
  %v1336 = vpop.xlane.xlu0 %1335
  %v1337 = vsel %vm230, %v1317, -inf
  %1338 = vmax.xlane.f32.xlu0 %v1337
  %v1339 = vpop.xlane.xlu0 %1338
  %v1340 = vsel %vm234, %v1318, -inf
  %1341 = vmax.xlane.f32.xlu0 %v1340
  %v1342 = vpop.xlane.xlu0 %1341
  %v1343 = vsub.f32 %v1311, %v1321
  %v1344 = vsub.f32 %v1312, %v1324
  %v1345 = vsub.f32 %v1313, %v1327
  %v1346 = vsub.f32 %v1314, %v1330
  %v1347 = vsub.f32 %v1315, %v1333
  %v1348 = vsub.f32 %v1316, %v1336
  %v1349 = vsub.f32 %v1317, %v1339
  %v1350 = vsub.f32 %v1318, %v1342
  %v1351 = vmul.f32 %v1343, 1.442695
  %v1352 = vpow.pop %v1351
  %v1353 = vmul.f32 %v1344, 1.442695
  %v1354 = vpow.pop %v1353
  %v1355 = vmul.f32 %v1345, 1.442695
  %v1356 = vpow.pop %v1355
  %v1357 = vmul.f32 %v1346, 1.442695
  %v1358 = vpow.pop %v1357
  %v1359 = vmul.f32 %v1347, 1.442695
  %v1360 = vpow.pop %v1359
  %v1361 = vmul.f32 %v1348, 1.442695
  %v1362 = vpow.pop %v1361
  %v1363 = vmul.f32 %v1349, 1.442695
  %v1364 = vpow.pop %v1363
  %v1365 = vmul.f32 %v1350, 1.442695
  %v1366 = vpow.pop %v1365
  %v1367 = vsel %vm230, %v1352, 0.0
  %1368 = vadd.xlane.f32.xlu0 %v1367
  %v1369 = vpop.xlane.xlu0 %1368
  %v1370 = vsel %vm234, %v1354, 0.0
  %1371 = vadd.xlane.f32.xlu0 %v1370
  %v1372 = vpop.xlane.xlu0 %1371
  %v1373 = vsel %vm230, %v1356, 0.0
  %1374 = vadd.xlane.f32.xlu0 %v1373
  %v1375 = vpop.xlane.xlu0 %1374
  %v1376 = vsel %vm234, %v1358, 0.0
  %1377 = vadd.xlane.f32.xlu0 %v1376
  %v1378 = vpop.xlane.xlu0 %1377
  %v1379 = vsel %vm230, %v1360, 0.0
  %1380 = vadd.xlane.f32.xlu0 %v1379
  %v1381 = vpop.xlane.xlu0 %1380
  %v1382 = vsel %vm234, %v1362, 0.0
  %1383 = vadd.xlane.f32.xlu0 %v1382
  %v1384 = vpop.xlane.xlu0 %1383
  %v1385 = vsel %vm230, %v1364, 0.0
  %1386 = vadd.xlane.f32.xlu0 %v1385
  %v1387 = vpop.xlane.xlu0 %1386
  %v1388 = vsel %vm234, %v1366, 0.0
  %1389 = vadd.xlane.f32.xlu0 %v1388
  %v1390 = vpop.xlane.xlu0 %1389
  %v1391 = vrcp.pop %v1369
  %v1392 = vrcp.pop %v1372
  %v1393 = vrcp.pop %v1375
  %v1394 = vrcp.pop %v1378
  %v1395 = vrcp.pop %v1381
  %v1396 = vrcp.pop %v1384
  %v1397 = vrcp.pop %v1387
  %v1398 = vrcp.pop %v1390
  %v1399 = vmul.f32 %v1352, %v1391
  %v1400 = vmul.f32 %v1354, %v1392
  %v1401 = vmul.f32 %v1356, %v1393
  %v1402 = vmul.f32 %v1358, %v1394
  %v1403 = vmul.f32 %v1360, %v1395
  %v1404 = vmul.f32 %v1362, %v1396
  %v1405 = vmul.f32 %v1364, %v1397
  %v1406 = vmul.f32 %v1366, %v1398
  %v1407 = vpack.c.bf16 %v1400, %v1399
  %v1408 = vpack.c.bf16 %v1402, %v1401
  %v1409 = vpack.c.bf16 %v1404, %v1403
  %v1410 = vpack.c.bf16 %v1406, %v1405
  %1411 = vrot.lane.b32.xlu0 %v1099, 48
  %v1412 = vpop.permute.xlu0 %1411
  %v1414 = vsel %vm230, %v1407, 0
  %v1417 = vand.u32 %v1412, %v332
  %1419 = vmatprep.subr.bf16.mxu0 0
  %1420 = vmatpush1.bf16.msra.mxu0 %v1417
  %1421 = vmatprep.subr.bf16.mxu0 0
  %1422 = vmatpush1.bf16.msra.mxu0 0
  %1423 = vmatprep.subr.bf16.mxu0 0
  %1424 = vmatpush1.bf16.msra.mxu0 0
  %1425 = vmatprep.subr.bf16.mxu0 0
  %1426 = vmatpush1.bf16.msra.mxu0 0
  %1427 = vmatprep.subr.bf16.mxu0 0
  %1428 = vmatpush1.bf16.msra.mxu0 0
  %1429 = vmatprep.subr.bf16.mxu0 0
  %1430 = vmatpush1.bf16.msra.mxu0 0
  %1431 = vmatprep.subr.bf16.mxu0 0
  %1432 = vmatpush1.bf16.msra.mxu0 0
  %1433 = vmatprep.subr.bf16.mxu0 0
  %1434 = vmatpush1.bf16.msra.mxu0 0
  %1435 = vmatprep.subr.bf16.mxu0 0
  %1436 = vmatpush1.bf16.msra.mxu0 0
  %1437 = vmatprep.subr.bf16.mxu0 0
  %1438 = vmatpush1.bf16.msra.mxu0 0
  %1439 = vmatprep.subr.bf16.mxu0 0
  %1440 = vmatpush1.bf16.msra.mxu0 0
  %1441 = vmatprep.subr.bf16.mxu0 0
  %1442 = vmatpush1.bf16.msra.mxu0 0
  %1443 = vmatprep.subr.bf16.mxu0 0
  %1444 = vmatpush1.bf16.msra.mxu0 0
  %1445 = vmatprep.subr.bf16.mxu0 0
  %1446 = vmatpush1.bf16.msra.mxu0 0
  %1447 = vmatprep.subr.bf16.mxu0 0
  %1448 = vmatpush1.bf16.msra.mxu0 0
  %1449 = vmatprep.subr.bf16.mxu0 0
  %1450 = vmatpush1.bf16.msra.mxu0 0
  %1451 = vmatprep.mubr.bf16.mxu0 0
  %1452 = vmatmul.mubr.bf16.gmra.mrb[0].mxu0 %v1414
  %v1453 = vpop.f32.mrb[0].mxu0
  %v1454 = vadd.f32 0.0, %v1453
  %v1455 = vpop.f32.mrb[0].mxu0
  %v1456 = vpop.f32.mrb[0].mxu0
  %v1457 = vadd.f32 0.0, %v1456
  %v1458 = vpop.f32.mrb[0].mxu0
  %1459 = vdwg.mxu0
  %1460 = vrot.lane.b32.xlu0 %v1100, 48
  %v1461 = vpop.permute.xlu0 %1460
  %v1463 = vsel %vm230, %v1408, 0
  %v1466 = vand.u32 %v1461, %v332
  %1468 = vmatprep.subr.bf16.mxu0 0
  %1469 = vmatpush1.bf16.msra.mxu0 %v1466
  %1470 = vmatprep.subr.bf16.mxu0 0
  %1471 = vmatpush1.bf16.msra.mxu0 0
  %1472 = vmatprep.subr.bf16.mxu0 0
  %1473 = vmatpush1.bf16.msra.mxu0 0
  %1474 = vmatprep.subr.bf16.mxu0 0
  %1475 = vmatpush1.bf16.msra.mxu0 0
  %1476 = vmatprep.subr.bf16.mxu0 0
  %1477 = vmatpush1.bf16.msra.mxu0 0
  %1478 = vmatprep.subr.bf16.mxu0 0
  %1479 = vmatpush1.bf16.msra.mxu0 0
  %1480 = vmatprep.subr.bf16.mxu0 0
  %1481 = vmatpush1.bf16.msra.mxu0 0
  %1482 = vmatprep.subr.bf16.mxu0 0
  %1483 = vmatpush1.bf16.msra.mxu0 0
  %1484 = vmatprep.subr.bf16.mxu0 0
  %1485 = vmatpush1.bf16.msra.mxu0 0
  %1486 = vmatprep.subr.bf16.mxu0 0
  %1487 = vmatpush1.bf16.msra.mxu0 0
  %1488 = vmatprep.subr.bf16.mxu0 0
  %1489 = vmatpush1.bf16.msra.mxu0 0
  %1490 = vmatprep.subr.bf16.mxu0 0
  %1491 = vmatpush1.bf16.msra.mxu0 0
  %1492 = vmatprep.subr.bf16.mxu0 0
  %1493 = vmatpush1.bf16.msra.mxu0 0
  %1494 = vmatprep.subr.bf16.mxu0 0
  %1495 = vmatpush1.bf16.msra.mxu0 0
  %1496 = vmatprep.subr.bf16.mxu0 0
  %1497 = vmatpush1.bf16.msra.mxu0 0
  %1498 = vmatprep.subr.bf16.mxu0 0
  %1499 = vmatpush1.bf16.msra.mxu0 0
  %1500 = vmatprep.mubr.bf16.mxu0 0
  %1501 = vmatmul.mubr.bf16.gmra.mrb[0].mxu0 %v1463
  %v1502 = vpop.f32.mrb[0].mxu0
  %v1503 = vadd.f32 0.0, %v1502
  %v1504 = vpop.f32.mrb[0].mxu0
  %v1505 = vpop.f32.mrb[0].mxu0
  %v1506 = vadd.f32 0.0, %v1505
  %v1507 = vpop.f32.mrb[0].mxu0
  %1508 = vdwg.mxu0
  %1509 = vrot.lane.b32.xlu0 %v1101, 48
  %v1510 = vpop.permute.xlu0 %1509
  %v1512 = vsel %vm230, %v1409, 0
  %v1515 = vand.u32 %v1510, %v332
  %1517 = vmatprep.subr.bf16.mxu0 0
  %1518 = vmatpush1.bf16.msra.mxu0 %v1515
  %1519 = vmatprep.subr.bf16.mxu0 0
  %1520 = vmatpush1.bf16.msra.mxu0 0
  %1521 = vmatprep.subr.bf16.mxu0 0
  %1522 = vmatpush1.bf16.msra.mxu0 0
  %1523 = vmatprep.subr.bf16.mxu0 0
  %1524 = vmatpush1.bf16.msra.mxu0 0
  %1525 = vmatprep.subr.bf16.mxu0 0
  %1526 = vmatpush1.bf16.msra.mxu0 0
  %1527 = vmatprep.subr.bf16.mxu0 0
  %1528 = vmatpush1.bf16.msra.mxu0 0
  %1529 = vmatprep.subr.bf16.mxu0 0
  %1530 = vmatpush1.bf16.msra.mxu0 0
  %1531 = vmatprep.subr.bf16.mxu0 0
  %1532 = vmatpush1.bf16.msra.mxu0 0
  %1533 = vmatprep.subr.bf16.mxu0 0
  %1534 = vmatpush1.bf16.msra.mxu0 0
  %1535 = vmatprep.subr.bf16.mxu0 0
  %1536 = vmatpush1.bf16.msra.mxu0 0
  %1537 = vmatprep.subr.bf16.mxu0 0
  %1538 = vmatpush1.bf16.msra.mxu0 0
  %1539 = vmatprep.subr.bf16.mxu0 0
  %1540 = vmatpush1.bf16.msra.mxu0 0
  %1541 = vmatprep.subr.bf16.mxu0 0
  %1542 = vmatpush1.bf16.msra.mxu0 0
  %1543 = vmatprep.subr.bf16.mxu0 0
  %1544 = vmatpush1.bf16.msra.mxu0 0
  %1545 = vmatprep.subr.bf16.mxu0 0
  %1546 = vmatpush1.bf16.msra.mxu0 0
  %1547 = vmatprep.subr.bf16.mxu0 0
  %1548 = vmatpush1.bf16.msra.mxu0 0
  %1549 = vmatprep.mubr.bf16.mxu0 0
  %1550 = vmatmul.mubr.bf16.gmra.mrb[0].mxu0 %v1512
  %v1551 = vpop.f32.mrb[0].mxu0
  %v1552 = vadd.f32 0.0, %v1551
  %v1553 = vpop.f32.mrb[0].mxu0
  %v1554 = vpop.f32.mrb[0].mxu0
  %v1555 = vadd.f32 0.0, %v1554
  %v1556 = vpop.f32.mrb[0].mxu0
  %1557 = vdwg.mxu0
  %1558 = vrot.lane.b32.xlu0 %v1102, 48
  %v1559 = vpop.permute.xlu0 %1558
  %v1561 = vsel %vm230, %v1410, 0
  %v1564 = vand.u32 %v1559, %v332
  %1566 = vmatprep.subr.bf16.mxu0 0
  %1567 = vmatpush1.bf16.msra.mxu0 %v1564
  %1568 = vmatprep.subr.bf16.mxu0 0
  %1569 = vmatpush1.bf16.msra.mxu0 0
  %1570 = vmatprep.subr.bf16.mxu0 0
  %1571 = vmatpush1.bf16.msra.mxu0 0
  %1572 = vmatprep.subr.bf16.mxu0 0
  %1573 = vmatpush1.bf16.msra.mxu0 0
  %1574 = vmatprep.subr.bf16.mxu0 0
  %1575 = vmatpush1.bf16.msra.mxu0 0
  %1576 = vmatprep.subr.bf16.mxu0 0
  %1577 = vmatpush1.bf16.msra.mxu0 0
  %1578 = vmatprep.subr.bf16.mxu0 0
  %1579 = vmatpush1.bf16.msra.mxu0 0
  %1580 = vmatprep.subr.bf16.mxu0 0
  %1581 = vmatpush1.bf16.msra.mxu0 0
  %1582 = vmatprep.subr.bf16.mxu0 0
  %1583 = vmatpush1.bf16.msra.mxu0 0
  %1584 = vmatprep.subr.bf16.mxu0 0
  %1585 = vmatpush1.bf16.msra.mxu0 0
  %1586 = vmatprep.subr.bf16.mxu0 0
  %1587 = vmatpush1.bf16.msra.mxu0 0
  %1588 = vmatprep.subr.bf16.mxu0 0
  %1589 = vmatpush1.bf16.msra.mxu0 0
  %1590 = vmatprep.subr.bf16.mxu0 0
  %1591 = vmatpush1.bf16.msra.mxu0 0
  %1592 = vmatprep.subr.bf16.mxu0 0
  %1593 = vmatpush1.bf16.msra.mxu0 0
  %1594 = vmatprep.subr.bf16.mxu0 0
  %1595 = vmatpush1.bf16.msra.mxu0 0
  %1596 = vmatprep.subr.bf16.mxu0 0
  %1597 = vmatpush1.bf16.msra.mxu0 0
  %1598 = vmatprep.mubr.bf16.mxu0 0
  %1599 = vmatmul.mubr.bf16.gmra.mrb[0].mxu0 %v1561
  %v1600 = vpop.f32.mrb[0].mxu0
  %v1601 = vadd.f32 0.0, %v1600
  %v1602 = vpop.f32.mrb[0].mxu0
  %v1603 = vpop.f32.mrb[0].mxu0
  %v1604 = vadd.f32 0.0, %v1603
  %v1605 = vpop.f32.mrb[0].mxu0
  %1606 = vdwg.mxu0
  %1615 = vrot.lane.b32.xlu0 %v1454, 16
  %v1616 = vpop.permute.xlu0 %1615
  %1617 = vrot.lane.b32.xlu0 %v1457, 16
  %v1618 = vpop.permute.xlu0 %1617
  %1619 = vrot.lane.b32.xlu0 %v1503, 16
  %v1620 = vpop.permute.xlu0 %1619
  %1621 = vrot.lane.b32.xlu0 %v1506, 16
  %v1622 = vpop.permute.xlu0 %1621
  %1623 = vrot.lane.b32.xlu0 %v1552, 16
  %v1624 = vpop.permute.xlu0 %1623
  %1625 = vrot.lane.b32.xlu0 %v1555, 16
  %v1626 = vpop.permute.xlu0 %1625
  %1627 = vrot.lane.b32.xlu0 %v1601, 16
  %v1628 = vpop.permute.xlu0 %1627
  %1629 = vrot.lane.b32.xlu0 %v1604, 16
  %v1630 = vpop.permute.xlu0 %1629
  %vm1639 = vcmask 195712
  %1640 = vst.msk [vmem:[%s1] sm:$0xff] %vm1639, %v1616
  %vm1641 = vcmask 188544
  %1642 = vst.msk [vmem:[%s1 + $0x8] sm:$0x1] %vm1641, %v1618
  %1643 = vst.msk [vmem:[%s1 + $0x10] sm:$0xff] %vm1639, %v1620
  %1644 = vst.msk [vmem:[%s1 + $0x18] sm:$0x1] %vm1641, %v1622
  %1645 = vst.msk [vmem:[%s1 + $0x20] sm:$0xff] %vm1639, %v1624
  %1646 = vst.msk [vmem:[%s1 + $0x28] sm:$0x1] %vm1641, %v1626
  %1647 = vst.msk [vmem:[%s1 + $0x30] sm:$0xff] %vm1639, %v1628
  %1648 = vst.msk [vmem:[%s1 + $0x38] sm:$0x1] %vm1641, %v1630
  %v1649 = vld [vmem:[%s0] sm:$0xff]
  %v1650 = vld [vmem:[%s0 + $0x8] sm:$0x1]
  %v1651 = vld [vmem:[%s0 + $0x10] sm:$0xff]
  %v1652 = vld [vmem:[%s0 + $0x18] sm:$0x1]
  %v1653 = vld [vmem:[%s0 + $0x20] sm:$0xff]
  %v1654 = vld [vmem:[%s0 + $0x28] sm:$0x1]
  %v1655 = vld [vmem:[%s0 + $0x30] sm:$0xff]
  %v1656 = vld [vmem:[%s0 + $0x38] sm:$0x1]
  %v1657 = vpack.c.bf16 %v1650, %v1649
  %v1658 = vpack.c.bf16 %v1652, %v1651
  %v1659 = vpack.c.bf16 %v1654, %v1653
  %v1660 = vpack.c.bf16 %v1656, %v1655
  %1662 = vrot.lane.b32.xlu0 %v1657, 104
  %v1663 = vpop.permute.xlu0 %1662
  %1664 = vrot.lane.b32.xlu0 %v1657, 72
  %v1665 = vpop.permute.xlu0 %1664
  %v1667 = vsel %vm24, %v1663, 0
  %v1670 = vsel %vm24, %v1665, 0
  %1672 = vmatprep.subr.bf16.mxu0 0
  %1673 = vmatpush1.bf16.xpose.msra.mxu0 %v1670
  %1674 = vmatprep.subr.bf16.mxu0 0
  %1675 = vmatpush1.bf16.xpose.msra.mxu0 0
  %1676 = vmatprep.subr.bf16.mxu0 0
  %1677 = vmatpush1.bf16.xpose.msra.mxu0 0
  %1678 = vmatprep.subr.bf16.mxu0 0
  %1679 = vmatpush1.bf16.xpose.msra.mxu0 0
  %1680 = vmatprep.subr.bf16.mxu0 0
  %1681 = vmatpush1.bf16.xpose.msra.mxu0 0
  %1682 = vmatprep.subr.bf16.mxu0 0
  %1683 = vmatpush1.bf16.xpose.msra.mxu0 0
  %1684 = vmatprep.subr.bf16.mxu0 0
  %1685 = vmatpush1.bf16.xpose.msra.mxu0 0
  %1686 = vmatprep.subr.bf16.mxu0 0
  %1687 = vmatpush1.bf16.xpose.msra.mxu0 0
  %1688 = vmatprep.subr.bf16.mxu0 0
  %1689 = vmatpush1.bf16.xpose.msra.mxu0 0
  %1690 = vmatprep.subr.bf16.mxu0 0
  %1691 = vmatpush1.bf16.xpose.msra.mxu0 0
  %1692 = vmatprep.subr.bf16.mxu0 0
  %1693 = vmatpush1.bf16.xpose.msra.mxu0 0
  %1694 = vmatprep.subr.bf16.mxu0 0
  %1695 = vmatpush1.bf16.xpose.msra.mxu0 0
  %1696 = vmatprep.subr.bf16.mxu0 0
  %1697 = vmatpush1.bf16.xpose.msra.mxu0 0
  %1698 = vmatprep.subr.bf16.mxu0 0
  %1699 = vmatpush1.bf16.xpose.msra.mxu0 0
  %1700 = vmatprep.subr.bf16.mxu0 0
  %1701 = vmatpush1.bf16.xpose.msra.mxu0 0
  %1702 = vmatprep.subr.bf16.mxu0 0
  %1703 = vmatpush1.bf16.xpose.msra.mxu0 0
  %1704 = vmatprep.mubr.bf16.mxu0 0
  %1705 = vmatmul.mubr.bf16.gmra.mrb[0].mxu0 %v1667
  %v1706 = vpop.f32.mrb[0].mxu0
  %v1707 = vadd.f32 0.0, %v1706
  %v1708 = vpop.f32.mrb[0].mxu0
  %v1709 = vpop.f32.mrb[0].mxu0
  %v1710 = vadd.f32 0.0, %v1709
  %v1711 = vpop.f32.mrb[0].mxu0
  %1712 = vdwg.mxu0
  %1714 = vrot.lane.b32.xlu0 %v1658, 104
  %v1715 = vpop.permute.xlu0 %1714
  %1716 = vrot.lane.b32.xlu0 %v1658, 72
  %v1717 = vpop.permute.xlu0 %1716
  %v1719 = vsel %vm24, %v1715, 0
  %v1722 = vsel %vm24, %v1717, 0
  %1724 = vmatprep.subr.bf16.mxu0 0
  %1725 = vmatpush1.bf16.xpose.msra.mxu0 %v1722
  %1726 = vmatprep.subr.bf16.mxu0 0
  %1727 = vmatpush1.bf16.xpose.msra.mxu0 0
  %1728 = vmatprep.subr.bf16.mxu0 0
  %1729 = vmatpush1.bf16.xpose.msra.mxu0 0
  %1730 = vmatprep.subr.bf16.mxu0 0
  %1731 = vmatpush1.bf16.xpose.msra.mxu0 0
  %1732 = vmatprep.subr.bf16.mxu0 0
  %1733 = vmatpush1.bf16.xpose.msra.mxu0 0
  %1734 = vmatprep.subr.bf16.mxu0 0
  %1735 = vmatpush1.bf16.xpose.msra.mxu0 0
  %1736 = vmatprep.subr.bf16.mxu0 0
  %1737 = vmatpush1.bf16.xpose.msra.mxu0 0
  %1738 = vmatprep.subr.bf16.mxu0 0
  %1739 = vmatpush1.bf16.xpose.msra.mxu0 0
  %1740 = vmatprep.subr.bf16.mxu0 0
  %1741 = vmatpush1.bf16.xpose.msra.mxu0 0
  %1742 = vmatprep.subr.bf16.mxu0 0
  %1743 = vmatpush1.bf16.xpose.msra.mxu0 0
  %1744 = vmatprep.subr.bf16.mxu0 0
  %1745 = vmatpush1.bf16.xpose.msra.mxu0 0
  %1746 = vmatprep.subr.bf16.mxu0 0
  %1747 = vmatpush1.bf16.xpose.msra.mxu0 0
  %1748 = vmatprep.subr.bf16.mxu0 0
  %1749 = vmatpush1.bf16.xpose.msra.mxu0 0
  %1750 = vmatprep.subr.bf16.mxu0 0
  %1751 = vmatpush1.bf16.xpose.msra.mxu0 0
  %1752 = vmatprep.subr.bf16.mxu0 0
  %1753 = vmatpush1.bf16.xpose.msra.mxu0 0
  %1754 = vmatprep.subr.bf16.mxu0 0
  %1755 = vmatpush1.bf16.xpose.msra.mxu0 0
  %1756 = vmatprep.mubr.bf16.mxu0 0
  %1757 = vmatmul.mubr.bf16.gmra.mrb[0].mxu0 %v1719
  %v1758 = vpop.f32.mrb[0].mxu0
  %v1759 = vadd.f32 0.0, %v1758
  %v1760 = vpop.f32.mrb[0].mxu0
  %v1761 = vpop.f32.mrb[0].mxu0
  %v1762 = vadd.f32 0.0, %v1761
  %v1763 = vpop.f32.mrb[0].mxu0
  %1764 = vdwg.mxu0
  %1766 = vrot.lane.b32.xlu0 %v1659, 104
  %v1767 = vpop.permute.xlu0 %1766
  %1768 = vrot.lane.b32.xlu0 %v1659, 72
  %v1769 = vpop.permute.xlu0 %1768
  %v1771 = vsel %vm24, %v1767, 0
  %v1774 = vsel %vm24, %v1769, 0
  %1776 = vmatprep.subr.bf16.mxu0 0
  %1777 = vmatpush1.bf16.xpose.msra.mxu0 %v1774
  %1778 = vmatprep.subr.bf16.mxu0 0
  %1779 = vmatpush1.bf16.xpose.msra.mxu0 0
  %1780 = vmatprep.subr.bf16.mxu0 0
  %1781 = vmatpush1.bf16.xpose.msra.mxu0 0
  %1782 = vmatprep.subr.bf16.mxu0 0
  %1783 = vmatpush1.bf16.xpose.msra.mxu0 0
  %1784 = vmatprep.subr.bf16.mxu0 0
  %1785 = vmatpush1.bf16.xpose.msra.mxu0 0
  %1786 = vmatprep.subr.bf16.mxu0 0
  %1787 = vmatpush1.bf16.xpose.msra.mxu0 0
  %1788 = vmatprep.subr.bf16.mxu0 0
  %1789 = vmatpush1.bf16.xpose.msra.mxu0 0
  %1790 = vmatprep.subr.bf16.mxu0 0
  %1791 = vmatpush1.bf16.xpose.msra.mxu0 0
  %1792 = vmatprep.subr.bf16.mxu0 0
  %1793 = vmatpush1.bf16.xpose.msra.mxu0 0
  %1794 = vmatprep.subr.bf16.mxu0 0
  %1795 = vmatpush1.bf16.xpose.msra.mxu0 0
  %1796 = vmatprep.subr.bf16.mxu0 0
  %1797 = vmatpush1.bf16.xpose.msra.mxu0 0
  %1798 = vmatprep.subr.bf16.mxu0 0
  %1799 = vmatpush1.bf16.xpose.msra.mxu0 0
  %1800 = vmatprep.subr.bf16.mxu0 0
  %1801 = vmatpush1.bf16.xpose.msra.mxu0 0
  %1802 = vmatprep.subr.bf16.mxu0 0
  %1803 = vmatpush1.bf16.xpose.msra.mxu0 0
  %1804 = vmatprep.subr.bf16.mxu0 0
  %1805 = vmatpush1.bf16.xpose.msra.mxu0 0
  %1806 = vmatprep.subr.bf16.mxu0 0
  %1807 = vmatpush1.bf16.xpose.msra.mxu0 0
  %1808 = vmatprep.mubr.bf16.mxu0 0
  %1809 = vmatmul.mubr.bf16.gmra.mrb[0].mxu0 %v1771
  %v1810 = vpop.f32.mrb[0].mxu0
  %v1811 = vadd.f32 0.0, %v1810
  %v1812 = vpop.f32.mrb[0].mxu0
  %v1813 = vpop.f32.mrb[0].mxu0
  %v1814 = vadd.f32 0.0, %v1813
  %v1815 = vpop.f32.mrb[0].mxu0
  %1816 = vdwg.mxu0
  %1818 = vrot.lane.b32.xlu0 %v1660, 104
  %v1819 = vpop.permute.xlu0 %1818
  %1820 = vrot.lane.b32.xlu0 %v1660, 72
  %v1821 = vpop.permute.xlu0 %1820
  %v1823 = vsel %vm24, %v1819, 0
  %v1826 = vsel %vm24, %v1821, 0
  %1828 = vmatprep.subr.bf16.mxu0 0
  %1829 = vmatpush1.bf16.xpose.msra.mxu0 %v1826
  %1830 = vmatprep.subr.bf16.mxu0 0
  %1831 = vmatpush1.bf16.xpose.msra.mxu0 0
  %1832 = vmatprep.subr.bf16.mxu0 0
  %1833 = vmatpush1.bf16.xpose.msra.mxu0 0
  %1834 = vmatprep.subr.bf16.mxu0 0
  %1835 = vmatpush1.bf16.xpose.msra.mxu0 0
  %1836 = vmatprep.subr.bf16.mxu0 0
  %1837 = vmatpush1.bf16.xpose.msra.mxu0 0
  %1838 = vmatprep.subr.bf16.mxu0 0
  %1839 = vmatpush1.bf16.xpose.msra.mxu0 0
  %1840 = vmatprep.subr.bf16.mxu0 0
  %1841 = vmatpush1.bf16.xpose.msra.mxu0 0
  %1842 = vmatprep.subr.bf16.mxu0 0
  %1843 = vmatpush1.bf16.xpose.msra.mxu0 0
  %1844 = vmatprep.subr.bf16.mxu0 0
  %1845 = vmatpush1.bf16.xpose.msra.mxu0 0
  %1846 = vmatprep.subr.bf16.mxu0 0
  %1847 = vmatpush1.bf16.xpose.msra.mxu0 0
  %1848 = vmatprep.subr.bf16.mxu0 0
  %1849 = vmatpush1.bf16.xpose.msra.mxu0 0
  %1850 = vmatprep.subr.bf16.mxu0 0
  %1851 = vmatpush1.bf16.xpose.msra.mxu0 0
  %1852 = vmatprep.subr.bf16.mxu0 0
  %1853 = vmatpush1.bf16.xpose.msra.mxu0 0
  %1854 = vmatprep.subr.bf16.mxu0 0
  %1855 = vmatpush1.bf16.xpose.msra.mxu0 0
  %1856 = vmatprep.subr.bf16.mxu0 0
  %1857 = vmatpush1.bf16.xpose.msra.mxu0 0
  %1858 = vmatprep.subr.bf16.mxu0 0
  %1859 = vmatpush1.bf16.xpose.msra.mxu0 0
  %1860 = vmatprep.mubr.bf16.mxu0 0
  %1861 = vmatmul.mubr.bf16.gmra.mrb[0].mxu0 %v1823
  %v1862 = vpop.f32.mrb[0].mxu0
  %v1863 = vadd.f32 0.0, %v1862
  %v1864 = vpop.f32.mrb[0].mxu0
  %v1865 = vpop.f32.mrb[0].mxu0
  %v1866 = vadd.f32 0.0, %v1865
  %v1867 = vpop.f32.mrb[0].mxu0
  %1868 = vdwg.mxu0
  %v1869 = vmul.f32 %v1707, 0.35355338
  %v1870 = vmul.f32 %v1710, 0.35355338
  %v1871 = vmul.f32 %v1759, 0.35355338
  %v1872 = vmul.f32 %v1762, 0.35355338
  %v1873 = vmul.f32 %v1811, 0.35355338
  %v1874 = vmul.f32 %v1814, 0.35355338
  %v1875 = vmul.f32 %v1863, 0.35355338
  %v1876 = vmul.f32 %v1866, 0.35355338
  %v1877 = vsel %vm230, %v1869, -inf
  %1878 = vmax.xlane.f32.xlu0 %v1877
  %v1879 = vpop.xlane.xlu0 %1878
  %v1880 = vsel %vm234, %v1870, -inf
  %1881 = vmax.xlane.f32.xlu0 %v1880
  %v1882 = vpop.xlane.xlu0 %1881
  %v1883 = vsel %vm230, %v1871, -inf
  %1884 = vmax.xlane.f32.xlu0 %v1883
  %v1885 = vpop.xlane.xlu0 %1884
  %v1886 = vsel %vm234, %v1872, -inf
  %1887 = vmax.xlane.f32.xlu0 %v1886
  %v1888 = vpop.xlane.xlu0 %1887
  %v1889 = vsel %vm230, %v1873, -inf
  %1890 = vmax.xlane.f32.xlu0 %v1889
  %v1891 = vpop.xlane.xlu0 %1890
  %v1892 = vsel %vm234, %v1874, -inf
  %1893 = vmax.xlane.f32.xlu0 %v1892
  %v1894 = vpop.xlane.xlu0 %1893
  %v1895 = vsel %vm230, %v1875, -inf
  %1896 = vmax.xlane.f32.xlu0 %v1895
  %v1897 = vpop.xlane.xlu0 %1896
  %v1898 = vsel %vm234, %v1876, -inf
  %1899 = vmax.xlane.f32.xlu0 %v1898
  %v1900 = vpop.xlane.xlu0 %1899
  %v1901 = vsub.f32 %v1869, %v1879
  %v1902 = vsub.f32 %v1870, %v1882
  %v1903 = vsub.f32 %v1871, %v1885
  %v1904 = vsub.f32 %v1872, %v1888
  %v1905 = vsub.f32 %v1873, %v1891
  %v1906 = vsub.f32 %v1874, %v1894
  %v1907 = vsub.f32 %v1875, %v1897
  %v1908 = vsub.f32 %v1876, %v1900
  %v1909 = vmul.f32 %v1901, 1.442695
  %v1910 = vpow.pop %v1909
  %v1911 = vmul.f32 %v1902, 1.442695
  %v1912 = vpow.pop %v1911
  %v1913 = vmul.f32 %v1903, 1.442695
  %v1914 = vpow.pop %v1913
  %v1915 = vmul.f32 %v1904, 1.442695
  %v1916 = vpow.pop %v1915
  %v1917 = vmul.f32 %v1905, 1.442695
  %v1918 = vpow.pop %v1917
  %v1919 = vmul.f32 %v1906, 1.442695
  %v1920 = vpow.pop %v1919
  %v1921 = vmul.f32 %v1907, 1.442695
  %v1922 = vpow.pop %v1921
  %v1923 = vmul.f32 %v1908, 1.442695
  %v1924 = vpow.pop %v1923
  %v1925 = vsel %vm230, %v1910, 0.0
  %1926 = vadd.xlane.f32.xlu0 %v1925
  %v1927 = vpop.xlane.xlu0 %1926
  %v1928 = vsel %vm234, %v1912, 0.0
  %1929 = vadd.xlane.f32.xlu0 %v1928
  %v1930 = vpop.xlane.xlu0 %1929
  %v1931 = vsel %vm230, %v1914, 0.0
  %1932 = vadd.xlane.f32.xlu0 %v1931
  %v1933 = vpop.xlane.xlu0 %1932
  %v1934 = vsel %vm234, %v1916, 0.0
  %1935 = vadd.xlane.f32.xlu0 %v1934
  %v1936 = vpop.xlane.xlu0 %1935
  %v1937 = vsel %vm230, %v1918, 0.0
  %1938 = vadd.xlane.f32.xlu0 %v1937
  %v1939 = vpop.xlane.xlu0 %1938
  %v1940 = vsel %vm234, %v1920, 0.0
  %1941 = vadd.xlane.f32.xlu0 %v1940
  %v1942 = vpop.xlane.xlu0 %1941
  %v1943 = vsel %vm230, %v1922, 0.0
  %1944 = vadd.xlane.f32.xlu0 %v1943
  %v1945 = vpop.xlane.xlu0 %1944
  %v1946 = vsel %vm234, %v1924, 0.0
  %1947 = vadd.xlane.f32.xlu0 %v1946
  %v1948 = vpop.xlane.xlu0 %1947
  %v1949 = vrcp.pop %v1927
  %v1950 = vrcp.pop %v1930
  %v1951 = vrcp.pop %v1933
  %v1952 = vrcp.pop %v1936
  %v1953 = vrcp.pop %v1939
  %v1954 = vrcp.pop %v1942
  %v1955 = vrcp.pop %v1945
  %v1956 = vrcp.pop %v1948
  %v1957 = vmul.f32 %v1910, %v1949
  %v1958 = vmul.f32 %v1912, %v1950
  %v1959 = vmul.f32 %v1914, %v1951
  %v1960 = vmul.f32 %v1916, %v1952
  %v1961 = vmul.f32 %v1918, %v1953
  %v1962 = vmul.f32 %v1920, %v1954
  %v1963 = vmul.f32 %v1922, %v1955
  %v1964 = vmul.f32 %v1924, %v1956
  %v1965 = vpack.c.bf16 %v1958, %v1957
  %v1966 = vpack.c.bf16 %v1960, %v1959
  %v1967 = vpack.c.bf16 %v1962, %v1961
  %v1968 = vpack.c.bf16 %v1964, %v1963
  %1969 = vrot.lane.b32.xlu0 %v1657, 40
  %v1970 = vpop.permute.xlu0 %1969
  %v1972 = vsel %vm230, %v1965, 0
  %v1975 = vand.u32 %v1970, %v332
  %1977 = vmatprep.subr.bf16.mxu0 0
  %1978 = vmatpush1.bf16.msra.mxu0 %v1975
  %1979 = vmatprep.subr.bf16.mxu0 0
  %1980 = vmatpush1.bf16.msra.mxu0 0
  %1981 = vmatprep.subr.bf16.mxu0 0
  %1982 = vmatpush1.bf16.msra.mxu0 0
  %1983 = vmatprep.subr.bf16.mxu0 0
  %1984 = vmatpush1.bf16.msra.mxu0 0
  %1985 = vmatprep.subr.bf16.mxu0 0
  %1986 = vmatpush1.bf16.msra.mxu0 0
  %1987 = vmatprep.subr.bf16.mxu0 0
  %1988 = vmatpush1.bf16.msra.mxu0 0
  %1989 = vmatprep.subr.bf16.mxu0 0
  %1990 = vmatpush1.bf16.msra.mxu0 0
  %1991 = vmatprep.subr.bf16.mxu0 0
  %1992 = vmatpush1.bf16.msra.mxu0 0
  %1993 = vmatprep.subr.bf16.mxu0 0
  %1994 = vmatpush1.bf16.msra.mxu0 0
  %1995 = vmatprep.subr.bf16.mxu0 0
  %1996 = vmatpush1.bf16.msra.mxu0 0
  %1997 = vmatprep.subr.bf16.mxu0 0
  %1998 = vmatpush1.bf16.msra.mxu0 0
  %1999 = vmatprep.subr.bf16.mxu0 0
  %2000 = vmatpush1.bf16.msra.mxu0 0
  %2001 = vmatprep.subr.bf16.mxu0 0
  %2002 = vmatpush1.bf16.msra.mxu0 0
  %2003 = vmatprep.subr.bf16.mxu0 0
  %2004 = vmatpush1.bf16.msra.mxu0 0
  %2005 = vmatprep.subr.bf16.mxu0 0
  %2006 = vmatpush1.bf16.msra.mxu0 0
  %2007 = vmatprep.subr.bf16.mxu0 0
  %2008 = vmatpush1.bf16.msra.mxu0 0
  %2009 = vmatprep.mubr.bf16.mxu0 0
  %2010 = vmatmul.mubr.bf16.gmra.mrb[0].mxu0 %v1972
  %v2011 = vpop.f32.mrb[0].mxu0
  %v2012 = vadd.f32 0.0, %v2011
  %v2013 = vpop.f32.mrb[0].mxu0
  %v2014 = vpop.f32.mrb[0].mxu0
  %v2015 = vadd.f32 0.0, %v2014
  %v2016 = vpop.f32.mrb[0].mxu0
  %2017 = vdwg.mxu0
  %2018 = vrot.lane.b32.xlu0 %v1658, 40
  %v2019 = vpop.permute.xlu0 %2018
  %v2021 = vsel %vm230, %v1966, 0
  %v2024 = vand.u32 %v2019, %v332
  %2026 = vmatprep.subr.bf16.mxu0 0
  %2027 = vmatpush1.bf16.msra.mxu0 %v2024
  %2028 = vmatprep.subr.bf16.mxu0 0
  %2029 = vmatpush1.bf16.msra.mxu0 0
  %2030 = vmatprep.subr.bf16.mxu0 0
  %2031 = vmatpush1.bf16.msra.mxu0 0
  %2032 = vmatprep.subr.bf16.mxu0 0
  %2033 = vmatpush1.bf16.msra.mxu0 0
  %2034 = vmatprep.subr.bf16.mxu0 0
  %2035 = vmatpush1.bf16.msra.mxu0 0
  %2036 = vmatprep.subr.bf16.mxu0 0
  %2037 = vmatpush1.bf16.msra.mxu0 0
  %2038 = vmatprep.subr.bf16.mxu0 0
  %2039 = vmatpush1.bf16.msra.mxu0 0
  %2040 = vmatprep.subr.bf16.mxu0 0
  %2041 = vmatpush1.bf16.msra.mxu0 0
  %2042 = vmatprep.subr.bf16.mxu0 0
  %2043 = vmatpush1.bf16.msra.mxu0 0
  %2044 = vmatprep.subr.bf16.mxu0 0
  %2045 = vmatpush1.bf16.msra.mxu0 0
  %2046 = vmatprep.subr.bf16.mxu0 0
  %2047 = vmatpush1.bf16.msra.mxu0 0
  %2048 = vmatprep.subr.bf16.mxu0 0
  %2049 = vmatpush1.bf16.msra.mxu0 0
  %2050 = vmatprep.subr.bf16.mxu0 0
  %2051 = vmatpush1.bf16.msra.mxu0 0
  %2052 = vmatprep.subr.bf16.mxu0 0
  %2053 = vmatpush1.bf16.msra.mxu0 0
  %2054 = vmatprep.subr.bf16.mxu0 0
  %2055 = vmatpush1.bf16.msra.mxu0 0
  %2056 = vmatprep.subr.bf16.mxu0 0
  %2057 = vmatpush1.bf16.msra.mxu0 0
  %2058 = vmatprep.mubr.bf16.mxu0 0
  %2059 = vmatmul.mubr.bf16.gmra.mrb[0].mxu0 %v2021
  %v2060 = vpop.f32.mrb[0].mxu0
  %v2061 = vadd.f32 0.0, %v2060
  %v2062 = vpop.f32.mrb[0].mxu0
  %v2063 = vpop.f32.mrb[0].mxu0
  %v2064 = vadd.f32 0.0, %v2063
  %v2065 = vpop.f32.mrb[0].mxu0
  %2066 = vdwg.mxu0
  %2067 = vrot.lane.b32.xlu0 %v1659, 40
  %v2068 = vpop.permute.xlu0 %2067
  %v2070 = vsel %vm230, %v1967, 0
  %v2073 = vand.u32 %v2068, %v332
  %2075 = vmatprep.subr.bf16.mxu0 0
  %2076 = vmatpush1.bf16.msra.mxu0 %v2073
  %2077 = vmatprep.subr.bf16.mxu0 0
  %2078 = vmatpush1.bf16.msra.mxu0 0
  %2079 = vmatprep.subr.bf16.mxu0 0
  %2080 = vmatpush1.bf16.msra.mxu0 0
  %2081 = vmatprep.subr.bf16.mxu0 0
  %2082 = vmatpush1.bf16.msra.mxu0 0
  %2083 = vmatprep.subr.bf16.mxu0 0
  %2084 = vmatpush1.bf16.msra.mxu0 0
  %2085 = vmatprep.subr.bf16.mxu0 0
  %2086 = vmatpush1.bf16.msra.mxu0 0
  %2087 = vmatprep.subr.bf16.mxu0 0
  %2088 = vmatpush1.bf16.msra.mxu0 0
  %2089 = vmatprep.subr.bf16.mxu0 0
  %2090 = vmatpush1.bf16.msra.mxu0 0
  %2091 = vmatprep.subr.bf16.mxu0 0
  %2092 = vmatpush1.bf16.msra.mxu0 0
  %2093 = vmatprep.subr.bf16.mxu0 0
  %2094 = vmatpush1.bf16.msra.mxu0 0
  %2095 = vmatprep.subr.bf16.mxu0 0
  %2096 = vmatpush1.bf16.msra.mxu0 0
  %2097 = vmatprep.subr.bf16.mxu0 0
  %2098 = vmatpush1.bf16.msra.mxu0 0
  %2099 = vmatprep.subr.bf16.mxu0 0
  %2100 = vmatpush1.bf16.msra.mxu0 0
  %2101 = vmatprep.subr.bf16.mxu0 0
  %2102 = vmatpush1.bf16.msra.mxu0 0
  %2103 = vmatprep.subr.bf16.mxu0 0
  %2104 = vmatpush1.bf16.msra.mxu0 0
  %2105 = vmatprep.subr.bf16.mxu0 0
  %2106 = vmatpush1.bf16.msra.mxu0 0
  %2107 = vmatprep.mubr.bf16.mxu0 0
  %2108 = vmatmul.mubr.bf16.gmra.mrb[0].mxu0 %v2070
  %v2109 = vpop.f32.mrb[0].mxu0
  %v2110 = vadd.f32 0.0, %v2109
  %v2111 = vpop.f32.mrb[0].mxu0
  %v2112 = vpop.f32.mrb[0].mxu0
  %v2113 = vadd.f32 0.0, %v2112
  %v2114 = vpop.f32.mrb[0].mxu0
  %2115 = vdwg.mxu0
  %2116 = vrot.lane.b32.xlu0 %v1660, 40
  %v2117 = vpop.permute.xlu0 %2116
  %v2119 = vsel %vm230, %v1968, 0
  %v2122 = vand.u32 %v2117, %v332
  %2124 = vmatprep.subr.bf16.mxu0 0
  %2125 = vmatpush1.bf16.msra.mxu0 %v2122
  %2126 = vmatprep.subr.bf16.mxu0 0
  %2127 = vmatpush1.bf16.msra.mxu0 0
  %2128 = vmatprep.subr.bf16.mxu0 0
  %2129 = vmatpush1.bf16.msra.mxu0 0
  %2130 = vmatprep.subr.bf16.mxu0 0
  %2131 = vmatpush1.bf16.msra.mxu0 0
  %2132 = vmatprep.subr.bf16.mxu0 0
  %2133 = vmatpush1.bf16.msra.mxu0 0
  %2134 = vmatprep.subr.bf16.mxu0 0
  %2135 = vmatpush1.bf16.msra.mxu0 0
  %2136 = vmatprep.subr.bf16.mxu0 0
  %2137 = vmatpush1.bf16.msra.mxu0 0
  %2138 = vmatprep.subr.bf16.mxu0 0
  %2139 = vmatpush1.bf16.msra.mxu0 0
  %2140 = vmatprep.subr.bf16.mxu0 0
  %2141 = vmatpush1.bf16.msra.mxu0 0
  %2142 = vmatprep.subr.bf16.mxu0 0
  %2143 = vmatpush1.bf16.msra.mxu0 0
  %2144 = vmatprep.subr.bf16.mxu0 0
  %2145 = vmatpush1.bf16.msra.mxu0 0
  %2146 = vmatprep.subr.bf16.mxu0 0
  %2147 = vmatpush1.bf16.msra.mxu0 0
  %2148 = vmatprep.subr.bf16.mxu0 0
  %2149 = vmatpush1.bf16.msra.mxu0 0
  %2150 = vmatprep.subr.bf16.mxu0 0
  %2151 = vmatpush1.bf16.msra.mxu0 0
  %2152 = vmatprep.subr.bf16.mxu0 0
  %2153 = vmatpush1.bf16.msra.mxu0 0
  %2154 = vmatprep.subr.bf16.mxu0 0
  %2155 = vmatpush1.bf16.msra.mxu0 0
  %2156 = vmatprep.mubr.bf16.mxu0 0
  %2157 = vmatmul.mubr.bf16.gmra.mrb[0].mxu0 %v2119
  %v2158 = vpop.f32.mrb[0].mxu0
  %v2159 = vadd.f32 0.0, %v2158
  %v2160 = vpop.f32.mrb[0].mxu0
  %v2161 = vpop.f32.mrb[0].mxu0
  %v2162 = vadd.f32 0.0, %v2161
  %v2163 = vpop.f32.mrb[0].mxu0
  %2164 = vdwg.mxu0
  %2173 = vrot.lane.b32.xlu0 %v2012, 24
  %v2174 = vpop.permute.xlu0 %2173
  %2175 = vrot.lane.b32.xlu0 %v2015, 24
  %v2176 = vpop.permute.xlu0 %2175
  %2177 = vrot.lane.b32.xlu0 %v2061, 24
  %v2178 = vpop.permute.xlu0 %2177
  %2179 = vrot.lane.b32.xlu0 %v2064, 24
  %v2180 = vpop.permute.xlu0 %2179
  %2181 = vrot.lane.b32.xlu0 %v2110, 24
  %v2182 = vpop.permute.xlu0 %2181
  %2183 = vrot.lane.b32.xlu0 %v2113, 24
  %v2184 = vpop.permute.xlu0 %2183
  %2185 = vrot.lane.b32.xlu0 %v2159, 24
  %v2186 = vpop.permute.xlu0 %2185
  %2187 = vrot.lane.b32.xlu0 %v2162, 24
  %v2188 = vpop.permute.xlu0 %2187
  %vm2197 = vcmask 261312
  %2198 = vst.msk [vmem:[%s1] sm:$0xff] %vm2197, %v2174
  %vm2199 = vcmask 254144
  %2200 = vst.msk [vmem:[%s1 + $0x8] sm:$0x1] %vm2199, %v2176
  %2201 = vst.msk [vmem:[%s1 + $0x10] sm:$0xff] %vm2197, %v2178
  %2202 = vst.msk [vmem:[%s1 + $0x18] sm:$0x1] %vm2199, %v2180
  %2203 = vst.msk [vmem:[%s1 + $0x20] sm:$0xff] %vm2197, %v2182
  %2204 = vst.msk [vmem:[%s1 + $0x28] sm:$0x1] %vm2199, %v2184
  %2205 = vst.msk [vmem:[%s1 + $0x30] sm:$0xff] %vm2197, %v2186
  %2206 = vst.msk [vmem:[%s1 + $0x38] sm:$0x1] %vm2199, %v2188
  // Predicated region
  $region6: #{_lambda_.23} parent=0 // pred_check
    _
  $region7: #{_lambda_.23} parent=0 // pred_check_branch
    %2208 = sbr.rel (0) target = $region9
  $region8: #{_lambda_.23} parent=0 // pred_region
    _
  $region9: #{_lambda_.23} parent=0 // pred_fallthru
    _
  // Predicated region
  $region10: #{_lambda_.23} parent=0 // pred_check
    _
  $region11: #{_lambda_.23} parent=0 // pred_check_branch
    %2210 = sbr.rel (0) target = $region13
  $region12: #{_lambda_.23} parent=0 // pred_region
    _
  $region13: #{_lambda_.23} parent=0 // pred_fallthru
    _

</llo_original>
